<compile_context>
chip_gen: v6e
topology: v6e:2x2x1
jax: 0.10.0
libtpu: 0.0.40
codegen_flags: <defaults>
</compile_context>

<pallas_src>
import jax
import jax.numpy as jnp
from jax import lax
from jax.experimental import pallas as pl
from jax.experimental.pallas import tpu as pltpu

BN_EPS = 1e-5
N_RES = 8          # the PyTorch ModuleList holds the SAME kanres module 8x


# ----------------------------------------------------------------------------
# Fused whole-network kernel: pure 2-D matmuls + elementwise epilogues.
# ----------------------------------------------------------------------------
def _kanres_fused_kernel(x_ref,
                         t1_ref, s1_ref,
                         t2_ref, s2_ref,
                         pool_ref,
                         tk1_ref, sk1_ref,
                         tk2_ref, sk2_ref,
                         head_ref, bhead_ref,
                         o_ref):
    def mm(a, w_ref):
        return jnp.dot(a, w_ref[...], preferred_element_type=jnp.float32)

    x = x_ref[...]                                                # (B, L0*Cin)

    # initial_block: Conv(9)+BN+ReLU, Conv(3)+BN+ReLU  (one matmul each)
    x = jnp.maximum(mm(x, t1_ref) + s1_ref[...], 0.0)            # (B, L0*64)
    x = jnp.maximum(mm(x, t2_ref) + s2_ref[...], 0.0)            # (B, L0*32)

    # AvgPool1d(kernel=2, stride=2) as a precomputed matrix
    x = mm(x, pool_ref)                                          # (B, Lr*32)

    # 8 residual applications of the shared kanres module, fully unrolled
    for _ in range(N_RES):
        y = jnp.maximum(mm(x, tk1_ref) + sk1_ref[...], 0.0)      # (B, Lr*64)
        y = jnp.maximum(mm(y, tk2_ref) + sk2_ref[...], 0.0)      # (B, Lr*32)
        x = x + y

    # AdaptiveAvgPool1d(1) + flatten + Linear, folded into one head matrix
    o_ref[...] = mm(x, head_ref) + bhead_ref[...]                # (B, O)


# ----------------------------------------------------------------------------
# Wrapper: one pallas_call for the whole forward pass
# ----------------------------------------------------------------------------
@jax.jit
def kanres_forward(x_ncl, fused):
    """x_ncl: (B, C, L) PyTorch Conv1d layout.  Returns (B, output_size)."""
    B, Cin, L0 = x_ncl.shape
    x_flat = jnp.transpose(x_ncl, (0, 2, 1)).reshape(B, L0 * Cin)
    x_flat = x_flat.astype(jnp.float32)
    O = fused["head"].shape[1]

    inputs = (x_flat,
              fused["t1"], fused["s1"],
              fused["t2"], fused["s2"],
              fused["pool"],
              fused["tk1"], fused["sk1"],
              fused["tk2"], fused["sk2"],
              fused["head"], fused["bhead"])

    def const_spec(a):
        zeros = (0,) * a.ndim
        return pl.BlockSpec(a.shape, lambda i, z=zeros: z)

    return pl.pallas_call(
        _kanres_fused_kernel,
        grid=(1,),
        in_specs=[const_spec(a) for a in inputs],
        out_specs=pl.BlockSpec((B, O), lambda i: (0, 0)),
        out_shape=jax.ShapeDtypeStruct((B, O), jnp.float32),
        compiler_params=pltpu.CompilerParams(
            dimension_semantics=("arbitrary",),
            vmem_limit_bytes=32 * 1024 * 1024),
    )(*inputs)


# ----------------------------------------------------------------------------
# Wrapper-side weight preparation (Toeplitz expansion, BN folding, pool/head)
# ----------------------------------------------------------------------------
def _fold_bn(bias, gamma, beta, mean, var):
    scale = gamma / jnp.sqrt(var + BN_EPS)
    shift = beta + (bias - mean) * scale
    return scale, shift


def _conv_toeplitz(w_oik, scale, Lin):
    """Dense (Lin*Cin, Lin*Cout) matrix for a same-padded stride-1 Conv1d,
    with the eval-mode BN scale folded into the columns.  Only taps that can
    reach real data appear (implicit tap trimming for the K=51 kan convs)."""
    Cout, Cin, K = w_oik.shape
    pad = (K - 1) // 2
    w_kio = jnp.transpose(w_oik, (2, 1, 0))                  # (K, Cin, Cout)
    li = jnp.arange(Lin)[:, None]
    lo = jnp.arange(Lin)[None, :]
    kk = li - lo + pad                                       # tap index per (l_in, l_out)
    valid = ((kk >= 0) & (kk < K)).astype(jnp.float32)
    t4 = w_kio[jnp.clip(kk, 0, K - 1)] * valid[:, :, None, None]
    t4 = t4 * scale[None, None, None, :]                     # fold BN scale
    # row = l_in*Cin + ci, col = l_out*Cout + co
    return jnp.transpose(t4, (0, 2, 1, 3)).reshape(Lin * Cin, Lin * Cout)


def prepare_fused(raw, L0):
    assert L0 % 2 == 0, "AvgPool1d(2,2) glue assumes even length"
    # TODO(synk): odd input lengths would need PyTorch's floor behaviour here.
    Lr = L0 // 2
    names = {"init1": ("t1", "s1", L0), "init2": ("t2", "s2", L0),
             "kan1": ("tk1", "sk1", Lr), "kan2": ("tk2", "sk2", Lr)}
    fused = {}
    for name, (tkey, skey, Lin) in names.items():
        w, b, g, bt, mean, var = raw[name]
        scale, shift = _fold_bn(b, g, bt, mean, var)
        fused[tkey] = _conv_toeplitz(w, scale, Lin)
        fused[skey] = jnp.tile(shift, (Lin,)).reshape(1, -1)  # shift[co] per position

    # AvgPool1d(2,2): (L0*32, Lr*32) matrix (identity over channels)
    C = 32
    li = jnp.arange(L0)[:, None]
    lo = jnp.arange(Lr)[None, :]
    pmask = jnp.where((li == 2 * lo) | (li == 2 * lo + 1), 0.5, 0.0)
    pmask = pmask.astype(jnp.float32)                        # (L0, Lr)
    eye = jnp.eye(C, dtype=jnp.float32)
    fused["pool"] = (pmask[:, None, :, None] * eye[None, :, None, :]
                     ).reshape(L0 * C, Lr * C)

    # AdaptiveAvgPool1d(1) + Linear folded into one (Lr*32, O) matrix
    fused["head"] = jnp.tile(raw["fc_w"].T / Lr, (Lr, 1))    # row l*C+c -> fc_w[o,c]/Lr
    fused["bhead"] = raw["fc_b"].reshape(1, -1)
    return fused


# ----------------------------------------------------------------------------
# Parameter init (deterministic, synthetic)
# ----------------------------------------------------------------------------
def _conv_init(kw, kb, cout, cin, ksz):
    bound = float((cin * ksz) ** -0.5)
    w = jax.random.uniform(kw, (cout, cin, ksz), jnp.float32, -bound, bound)
    b = jax.random.uniform(kb, (cout,), jnp.float32, -bound, bound)
    return w, b


def _bn_init(k, c):
    k1, k2, k3, k4 = jax.random.split(k, 4)
    gamma = 1.0 + 0.1 * jax.random.normal(k1, (c,), jnp.float32)
    beta = 0.1 * jax.random.normal(k2, (c,), jnp.float32)
    mean = 0.1 * jax.random.normal(k3, (c,), jnp.float32)
    var = 0.5 + jax.random.uniform(k4, (c,), jnp.float32)
    return gamma, beta, mean, var


def init_params(key, input_ch=8, output_size=1):
    ks = jax.random.split(key, 14)
    raw = {}
    raw["init1"] = _conv_init(ks[0], ks[1], 64, input_ch, 9) + _bn_init(ks[2], 64)
    raw["init2"] = _conv_init(ks[3], ks[4], 32, 64, 3) + _bn_init(ks[5], 32)
    # The PyTorch ModuleList holds the SAME kanres_module 8 times -> shared weights.
    raw["kan1"] = _conv_init(ks[6], ks[7], 64, 32, 51) + _bn_init(ks[8], 64)
    raw["kan2"] = _conv_init(ks[9], ks[10], 32, 64, 51) + _bn_init(ks[11], 32)
    fc_bound = float(32 ** -0.5)
    raw["fc_w"] = jax.random.uniform(ks[12], (output_size, 32), jnp.float32,
                                     -fc_bound, fc_bound)
    raw["fc_b"] = jax.random.uniform(ks[13], (output_size,), jnp.float32,
                                     -fc_bound, fc_bound)
    return raw


# ----------------------------------------------------------------------------
# Pure-JAX reference (eval-mode BN)
# ----------------------------------------------------------------------------
def ref_forward(x_ncl, raw):
    def cbr(x, w, b, g, bt, m, v, pad):
        y = lax.conv_general_dilated(x, w, (1,), [(pad, pad)],
                                     dimension_numbers=("NCH", "OIH", "NCH"))
        y = y + b[None, :, None]
        y = (y - m[None, :, None]) * (g / jnp.sqrt(v + BN_EPS))[None, :, None] \
            + bt[None, :, None]
        return jnp.maximum(y, 0.0)

    x = x_ncl.astype(jnp.float32)
    x = cbr(x, *raw["init1"], pad=4)
    x = cbr(x, *raw["init2"], pad=1)
    B, C, L = x.shape
    x = x.reshape(B, C, L // 2, 2).mean(axis=3)
    for _ in range(N_RES):
        y = cbr(x, *raw["kan1"], pad=25)
        y = cbr(y, *raw["kan2"], pad=25)
        x = y + x
    x = x.mean(axis=2)                               # (B, C)
    return x @ raw["fc_w"].T + raw["fc_b"]


if __name__ == "__main__":
    key = jax.random.PRNGKey(0)
    kp, kx = jax.random.split(key)
    raw = init_params(kp, input_ch=8, output_size=1)

    # PyTorch-style NCL input: batch=2, channels=8 (module default), length=16.
    x = jax.random.normal(kx, (2, 8, 16), jnp.float32)

    fused = prepare_fused(raw, L0=x.shape[2])
    out = jax.block_until_ready(kanres_forward(x, fused))
    ref = ref_forward(x, raw)

    assert out.shape == (2, 1), out.shape
    assert jnp.allclose(out, ref, atol=1e-3, rtol=1e-3), (out, ref)
    print("KERNEL_OK")
</pallas_src>

<mosaic_0001>
module attributes {stable_mosaic.version = 11 : i64} {
  func.func @_kanres_fused_kernel(%arg0: i32, %arg1: memref<2x128xf32, #tpu.memory_space<vmem>>, %arg2: memref<128x1024xf32, #tpu.memory_space<vmem>>, %arg3: memref<1x1024xf32, #tpu.memory_space<vmem>>, %arg4: memref<1024x512xf32, #tpu.memory_space<vmem>>, %arg5: memref<1x512xf32, #tpu.memory_space<vmem>>, %arg6: memref<512x256xf32, #tpu.memory_space<vmem>>, %arg7: memref<256x512xf32, #tpu.memory_space<vmem>>, %arg8: memref<1x512xf32, #tpu.memory_space<vmem>>, %arg9: memref<512x256xf32, #tpu.memory_space<vmem>>, %arg10: memref<1x256xf32, #tpu.memory_space<vmem>>, %arg11: memref<256x1xf32, #tpu.memory_space<vmem>>, %arg12: memref<1x1xf32, #tpu.memory_space<vmem>>, %arg13: memref<2x1xf32, #tpu.memory_space<vmem>>) attributes {dimension_semantics = [#tpu.dimension_semantics<arbitrary>], iteration_bounds = array<i64: 1>, scalar_prefetch = 0 : i64, scratch_operands = 0 : i64, tpu.core_type = #tpu.core_type<tc>, window_params = [{pipeline_mode = #tpu.pipeline_mode<synchronous>, transform_indices = @transform_0, window_bounds = array<i64: 2, 128>}, {pipeline_mode = #tpu.pipeline_mode<synchronous>, transform_indices = @transform_1, window_bounds = array<i64: 128, 1024>}, {pipeline_mode = #tpu.pipeline_mode<synchronous>, transform_indices = @transform_2, window_bounds = array<i64: 1, 1024>}, {pipeline_mode = #tpu.pipeline_mode<synchronous>, transform_indices = @transform_3, window_bounds = array<i64: 1024, 512>}, {pipeline_mode = #tpu.pipeline_mode<synchronous>, transform_indices = @transform_4, window_bounds = array<i64: 1, 512>}, {pipeline_mode = #tpu.pipeline_mode<synchronous>, transform_indices = @transform_5, window_bounds = array<i64: 512, 256>}, {pipeline_mode = #tpu.pipeline_mode<synchronous>, transform_indices = @transform_6, window_bounds = array<i64: 256, 512>}, {pipeline_mode = #tpu.pipeline_mode<synchronous>, transform_indices = @transform_7, window_bounds = array<i64: 1, 512>}, {pipeline_mode = #tpu.pipeline_mode<synchronous>, transform_indices = @transform_8, window_bounds = array<i64: 512, 256>}, {pipeline_mode = #tpu.pipeline_mode<synchronous>, transform_indices = @transform_9, window_bounds = array<i64: 1, 256>}, {pipeline_mode = #tpu.pipeline_mode<synchronous>, transform_indices = @transform_10, window_bounds = array<i64: 256, 1>}, {pipeline_mode = #tpu.pipeline_mode<synchronous>, transform_indices = @transform_11, window_bounds = array<i64: 1, 1>}, {pipeline_mode = #tpu.pipeline_mode<synchronous>, transform_indices = @transform_12, window_bounds = array<i64: 2, 1>}]} {
    %c0 = arith.constant 0 : index
    %c0_0 = arith.constant 0 : index
    %0 = vector.load %arg1[%c0, %c0_0] : memref<2x128xf32, #tpu.memory_space<vmem>>, vector<2x128xf32>
    %c0_1 = arith.constant 0 : index
    %c0_2 = arith.constant 0 : index
    %1 = vector.load %arg2[%c0_1, %c0_2] : memref<128x1024xf32, #tpu.memory_space<vmem>>, vector<128x1024xf32>
    %cst = arith.constant dense<0.000000e+00> : vector<2x1024xf32>
    %2 = tpu.matmul %0, %1, %cst {dimension_numbers = #tpu.dot_dimension_numbers<[1], [0], [0], [1], [0, 0, 1, 1], [], []>} : vector<2x128xf32>, vector<128x1024xf32>, vector<2x1024xf32> -> vector<2x1024xf32>
    %c0_3 = arith.constant 0 : index
    %c0_4 = arith.constant 0 : index
    %3 = vector.load %arg3[%c0_3, %c0_4] : memref<1x1024xf32, #tpu.memory_space<vmem>>, vector<1x1024xf32>
    %4 = vector.broadcast %3 : vector<1x1024xf32> to vector<2x1024xf32>
    %5 = arith.addf %2, %4 : vector<2x1024xf32>
    %cst_5 = arith.constant 0.000000e+00 : f32
    %6 = vector.broadcast %cst_5 : f32 to vector<2x1024xf32>
    %7 = arith.maximumf %5, %6 : vector<2x1024xf32>
    %c0_6 = arith.constant 0 : index
    %c0_7 = arith.constant 0 : index
    %8 = vector.load %arg4[%c0_6, %c0_7] : memref<1024x512xf32, #tpu.memory_space<vmem>>, vector<1024x512xf32>
    %cst_8 = arith.constant dense<0.000000e+00> : vector<2x512xf32>
    %9 = tpu.matmul %7, %8, %cst_8 {dimension_numbers = #tpu.dot_dimension_numbers<[1], [0], [0], [1], [0, 0, 1, 1], [], []>} : vector<2x1024xf32>, vector<1024x512xf32>, vector<2x512xf32> -> vector<2x512xf32>
    %c0_9 = arith.constant 0 : index
    %c0_10 = arith.constant 0 : index
    %10 = vector.load %arg5[%c0_9, %c0_10] : memref<1x512xf32, #tpu.memory_space<vmem>>, vector<1x512xf32>
    %11 = vector.broadcast %10 : vector<1x512xf32> to vector<2x512xf32>
    %12 = arith.addf %9, %11 : vector<2x512xf32>
    %cst_11 = arith.constant 0.000000e+00 : f32
    %13 = vector.broadcast %cst_11 : f32 to vector<2x512xf32>
    %14 = arith.maximumf %12, %13 : vector<2x512xf32>
    %c0_12 = arith.constant 0 : index
    %c0_13 = arith.constant 0 : index
    %15 = vector.load %arg6[%c0_12, %c0_13] : memref<512x256xf32, #tpu.memory_space<vmem>>, vector<512x256xf32>
    %cst_14 = arith.constant dense<0.000000e+00> : vector<2x256xf32>
    %16 = tpu.matmul %14, %15, %cst_14 {dimension_numbers = #tpu.dot_dimension_numbers<[1], [0], [0], [1], [0, 0, 1, 1], [], []>} : vector<2x512xf32>, vector<512x256xf32>, vector<2x256xf32> -> vector<2x256xf32>
    %c0_15 = arith.constant 0 : index
    %c0_16 = arith.constant 0 : index
    %17 = vector.load %arg7[%c0_15, %c0_16] : memref<256x512xf32, #tpu.memory_space<vmem>>, vector<256x512xf32>
    %cst_17 = arith.constant dense<0.000000e+00> : vector<2x512xf32>
    %18 = tpu.matmul %16, %17, %cst_17 {dimension_numbers = #tpu.dot_dimension_numbers<[1], [0], [0], [1], [0, 0, 1, 1], [], []>} : vector<2x256xf32>, vector<256x512xf32>, vector<2x512xf32> -> vector<2x512xf32>
    %c0_18 = arith.constant 0 : index
    %c0_19 = arith.constant 0 : index
    %19 = vector.load %arg8[%c0_18, %c0_19] : memref<1x512xf32, #tpu.memory_space<vmem>>, vector<1x512xf32>
    %20 = vector.broadcast %19 : vector<1x512xf32> to vector<2x512xf32>
    %21 = arith.addf %18, %20 : vector<2x512xf32>
    %cst_20 = arith.constant 0.000000e+00 : f32
    %22 = vector.broadcast %cst_20 : f32 to vector<2x512xf32>
    %23 = arith.maximumf %21, %22 : vector<2x512xf32>
    %c0_21 = arith.constant 0 : index
    %c0_22 = arith.constant 0 : index
    %24 = vector.load %arg9[%c0_21, %c0_22] : memref<512x256xf32, #tpu.memory_space<vmem>>, vector<512x256xf32>
    %cst_23 = arith.constant dense<0.000000e+00> : vector<2x256xf32>
    %25 = tpu.matmul %23, %24, %cst_23 {dimension_numbers = #tpu.dot_dimension_numbers<[1], [0], [0], [1], [0, 0, 1, 1], [], []>} : vector<2x512xf32>, vector<512x256xf32>, vector<2x256xf32> -> vector<2x256xf32>
    %c0_24 = arith.constant 0 : index
    %c0_25 = arith.constant 0 : index
    %26 = vector.load %arg10[%c0_24, %c0_25] : memref<1x256xf32, #tpu.memory_space<vmem>>, vector<1x256xf32>
    %27 = vector.broadcast %26 : vector<1x256xf32> to vector<2x256xf32>
    %28 = arith.addf %25, %27 : vector<2x256xf32>
    %cst_26 = arith.constant 0.000000e+00 : f32
    %29 = vector.broadcast %cst_26 : f32 to vector<2x256xf32>
    %30 = arith.maximumf %28, %29 : vector<2x256xf32>
    %31 = arith.addf %16, %30 : vector<2x256xf32>
    %c0_27 = arith.constant 0 : index
    %c0_28 = arith.constant 0 : index
    %32 = vector.load %arg7[%c0_27, %c0_28] : memref<256x512xf32, #tpu.memory_space<vmem>>, vector<256x512xf32>
    %cst_29 = arith.constant dense<0.000000e+00> : vector<2x512xf32>
    %33 = tpu.matmul %31, %32, %cst_29 {dimension_numbers = #tpu.dot_dimension_numbers<[1], [0], [0], [1], [0, 0, 1, 1], [], []>} : vector<2x256xf32>, vector<256x512xf32>, vector<2x512xf32> -> vector<2x512xf32>
    %c0_30 = arith.constant 0 : index
    %c0_31 = arith.constant 0 : index
    %34 = vector.load %arg8[%c0_30, %c0_31] : memref<1x512xf32, #tpu.memory_space<vmem>>, vector<1x512xf32>
    %35 = vector.broadcast %34 : vector<1x512xf32> to vector<2x512xf32>
    %36 = arith.addf %33, %35 : vector<2x512xf32>
    %cst_32 = arith.constant 0.000000e+00 : f32
    %37 = vector.broadcast %cst_32 : f32 to vector<2x512xf32>
    %38 = arith.maximumf %36, %37 : vector<2x512xf32>
    %c0_33 = arith.constant 0 : index
    %c0_34 = arith.constant 0 : index
    %39 = vector.load %arg9[%c0_33, %c0_34] : memref<512x256xf32, #tpu.memory_space<vmem>>, vector<512x256xf32>
    %cst_35 = arith.constant dense<0.000000e+00> : vector<2x256xf32>
    %40 = tpu.matmul %38, %39, %cst_35 {dimension_numbers = #tpu.dot_dimension_numbers<[1], [0], [0], [1], [0, 0, 1, 1], [], []>} : vector<2x512xf32>, vector<512x256xf32>, vector<2x256xf32> -> vector<2x256xf32>
    %c0_36 = arith.constant 0 : index
    %c0_37 = arith.constant 0 : index
    %41 = vector.load %arg10[%c0_36, %c0_37] : memref<1x256xf32, #tpu.memory_space<vmem>>, vector<1x256xf32>
    %42 = vector.broadcast %41 : vector<1x256xf32> to vector<2x256xf32>
    %43 = arith.addf %40, %42 : vector<2x256xf32>
    %cst_38 = arith.constant 0.000000e+00 : f32
    %44 = vector.broadcast %cst_38 : f32 to vector<2x256xf32>
    %45 = arith.maximumf %43, %44 : vector<2x256xf32>
    %46 = arith.addf %31, %45 : vector<2x256xf32>
    %c0_39 = arith.constant 0 : index
    %c0_40 = arith.constant 0 : index
    %47 = vector.load %arg7[%c0_39, %c0_40] : memref<256x512xf32, #tpu.memory_space<vmem>>, vector<256x512xf32>
    %cst_41 = arith.constant dense<0.000000e+00> : vector<2x512xf32>
    %48 = tpu.matmul %46, %47, %cst_41 {dimension_numbers = #tpu.dot_dimension_numbers<[1], [0], [0], [1], [0, 0, 1, 1], [], []>} : vector<2x256xf32>, vector<256x512xf32>, vector<2x512xf32> -> vector<2x512xf32>
    %c0_42 = arith.constant 0 : index
    %c0_43 = arith.constant 0 : index
    %49 = vector.load %arg8[%c0_42, %c0_43] : memref<1x512xf32, #tpu.memory_space<vmem>>, vector<1x512xf32>
    %50 = vector.broadcast %49 : vector<1x512xf32> to vector<2x512xf32>
    %51 = arith.addf %48, %50 : vector<2x512xf32>
    %cst_44 = arith.constant 0.000000e+00 : f32
    %52 = vector.broadcast %cst_44 : f32 to vector<2x512xf32>
    %53 = arith.maximumf %51, %52 : vector<2x512xf32>
    %c0_45 = arith.constant 0 : index
    %c0_46 = arith.constant 0 : index
    %54 = vector.load %arg9[%c0_45, %c0_46] : memref<512x256xf32, #tpu.memory_space<vmem>>, vector<512x256xf32>
    %cst_47 = arith.constant dense<0.000000e+00> : vector<2x256xf32>
    %55 = tpu.matmul %53, %54, %cst_47 {dimension_numbers = #tpu.dot_dimension_numbers<[1], [0], [0], [1], [0, 0, 1, 1], [], []>} : vector<2x512xf32>, vector<512x256xf32>, vector<2x256xf32> -> vector<2x256xf32>
    %c0_48 = arith.constant 0 : index
    %c0_49 = arith.constant 0 : index
    %56 = vector.load %arg10[%c0_48, %c0_49] : memref<1x256xf32, #tpu.memory_space<vmem>>, vector<1x256xf32>
    %57 = vector.broadcast %56 : vector<1x256xf32> to vector<2x256xf32>
    %58 = arith.addf %55, %57 : vector<2x256xf32>
    %cst_50 = arith.constant 0.000000e+00 : f32
    %59 = vector.broadcast %cst_50 : f32 to vector<2x256xf32>
    %60 = arith.maximumf %58, %59 : vector<2x256xf32>
    %61 = arith.addf %46, %60 : vector<2x256xf32>
    %c0_51 = arith.constant 0 : index
    %c0_52 = arith.constant 0 : index
    %62 = vector.load %arg7[%c0_51, %c0_52] : memref<256x512xf32, #tpu.memory_space<vmem>>, vector<256x512xf32>
    %cst_53 = arith.constant dense<0.000000e+00> : vector<2x512xf32>
    %63 = tpu.matmul %61, %62, %cst_53 {dimension_numbers = #tpu.dot_dimension_numbers<[1], [0], [0], [1], [0, 0, 1, 1], [], []>} : vector<2x256xf32>, vector<256x512xf32>, vector<2x512xf32> -> vector<2x512xf32>
    %c0_54 = arith.constant 0 : index
    %c0_55 = arith.constant 0 : index
    %64 = vector.load %arg8[%c0_54, %c0_55] : memref<1x512xf32, #tpu.memory_space<vmem>>, vector<1x512xf32>
    %65 = vector.broadcast %64 : vector<1x512xf32> to vector<2x512xf32>
    %66 = arith.addf %63, %65 : vector<2x512xf32>
    %cst_56 = arith.constant 0.000000e+00 : f32
    %67 = vector.broadcast %cst_56 : f32 to vector<2x512xf32>
    %68 = arith.maximumf %66, %67 : vector<2x512xf32>
    %c0_57 = arith.constant 0 : index
    %c0_58 = arith.constant 0 : index
    %69 = vector.load %arg9[%c0_57, %c0_58] : memref<512x256xf32, #tpu.memory_space<vmem>>, vector<512x256xf32>
    %cst_59 = arith.constant dense<0.000000e+00> : vector<2x256xf32>
    %70 = tpu.matmul %68, %69, %cst_59 {dimension_numbers = #tpu.dot_dimension_numbers<[1], [0], [0], [1], [0, 0, 1, 1], [], []>} : vector<2x512xf32>, vector<512x256xf32>, vector<2x256xf32> -> vector<2x256xf32>
    %c0_60 = arith.constant 0 : index
    %c0_61 = arith.constant 0 : index
    %71 = vector.load %arg10[%c0_60, %c0_61] : memref<1x256xf32, #tpu.memory_space<vmem>>, vector<1x256xf32>
    %72 = vector.broadcast %71 : vector<1x256xf32> to vector<2x256xf32>
    %73 = arith.addf %70, %72 : vector<2x256xf32>
    %cst_62 = arith.constant 0.000000e+00 : f32
    %74 = vector.broadcast %cst_62 : f32 to vector<2x256xf32>
    %75 = arith.maximumf %73, %74 : vector<2x256xf32>
    %76 = arith.addf %61, %75 : vector<2x256xf32>
    %c0_63 = arith.constant 0 : index
    %c0_64 = arith.constant 0 : index
    %77 = vector.load %arg7[%c0_63, %c0_64] : memref<256x512xf32, #tpu.memory_space<vmem>>, vector<256x512xf32>
    %cst_65 = arith.constant dense<0.000000e+00> : vector<2x512xf32>
    %78 = tpu.matmul %76, %77, %cst_65 {dimension_numbers = #tpu.dot_dimension_numbers<[1], [0], [0], [1], [0, 0, 1, 1], [], []>} : vector<2x256xf32>, vector<256x512xf32>, vector<2x512xf32> -> vector<2x512xf32>
    %c0_66 = arith.constant 0 : index
    %c0_67 = arith.constant 0 : index
    %79 = vector.load %arg8[%c0_66, %c0_67] : memref<1x512xf32, #tpu.memory_space<vmem>>, vector<1x512xf32>
    %80 = vector.broadcast %79 : vector<1x512xf32> to vector<2x512xf32>
    %81 = arith.addf %78, %80 : vector<2x512xf32>
    %cst_68 = arith.constant 0.000000e+00 : f32
    %82 = vector.broadcast %cst_68 : f32 to vector<2x512xf32>
    %83 = arith.maximumf %81, %82 : vector<2x512xf32>
    %c0_69 = arith.constant 0 : index
    %c0_70 = arith.constant 0 : index
    %84 = vector.load %arg9[%c0_69, %c0_70] : memref<512x256xf32, #tpu.memory_space<vmem>>, vector<512x256xf32>
    %cst_71 = arith.constant dense<0.000000e+00> : vector<2x256xf32>
    %85 = tpu.matmul %83, %84, %cst_71 {dimension_numbers = #tpu.dot_dimension_numbers<[1], [0], [0], [1], [0, 0, 1, 1], [], []>} : vector<2x512xf32>, vector<512x256xf32>, vector<2x256xf32> -> vector<2x256xf32>
    %c0_72 = arith.constant 0 : index
    %c0_73 = arith.constant 0 : index
    %86 = vector.load %arg10[%c0_72, %c0_73] : memref<1x256xf32, #tpu.memory_space<vmem>>, vector<1x256xf32>
    %87 = vector.broadcast %86 : vector<1x256xf32> to vector<2x256xf32>
    %88 = arith.addf %85, %87 : vector<2x256xf32>
    %cst_74 = arith.constant 0.000000e+00 : f32
    %89 = vector.broadcast %cst_74 : f32 to vector<2x256xf32>
    %90 = arith.maximumf %88, %89 : vector<2x256xf32>
    %91 = arith.addf %76, %90 : vector<2x256xf32>
    %c0_75 = arith.constant 0 : index
    %c0_76 = arith.constant 0 : index
    %92 = vector.load %arg7[%c0_75, %c0_76] : memref<256x512xf32, #tpu.memory_space<vmem>>, vector<256x512xf32>
    %cst_77 = arith.constant dense<0.000000e+00> : vector<2x512xf32>
    %93 = tpu.matmul %91, %92, %cst_77 {dimension_numbers = #tpu.dot_dimension_numbers<[1], [0], [0], [1], [0, 0, 1, 1], [], []>} : vector<2x256xf32>, vector<256x512xf32>, vector<2x512xf32> -> vector<2x512xf32>
    %c0_78 = arith.constant 0 : index
    %c0_79 = arith.constant 0 : index
    %94 = vector.load %arg8[%c0_78, %c0_79] : memref<1x512xf32, #tpu.memory_space<vmem>>, vector<1x512xf32>
    %95 = vector.broadcast %94 : vector<1x512xf32> to vector<2x512xf32>
    %96 = arith.addf %93, %95 : vector<2x512xf32>
    %cst_80 = arith.constant 0.000000e+00 : f32
    %97 = vector.broadcast %cst_80 : f32 to vector<2x512xf32>
    %98 = arith.maximumf %96, %97 : vector<2x512xf32>
    %c0_81 = arith.constant 0 : index
    %c0_82 = arith.constant 0 : index
    %99 = vector.load %arg9[%c0_81, %c0_82] : memref<512x256xf32, #tpu.memory_space<vmem>>, vector<512x256xf32>
    %cst_83 = arith.constant dense<0.000000e+00> : vector<2x256xf32>
    %100 = tpu.matmul %98, %99, %cst_83 {dimension_numbers = #tpu.dot_dimension_numbers<[1], [0], [0], [1], [0, 0, 1, 1], [], []>} : vector<2x512xf32>, vector<512x256xf32>, vector<2x256xf32> -> vector<2x256xf32>
    %c0_84 = arith.constant 0 : index
    %c0_85 = arith.constant 0 : index
    %101 = vector.load %arg10[%c0_84, %c0_85] : memref<1x256xf32, #tpu.memory_space<vmem>>, vector<1x256xf32>
    %102 = vector.broadcast %101 : vector<1x256xf32> to vector<2x256xf32>
    %103 = arith.addf %100, %102 : vector<2x256xf32>
    %cst_86 = arith.constant 0.000000e+00 : f32
    %104 = vector.broadcast %cst_86 : f32 to vector<2x256xf32>
    %105 = arith.maximumf %103, %104 : vector<2x256xf32>
    %106 = arith.addf %91, %105 : vector<2x256xf32>
    %c0_87 = arith.constant 0 : index
    %c0_88 = arith.constant 0 : index
    %107 = vector.load %arg7[%c0_87, %c0_88] : memref<256x512xf32, #tpu.memory_space<vmem>>, vector<256x512xf32>
    %cst_89 = arith.constant dense<0.000000e+00> : vector<2x512xf32>
    %108 = tpu.matmul %106, %107, %cst_89 {dimension_numbers = #tpu.dot_dimension_numbers<[1], [0], [0], [1], [0, 0, 1, 1], [], []>} : vector<2x256xf32>, vector<256x512xf32>, vector<2x512xf32> -> vector<2x512xf32>
    %c0_90 = arith.constant 0 : index
    %c0_91 = arith.constant 0 : index
    %109 = vector.load %arg8[%c0_90, %c0_91] : memref<1x512xf32, #tpu.memory_space<vmem>>, vector<1x512xf32>
    %110 = vector.broadcast %109 : vector<1x512xf32> to vector<2x512xf32>
    %111 = arith.addf %108, %110 : vector<2x512xf32>
    %cst_92 = arith.constant 0.000000e+00 : f32
    %112 = vector.broadcast %cst_92 : f32 to vector<2x512xf32>
    %113 = arith.maximumf %111, %112 : vector<2x512xf32>
    %c0_93 = arith.constant 0 : index
    %c0_94 = arith.constant 0 : index
    %114 = vector.load %arg9[%c0_93, %c0_94] : memref<512x256xf32, #tpu.memory_space<vmem>>, vector<512x256xf32>
    %cst_95 = arith.constant dense<0.000000e+00> : vector<2x256xf32>
    %115 = tpu.matmul %113, %114, %cst_95 {dimension_numbers = #tpu.dot_dimension_numbers<[1], [0], [0], [1], [0, 0, 1, 1], [], []>} : vector<2x512xf32>, vector<512x256xf32>, vector<2x256xf32> -> vector<2x256xf32>
    %c0_96 = arith.constant 0 : index
    %c0_97 = arith.constant 0 : index
    %116 = vector.load %arg10[%c0_96, %c0_97] : memref<1x256xf32, #tpu.memory_space<vmem>>, vector<1x256xf32>
    %117 = vector.broadcast %116 : vector<1x256xf32> to vector<2x256xf32>
    %118 = arith.addf %115, %117 : vector<2x256xf32>
    %cst_98 = arith.constant 0.000000e+00 : f32
    %119 = vector.broadcast %cst_98 : f32 to vector<2x256xf32>
    %120 = arith.maximumf %118, %119 : vector<2x256xf32>
    %121 = arith.addf %106, %120 : vector<2x256xf32>
    %c0_99 = arith.constant 0 : index
    %c0_100 = arith.constant 0 : index
    %122 = vector.load %arg7[%c0_99, %c0_100] : memref<256x512xf32, #tpu.memory_space<vmem>>, vector<256x512xf32>
    %cst_101 = arith.constant dense<0.000000e+00> : vector<2x512xf32>
    %123 = tpu.matmul %121, %122, %cst_101 {dimension_numbers = #tpu.dot_dimension_numbers<[1], [0], [0], [1], [0, 0, 1, 1], [], []>} : vector<2x256xf32>, vector<256x512xf32>, vector<2x512xf32> -> vector<2x512xf32>
    %c0_102 = arith.constant 0 : index
    %c0_103 = arith.constant 0 : index
    %124 = vector.load %arg8[%c0_102, %c0_103] : memref<1x512xf32, #tpu.memory_space<vmem>>, vector<1x512xf32>
    %125 = vector.broadcast %124 : vector<1x512xf32> to vector<2x512xf32>
    %126 = arith.addf %123, %125 : vector<2x512xf32>
    %cst_104 = arith.constant 0.000000e+00 : f32
    %127 = vector.broadcast %cst_104 : f32 to vector<2x512xf32>
    %128 = arith.maximumf %126, %127 : vector<2x512xf32>
    %c0_105 = arith.constant 0 : index
    %c0_106 = arith.constant 0 : index
    %129 = vector.load %arg9[%c0_105, %c0_106] : memref<512x256xf32, #tpu.memory_space<vmem>>, vector<512x256xf32>
    %cst_107 = arith.constant dense<0.000000e+00> : vector<2x256xf32>
    %130 = tpu.matmul %128, %129, %cst_107 {dimension_numbers = #tpu.dot_dimension_numbers<[1], [0], [0], [1], [0, 0, 1, 1], [], []>} : vector<2x512xf32>, vector<512x256xf32>, vector<2x256xf32> -> vector<2x256xf32>
    %c0_108 = arith.constant 0 : index
    %c0_109 = arith.constant 0 : index
    %131 = vector.load %arg10[%c0_108, %c0_109] : memref<1x256xf32, #tpu.memory_space<vmem>>, vector<1x256xf32>
    %132 = vector.broadcast %131 : vector<1x256xf32> to vector<2x256xf32>
    %133 = arith.addf %130, %132 : vector<2x256xf32>
    %cst_110 = arith.constant 0.000000e+00 : f32
    %134 = vector.broadcast %cst_110 : f32 to vector<2x256xf32>
    %135 = arith.maximumf %133, %134 : vector<2x256xf32>
    %136 = arith.addf %121, %135 : vector<2x256xf32>
    %c0_111 = arith.constant 0 : index
    %c0_112 = arith.constant 0 : index
    %137 = vector.load %arg11[%c0_111, %c0_112] : memref<256x1xf32, #tpu.memory_space<vmem>>, vector<256x1xf32>
    %cst_113 = arith.constant dense<0.000000e+00> : vector<2x1xf32>
    %138 = tpu.matmul %136, %137, %cst_113 {dimension_numbers = #tpu.dot_dimension_numbers<[1], [0], [0], [1], [0, 0, 1, 1], [], []>} : vector<2x256xf32>, vector<256x1xf32>, vector<2x1xf32> -> vector<2x1xf32>
    %c0_114 = arith.constant 0 : index
    %c0_115 = arith.constant 0 : index
    %139 = vector.load %arg12[%c0_114, %c0_115] : memref<1x1xf32, #tpu.memory_space<vmem>>, vector<1x1xf32>
    %140 = vector.broadcast %139 : vector<1x1xf32> to vector<2x1xf32>
    %141 = arith.addf %138, %140 : vector<2x1xf32>
    %c0_116 = arith.constant 0 : index
    %c0_117 = arith.constant 0 : index
    %142 = vector.load %arg13[%c0_116, %c0_117] : memref<2x1xf32, #tpu.memory_space<vmem>>, vector<2x1xf32>
    tpu.vector_store %arg13[%c0_116, %c0_117], %141 {strides = array<i32>} : memref<2x1xf32, #tpu.memory_space<vmem>>, vector<2x1xf32>,
    return
  }
  func.func @transform_0(%arg0: i32) -> (i32, i32) {
    %c0_i32 = arith.constant 0 : i32
    %c0_i32_0 = arith.constant 0 : i32
    %c0_i32_1 = arith.constant 0 : i32
    return %c0_i32, %c0_i32_0 : i32, i32
  }
  func.func @transform_1(%arg0: i32) -> (i32, i32) {
    %c0_i32 = arith.constant 0 : i32
    %c0_i32_0 = arith.constant 0 : i32
    %c0_i32_1 = arith.constant 0 : i32
    return %c0_i32, %c0_i32_0 : i32, i32
  }
  func.func @transform_2(%arg0: i32) -> (i32, i32) {
    %c0_i32 = arith.constant 0 : i32
    %c0_i32_0 = arith.constant 0 : i32
    %c0_i32_1 = arith.constant 0 : i32
    return %c0_i32, %c0_i32_0 : i32, i32
  }
  func.func @transform_3(%arg0: i32) -> (i32, i32) {
    %c0_i32 = arith.constant 0 : i32
    %c0_i32_0 = arith.constant 0 : i32
    %c0_i32_1 = arith.constant 0 : i32
    return %c0_i32, %c0_i32_0 : i32, i32
  }
  func.func @transform_4(%arg0: i32) -> (i32, i32) {
    %c0_i32 = arith.constant 0 : i32
    %c0_i32_0 = arith.constant 0 : i32
    %c0_i32_1 = arith.constant 0 : i32
    return %c0_i32, %c0_i32_0 : i32, i32
  }
  func.func @transform_5(%arg0: i32) -> (i32, i32) {
    %c0_i32 = arith.constant 0 : i32
    %c0_i32_0 = arith.constant 0 : i32
    %c0_i32_1 = arith.constant 0 : i32
    return %c0_i32, %c0_i32_0 : i32, i32
  }
  func.func @transform_6(%arg0: i32) -> (i32, i32) {
    %c0_i32 = arith.constant 0 : i32
    %c0_i32_0 = arith.constant 0 : i32
    %c0_i32_1 = arith.constant 0 : i32
    return %c0_i32, %c0_i32_0 : i32, i32
  }
  func.func @transform_7(%arg0: i32) -> (i32, i32) {
    %c0_i32 = arith.constant 0 : i32
    %c0_i32_0 = arith.constant 0 : i32
    %c0_i32_1 = arith.constant 0 : i32
    return %c0_i32, %c0_i32_0 : i32, i32
  }
  func.func @transform_8(%arg0: i32) -> (i32, i32) {
    %c0_i32 = arith.constant 0 : i32
    %c0_i32_0 = arith.constant 0 : i32
    %c0_i32_1 = arith.constant 0 : i32
    return %c0_i32, %c0_i32_0 : i32, i32
  }
  func.func @transform_9(%arg0: i32) -> (i32, i32) {
    %c0_i32 = arith.constant 0 : i32
    %c0_i32_0 = arith.constant 0 : i32
    %c0_i32_1 = arith.constant 0 : i32
    return %c0_i32, %c0_i32_0 : i32, i32
  }
  func.func @transform_10(%arg0: i32) -> (i32, i32) {
    %c0_i32 = arith.constant 0 : i32
    %c0_i32_0 = arith.constant 0 : i32
    %c0_i32_1 = arith.constant 0 : i32
    return %c0_i32, %c0_i32_0 : i32, i32
  }
  func.func @transform_11(%arg0: i32) -> (i32, i32) {
    %c0_i32 = arith.constant 0 : i32
    %c0_i32_0 = arith.constant 0 : i32
    %c0_i32_1 = arith.constant 0 : i32
    return %c0_i32, %c0_i32_0 : i32, i32
  }
  func.func @transform_12(%arg0: i32) -> (i32, i32) {
    %c0_i32 = arith.constant 0 : i32
    %c0_i32_0 = arith.constant 0 : i32
    %c0_i32_1 = arith.constant 0 : i32
    return %c0_i32, %c0_i32_0 : i32, i32
  }
}

</mosaic_0001>

<llo_original>
// kernel: kanres_forward.1
$region0: #{kanres_forward.1}
  #allocation0 [shape = 'u32[]', space=smem, size = 0x4, offset = 0x4, fixed_abs, tag = 'smem constant byte address 0x4 - core index']
  #allocation1 [shape = 'u32[144,128]{1,0:T(1,128)}', space=vmem, size = 0x12000, scoped, tag = 'internal scratch']
  #allocation2 [shape = 'f32[1,1]{1,0:T(1,128)S(1)}', space=vmem, size = 0x200, scoped, tag = 'scoped memory for kanres_forward.1']
  %s0 = inlined_call_operand.vmem [shape: f32[2,128], index: 0, kind: input, shape index: {}]
  %s1 = inlined_call_operand.hbm [shape: f32[128,1024], index: 1, kind: input, shape index: {}]
  %s2 = inlined_call_operand.hbm [shape: f32[1,1024], index: 2, kind: input, shape index: {}]
  %s3 = inlined_call_operand.hbm [shape: f32[1024,512], index: 3, kind: input, shape index: {}]
  %s4 = inlined_call_operand.hbm [shape: f32[1,512], index: 4, kind: input, shape index: {}]
  %s5 = inlined_call_operand.hbm [shape: f32[512,256], index: 5, kind: input, shape index: {}]
  %s6 = inlined_call_operand.hbm [shape: f32[256,512], index: 6, kind: input, shape index: {}]
  %s7 = inlined_call_operand.hbm [shape: f32[1,512], index: 7, kind: input, shape index: {}]
  %s8 = inlined_call_operand.hbm [shape: f32[512,256], index: 8, kind: input, shape index: {}]
  %s9 = inlined_call_operand.hbm [shape: f32[1,256], index: 9, kind: input, shape index: {}]
  %s10 = inlined_call_operand.vmem [shape: f32[256,1], index: 10, kind: input, shape index: {}]
  %s11 = inlined_call_operand.<no memory space> [shape: f32[1,1], index: 11, kind: input, shape index: {}]
  %s12 = inlined_call_operand.vmem [shape: f32[2,1], index: 12, kind: output, shape index: {}]
  %s13 = sld [smem:[#allocation0]]
  $region94: #{kanres_forward.1} parent=0
    _
  %s15 = ssub.s32 1, %s13
  %s16 = scalar_select 0, %s15, %s13
  %v17 = vstv %s11
  %18 = vst [vmem:[#allocation2] sm:$0x1] %v17
  $region1: #{kanres_forward.1} parent=0
    #allocation3 [shape = 'u8[524288]{0}', space=vmem, size = 0x80000, scoped, tag = 'input window, operand 1, single buffered']
    #allocation4 [shape = 's32[1]{0}', space=sflag, size = 0x4, scoped, tag = 'scoped memory for kanres_forward.1']
    #allocation5 [shape = 'u8[4096]{0}', space=vmem, size = 0x1000, scoped, tag = 'input window, operand 2, single buffered']
    #allocation6 [shape = 's32[1]{0}', space=sflag, size = 0x4, scoped, tag = 'scoped memory for kanres_forward.1']
    #allocation7 [shape = 'u8[2097152]{0}', space=vmem, size = 0x200000, scoped, tag = 'input window, operand 3, single buffered']
    #allocation8 [shape = 'u8[2048]{0}', space=vmem, size = 0x800, scoped, tag = 'input window, operand 4, single buffered']
    #allocation9 [shape = 's32[1]{0}', space=sflag, size = 0x4, scoped, tag = 'scoped memory for kanres_forward.1']
    #allocation10 [shape = 'u8[524288]{0}', space=vmem, size = 0x80000, scoped, tag = 'input window, operand 5, single buffered']
    #allocation11 [shape = 'u8[524288]{0}', space=vmem, size = 0x80000, scoped, tag = 'input window, operand 6, single buffered']
    #allocation12 [shape = 's32[1]{0}', space=sflag, size = 0x4, scoped, tag = 'scoped memory for kanres_forward.1']
    #allocation13 [shape = 'u8[2048]{0}', space=vmem, size = 0x800, scoped, tag = 'input window, operand 7, single buffered']
    #allocation14 [shape = 'u8[524288]{0}', space=vmem, size = 0x80000, scoped, tag = 'input window, operand 8, single buffered']
    #allocation15 [shape = 's32[1]{0}', space=sflag, size = 0x4, scoped, tag = 'scoped memory for kanres_forward.1']
    #allocation16 [shape = 'u8[1024]{0}', space=vmem, size = 0x400, scoped, tag = 'input window, operand 9, single buffered']
    %19 = vsyncpa [#allocation4], 0
    %20 = vsyncpa [#allocation6], 0
    %21 = vsyncpa [#allocation9], 0
    %22 = vsyncpa [#allocation12], 0
    %23 = vsyncpa [#allocation15], 0
    // Predicated region
    $region2: #{kanres_forward.1} parent=1 // pred_check
      _
    $region3: #{kanres_forward.1} parent=1 // pred_check_branch
      %25 = sbr.rel (0) target = $region5
    $region4: #{kanres_forward.1} parent=1 // pred_region
      _
    $region5: #{kanres_forward.1} parent=1 // pred_fallthru
      _
    // Predicated region
    $region6: #{kanres_forward.1} parent=1 // pred_check
      _
    $region7: #{kanres_forward.1} parent=1 // pred_check_branch
      %27 = sbr.rel (0) target = $region9
    $region8: #{kanres_forward.1} parent=1 // pred_region
      %s29 = ssub.s32 16384, 16384
      %30 = vsyncadd [#allocation4], %s29
      %s31 = sshll.u32 [#allocation3], 4
      %s32 = int_to_ptr.vmem [resolvable:$true] %s31
      %37 = dma.hbm_to_vmem [thread:$0]  %s1, 16384, %s32, [#allocation4], 1024, 1024, 64
    $region9: #{kanres_forward.1} parent=1 // pred_fallthru
      _
    // Predicated region
    $region10: #{kanres_forward.1} parent=1 // pred_check
      _
    $region11: #{kanres_forward.1} parent=1 // pred_check_branch
      %39 = sbr.rel (0) target = $region13
    $region12: #{kanres_forward.1} parent=1 // pred_region
      %s41 = ssub.s32 128, 128
      %42 = vsyncadd [#allocation6], %s41
      %s44 = sshll.u32 [#allocation5], 4
      %s45 = int_to_ptr.vmem [resolvable:$true] %s44
      %47 = dma.hbm_to_vmem [thread:$0]  %s2, 128, %s45, [#allocation6]
    $region13: #{kanres_forward.1} parent=1 // pred_fallthru
      _
    // Predicated region
    $region14: #{kanres_forward.1} parent=1 // pred_check
      _
    $region15: #{kanres_forward.1} parent=1 // pred_check_branch
      %49 = sbr.rel (0) target = $region17
    $region16: #{kanres_forward.1} parent=1 // pred_region
      %s51 = ssub.s32 65536, 65536
      %52 = vsyncadd [#allocation6], %s51
      %s53 = sshll.u32 [#allocation7], 4
      %s54 = int_to_ptr.vmem [resolvable:$true] %s53
      %59 = dma.hbm_to_vmem [thread:$0]  %s3, 65536, %s54, [#allocation6], 512, 512, 32
    $region17: #{kanres_forward.1} parent=1 // pred_fallthru
      _
    // Predicated region
    $region18: #{kanres_forward.1} parent=1 // pred_check
      _
    $region19: #{kanres_forward.1} parent=1 // pred_check_branch
      %61 = sbr.rel (0) target = $region21
    $region20: #{kanres_forward.1} parent=1 // pred_region
      %s63 = ssub.s32 64, 64
      %64 = vsyncadd [#allocation9], %s63
      %s66 = sshll.u32 [#allocation8], 4
      %s67 = int_to_ptr.vmem [resolvable:$true] %s66
      %69 = dma.hbm_to_vmem [thread:$0]  %s4, 64, %s67, [#allocation9]
    $region21: #{kanres_forward.1} parent=1 // pred_fallthru
      _
    // Predicated region
    $region22: #{kanres_forward.1} parent=1 // pred_check
      _
    $region23: #{kanres_forward.1} parent=1 // pred_check_branch
      %71 = sbr.rel (0) target = $region25
    $region24: #{kanres_forward.1} parent=1 // pred_region
      %s73 = ssub.s32 16384, 16384
      %74 = vsyncadd [#allocation9], %s73
      %s75 = sshll.u32 [#allocation10], 4
      %s76 = int_to_ptr.vmem [resolvable:$true] %s75
      %81 = dma.hbm_to_vmem [thread:$0]  %s5, 16384, %s76, [#allocation9], 256, 256, 16
    $region25: #{kanres_forward.1} parent=1 // pred_fallthru
      _
    // Predicated region
    $region26: #{kanres_forward.1} parent=1 // pred_check
      _
    $region27: #{kanres_forward.1} parent=1 // pred_check_branch
      %83 = sbr.rel (0) target = $region29
    $region28: #{kanres_forward.1} parent=1 // pred_region
      %s85 = ssub.s32 16384, 16384
      %86 = vsyncadd [#allocation12], %s85
      %s87 = sshll.u32 [#allocation11], 4
      %s88 = int_to_ptr.vmem [resolvable:$true] %s87
      %93 = dma.hbm_to_vmem [thread:$0]  %s6, 16384, %s88, [#allocation12], 512, 512, 32
    $region29: #{kanres_forward.1} parent=1 // pred_fallthru
      _
    // Predicated region
    $region30: #{kanres_forward.1} parent=1 // pred_check
      _
    $region31: #{kanres_forward.1} parent=1 // pred_check_branch
      %95 = sbr.rel (0) target = $region33
    $region32: #{kanres_forward.1} parent=1 // pred_region
      %s97 = ssub.s32 64, 64
      %98 = vsyncadd [#allocation12], %s97
      %s100 = sshll.u32 [#allocation13], 4
      %s101 = int_to_ptr.vmem [resolvable:$true] %s100
      %103 = dma.hbm_to_vmem [thread:$0]  %s7, 64, %s101, [#allocation12]
    $region33: #{kanres_forward.1} parent=1 // pred_fallthru
      _
    // Predicated region
    $region34: #{kanres_forward.1} parent=1 // pred_check
      _
    $region35: #{kanres_forward.1} parent=1 // pred_check_branch
      %105 = sbr.rel (0) target = $region37
    $region36: #{kanres_forward.1} parent=1 // pred_region
      %s107 = ssub.s32 16384, 16384
      %108 = vsyncadd [#allocation15], %s107
      %s109 = sshll.u32 [#allocation14], 4
      %s110 = int_to_ptr.vmem [resolvable:$true] %s109
      %115 = dma.hbm_to_vmem [thread:$0]  %s8, 16384, %s110, [#allocation15], 256, 256, 16
    $region37: #{kanres_forward.1} parent=1 // pred_fallthru
      _
    // Predicated region
    $region38: #{kanres_forward.1} parent=1 // pred_check
      _
    $region39: #{kanres_forward.1} parent=1 // pred_check_branch
      %117 = sbr.rel (0) target = $region41
    $region40: #{kanres_forward.1} parent=1 // pred_region
      %s119 = ssub.s32 32, 32
      %120 = vsyncadd [#allocation15], %s119
      %s122 = sshll.u32 [#allocation16], 4
      %s123 = int_to_ptr.vmem [resolvable:$true] %s122
      %125 = dma.hbm_to_vmem [thread:$0]  %s9, 32, %s123, [#allocation15]
    $region41: #{kanres_forward.1} parent=1 // pred_fallthru
      _
    // Predicated region
    $region42: #{kanres_forward.1} parent=1 // pred_check
      _
    $region43: #{kanres_forward.1} parent=1 // pred_check_branch
      %127 = sbr.rel (0) target = $region45
    $region44: #{kanres_forward.1} parent=1 // pred_region
      _
    $region45: #{kanres_forward.1} parent=1 // pred_fallthru
      _
    // Predicated region
    $region46: #{kanres_forward.1} parent=1 // pred_check
      _
    $region47: #{kanres_forward.1} parent=1 // pred_check_branch
      %129 = sbr.rel (0) target = $region49
    $region48: #{kanres_forward.1} parent=1 // pred_region
      _
    $region49: #{kanres_forward.1} parent=1 // pred_fallthru
      _
    // Predicated region
    $region50: #{kanres_forward.1} parent=1 // pred_check
      _
    $region51: #{kanres_forward.1} parent=1 // pred_check_branch
      %131 = sbr.rel (0) target = $region53
    $region52: #{kanres_forward.1} parent=1 // pred_region
      %132 = dma.done [#allocation4], 16384
    $region53: #{kanres_forward.1} parent=1 // pred_fallthru
      _
    // Predicated region
    $region54: #{kanres_forward.1} parent=1 // pred_check
      _
    $region55: #{kanres_forward.1} parent=1 // pred_check_branch
      %134 = sbr.rel (0) target = $region57
    $region56: #{kanres_forward.1} parent=1 // pred_region
      %135 = dma.done [#allocation6], 128
    $region57: #{kanres_forward.1} parent=1 // pred_fallthru
      _
    // Predicated region
    $region58: #{kanres_forward.1} parent=1 // pred_check
      _
    $region59: #{kanres_forward.1} parent=1 // pred_check_branch
      %137 = sbr.rel (0) target = $region61
    $region60: #{kanres_forward.1} parent=1 // pred_region
      %138 = dma.done [#allocation6], 65536
    $region61: #{kanres_forward.1} parent=1 // pred_fallthru
      _
    // Predicated region
    $region62: #{kanres_forward.1} parent=1 // pred_check
      _
    $region63: #{kanres_forward.1} parent=1 // pred_check_branch
      %140 = sbr.rel (0) target = $region65
    $region64: #{kanres_forward.1} parent=1 // pred_region
      %141 = dma.done [#allocation9], 64
    $region65: #{kanres_forward.1} parent=1 // pred_fallthru
      _
    // Predicated region
    $region66: #{kanres_forward.1} parent=1 // pred_check
      _
    $region67: #{kanres_forward.1} parent=1 // pred_check_branch
      %143 = sbr.rel (0) target = $region69
    $region68: #{kanres_forward.1} parent=1 // pred_region
      %144 = dma.done [#allocation9], 16384
    $region69: #{kanres_forward.1} parent=1 // pred_fallthru
      _
    // Predicated region
    $region70: #{kanres_forward.1} parent=1 // pred_check
      _
    $region71: #{kanres_forward.1} parent=1 // pred_check_branch
      %146 = sbr.rel (0) target = $region73
    $region72: #{kanres_forward.1} parent=1 // pred_region
      %147 = dma.done [#allocation12], 16384
    $region73: #{kanres_forward.1} parent=1 // pred_fallthru
      _
    // Predicated region
    $region74: #{kanres_forward.1} parent=1 // pred_check
      _
    $region75: #{kanres_forward.1} parent=1 // pred_check_branch
      %149 = sbr.rel (0) target = $region77
    $region76: #{kanres_forward.1} parent=1 // pred_region
      %150 = dma.done [#allocation12], 64
    $region77: #{kanres_forward.1} parent=1 // pred_fallthru
      _
    // Predicated region
    $region78: #{kanres_forward.1} parent=1 // pred_check
      _
    $region79: #{kanres_forward.1} parent=1 // pred_check_branch
      %152 = sbr.rel (0) target = $region81
    $region80: #{kanres_forward.1} parent=1 // pred_region
      %153 = dma.done [#allocation15], 16384
    $region81: #{kanres_forward.1} parent=1 // pred_fallthru
      _
    // Predicated region
    $region82: #{kanres_forward.1} parent=1 // pred_check
      _
    $region83: #{kanres_forward.1} parent=1 // pred_check_branch
      %155 = sbr.rel (0) target = $region85
    $region84: #{kanres_forward.1} parent=1 // pred_region
      %156 = dma.done [#allocation15], 32
    $region85: #{kanres_forward.1} parent=1 // pred_fallthru
      _
    %v157 = vld [vmem:[%s0] sm:$0x3]
    %v158 = vld [vmem:[#allocation3] sm:$0xff]
    %v159 = vld [vmem:[#allocation3 + $0x8] sm:$0xff]
    %v160 = vld [vmem:[#allocation3 + $0x10] sm:$0xff]
    %v161 = vld [vmem:[#allocation3 + $0x18] sm:$0xff]
    %v162 = vld [vmem:[#allocation3 + $0x20] sm:$0xff]
    %v163 = vld [vmem:[#allocation3 + $0x28] sm:$0xff]
    %v164 = vld [vmem:[#allocation3 + $0x30] sm:$0xff]
    %v165 = vld [vmem:[#allocation3 + $0x38] sm:$0xff]
    %v166 = vld [vmem:[#allocation3 + $0x40] sm:$0xff]
    %v167 = vld [vmem:[#allocation3 + $0x48] sm:$0xff]
    %v168 = vld [vmem:[#allocation3 + $0x50] sm:$0xff]
    %v169 = vld [vmem:[#allocation3 + $0x58] sm:$0xff]
    %v170 = vld [vmem:[#allocation3 + $0x60] sm:$0xff]
    %v171 = vld [vmem:[#allocation3 + $0x68] sm:$0xff]
    %v172 = vld [vmem:[#allocation3 + $0x70] sm:$0xff]
    %v173 = vld [vmem:[#allocation3 + $0x78] sm:$0xff]
    %v174 = vld [vmem:[#allocation3 + $0x80] sm:$0xff]
    %v175 = vld [vmem:[#allocation3 + $0x88] sm:$0xff]
    %v176 = vld [vmem:[#allocation3 + $0x90] sm:$0xff]
    %v177 = vld [vmem:[#allocation3 + $0x98] sm:$0xff]
    %v178 = vld [vmem:[#allocation3 + $0xa0] sm:$0xff]
    %v179 = vld [vmem:[#allocation3 + $0xa8] sm:$0xff]
    %v180 = vld [vmem:[#allocation3 + $0xb0] sm:$0xff]
    %v181 = vld [vmem:[#allocation3 + $0xb8] sm:$0xff]
    %v182 = vld [vmem:[#allocation3 + $0xc0] sm:$0xff]
    %v183 = vld [vmem:[#allocation3 + $0xc8] sm:$0xff]
    %v184 = vld [vmem:[#allocation3 + $0xd0] sm:$0xff]
    %v185 = vld [vmem:[#allocation3 + $0xd8] sm:$0xff]
    %v186 = vld [vmem:[#allocation3 + $0xe0] sm:$0xff]
    %v187 = vld [vmem:[#allocation3 + $0xe8] sm:$0xff]
    %v188 = vld [vmem:[#allocation3 + $0xf0] sm:$0xff]
    %v189 = vld [vmem:[#allocation3 + $0xf8] sm:$0xff]
    %v190 = vld [vmem:[#allocation3 + $0x100] sm:$0xff]
    %v191 = vld [vmem:[#allocation3 + $0x108] sm:$0xff]
    %v192 = vld [vmem:[#allocation3 + $0x110] sm:$0xff]
    %v193 = vld [vmem:[#allocation3 + $0x118] sm:$0xff]
    %v194 = vld [vmem:[#allocation3 + $0x120] sm:$0xff]
    %v195 = vld [vmem:[#allocation3 + $0x128] sm:$0xff]
    %v196 = vld [vmem:[#allocation3 + $0x130] sm:$0xff]
    %v197 = vld [vmem:[#allocation3 + $0x138] sm:$0xff]
    %v198 = vld [vmem:[#allocation3 + $0x140] sm:$0xff]
    %v199 = vld [vmem:[#allocation3 + $0x148] sm:$0xff]
    %v200 = vld [vmem:[#allocation3 + $0x150] sm:$0xff]
    %v201 = vld [vmem:[#allocation3 + $0x158] sm:$0xff]
    %v202 = vld [vmem:[#allocation3 + $0x160] sm:$0xff]
    %v203 = vld [vmem:[#allocation3 + $0x168] sm:$0xff]
    %v204 = vld [vmem:[#allocation3 + $0x170] sm:$0xff]
    %v205 = vld [vmem:[#allocation3 + $0x178] sm:$0xff]
    %v206 = vld [vmem:[#allocation3 + $0x180] sm:$0xff]
    %v207 = vld [vmem:[#allocation3 + $0x188] sm:$0xff]
    %v208 = vld [vmem:[#allocation3 + $0x190] sm:$0xff]
    %v209 = vld [vmem:[#allocation3 + $0x198] sm:$0xff]
    %v210 = vld [vmem:[#allocation3 + $0x1a0] sm:$0xff]
    %v211 = vld [vmem:[#allocation3 + $0x1a8] sm:$0xff]
    %v212 = vld [vmem:[#allocation3 + $0x1b0] sm:$0xff]
    %v213 = vld [vmem:[#allocation3 + $0x1b8] sm:$0xff]
    %v214 = vld [vmem:[#allocation3 + $0x1c0] sm:$0xff]
    %v215 = vld [vmem:[#allocation3 + $0x1c8] sm:$0xff]
    %v216 = vld [vmem:[#allocation3 + $0x1d0] sm:$0xff]
    %v217 = vld [vmem:[#allocation3 + $0x1d8] sm:$0xff]
    %v218 = vld [vmem:[#allocation3 + $0x1e0] sm:$0xff]
    %v219 = vld [vmem:[#allocation3 + $0x1e8] sm:$0xff]
    %v220 = vld [vmem:[#allocation3 + $0x1f0] sm:$0xff]
    %v221 = vld [vmem:[#allocation3 + $0x1f8] sm:$0xff]
    %v222 = vld [vmem:[#allocation3 + $0x200] sm:$0xff]
    %v223 = vld [vmem:[#allocation3 + $0x208] sm:$0xff]
    %v224 = vld [vmem:[#allocation3 + $0x210] sm:$0xff]
    %v225 = vld [vmem:[#allocation3 + $0x218] sm:$0xff]
    %v226 = vld [vmem:[#allocation3 + $0x220] sm:$0xff]
    %v227 = vld [vmem:[#allocation3 + $0x228] sm:$0xff]
    %v228 = vld [vmem:[#allocation3 + $0x230] sm:$0xff]
    %v229 = vld [vmem:[#allocation3 + $0x238] sm:$0xff]
    %v230 = vld [vmem:[#allocation3 + $0x240] sm:$0xff]
    %v231 = vld [vmem:[#allocation3 + $0x248] sm:$0xff]
    %v232 = vld [vmem:[#allocation3 + $0x250] sm:$0xff]
    %v233 = vld [vmem:[#allocation3 + $0x258] sm:$0xff]
    %v234 = vld [vmem:[#allocation3 + $0x260] sm:$0xff]
    %v235 = vld [vmem:[#allocation3 + $0x268] sm:$0xff]
    %v236 = vld [vmem:[#allocation3 + $0x270] sm:$0xff]
    %v237 = vld [vmem:[#allocation3 + $0x278] sm:$0xff]
    %v238 = vld [vmem:[#allocation3 + $0x280] sm:$0xff]
    %v239 = vld [vmem:[#allocation3 + $0x288] sm:$0xff]
    %v240 = vld [vmem:[#allocation3 + $0x290] sm:$0xff]
    %v241 = vld [vmem:[#allocation3 + $0x298] sm:$0xff]
    %v242 = vld [vmem:[#allocation3 + $0x2a0] sm:$0xff]
    %v243 = vld [vmem:[#allocation3 + $0x2a8] sm:$0xff]
    %v244 = vld [vmem:[#allocation3 + $0x2b0] sm:$0xff]
    %v245 = vld [vmem:[#allocation3 + $0x2b8] sm:$0xff]
    %v246 = vld [vmem:[#allocation3 + $0x2c0] sm:$0xff]
    %v247 = vld [vmem:[#allocation3 + $0x2c8] sm:$0xff]
    %v248 = vld [vmem:[#allocation3 + $0x2d0] sm:$0xff]
    %v249 = vld [vmem:[#allocation3 + $0x2d8] sm:$0xff]
    %v250 = vld [vmem:[#allocation3 + $0x2e0] sm:$0xff]
    %v251 = vld [vmem:[#allocation3 + $0x2e8] sm:$0xff]
    %v252 = vld [vmem:[#allocation3 + $0x2f0] sm:$0xff]
    %v253 = vld [vmem:[#allocation3 + $0x2f8] sm:$0xff]
    %v254 = vld [vmem:[#allocation3 + $0x300] sm:$0xff]
    %v255 = vld [vmem:[#allocation3 + $0x308] sm:$0xff]
    %v256 = vld [vmem:[#allocation3 + $0x310] sm:$0xff]
    %v257 = vld [vmem:[#allocation3 + $0x318] sm:$0xff]
    %v258 = vld [vmem:[#allocation3 + $0x320] sm:$0xff]
    %v259 = vld [vmem:[#allocation3 + $0x328] sm:$0xff]
    %v260 = vld [vmem:[#allocation3 + $0x330] sm:$0xff]
    %v261 = vld [vmem:[#allocation3 + $0x338] sm:$0xff]
    %v262 = vld [vmem:[#allocation3 + $0x340] sm:$0xff]
    %v263 = vld [vmem:[#allocation3 + $0x348] sm:$0xff]
    %v264 = vld [vmem:[#allocation3 + $0x350] sm:$0xff]
    %v265 = vld [vmem:[#allocation3 + $0x358] sm:$0xff]
    %v266 = vld [vmem:[#allocation3 + $0x360] sm:$0xff]
    %v267 = vld [vmem:[#allocation3 + $0x368] sm:$0xff]
    %v268 = vld [vmem:[#allocation3 + $0x370] sm:$0xff]
    %v269 = vld [vmem:[#allocation3 + $0x378] sm:$0xff]
    %v270 = vld [vmem:[#allocation3 + $0x380] sm:$0xff]
    %v271 = vld [vmem:[#allocation3 + $0x388] sm:$0xff]
    %v272 = vld [vmem:[#allocation3 + $0x390] sm:$0xff]
    %v273 = vld [vmem:[#allocation3 + $0x398] sm:$0xff]
    %v274 = vld [vmem:[#allocation3 + $0x3a0] sm:$0xff]
    %v275 = vld [vmem:[#allocation3 + $0x3a8] sm:$0xff]
    %v276 = vld [vmem:[#allocation3 + $0x3b0] sm:$0xff]
    %v277 = vld [vmem:[#allocation3 + $0x3b8] sm:$0xff]
    %v278 = vld [vmem:[#allocation3 + $0x3c0] sm:$0xff]
    %v279 = vld [vmem:[#allocation3 + $0x3c8] sm:$0xff]
    %v280 = vld [vmem:[#allocation3 + $0x3d0] sm:$0xff]
    %v281 = vld [vmem:[#allocation3 + $0x3d8] sm:$0xff]
    %v282 = vld [vmem:[#allocation3 + $0x3e0] sm:$0xff]
    %v283 = vld [vmem:[#allocation3 + $0x3e8] sm:$0xff]
    %v284 = vld [vmem:[#allocation3 + $0x3f0] sm:$0xff]
    %v285 = vld [vmem:[#allocation3 + $0x3f8] sm:$0xff]
    %v286 = vld [vmem:[#allocation5] sm:$0xff]
    %v288 = vlaneseq
    %v289 = vshrl.u32 %v288, 7
    %v290 = vsub.s32 0, %v289
    %v291 = vrot.slane %v286, %v290
    %v292 = vlaneseq
    %v293 = vshrl.u32 %v292, 7
    %v294 = vsub.s32 1, %v293
    %v295 = vrot.slane %v286, %v294
    %v296 = vlaneseq
    %v297 = vshrl.u32 %v296, 7
    %v298 = vsub.s32 2, %v297
    %v299 = vrot.slane %v286, %v298
    %v300 = vlaneseq
    %v301 = vshrl.u32 %v300, 7
    %v302 = vsub.s32 3, %v301
    %v303 = vrot.slane %v286, %v302
    %v304 = vlaneseq
    %v305 = vshrl.u32 %v304, 7
    %v306 = vsub.s32 4, %v305
    %v307 = vrot.slane %v286, %v306
    %v308 = vlaneseq
    %v309 = vshrl.u32 %v308, 7
    %v310 = vsub.s32 5, %v309
    %v311 = vrot.slane %v286, %v310
    %v312 = vlaneseq
    %v313 = vshrl.u32 %v312, 7
    %v314 = vsub.s32 6, %v313
    %v315 = vrot.slane %v286, %v314
    %v316 = vlaneseq
    %v317 = vshrl.u32 %v316, 7
    %v318 = vsub.s32 7, %v317
    %v319 = vrot.slane %v286, %v318
    %328 = vmatprep.subr.mxu0 %v279
    %329 = vmatpush1.msra.mxu0 %v278
    %330 = vmatprep.subr.mxu0 %v271
    %331 = vmatpush1.msra.mxu0 %v270
    %332 = vmatprep.subr.mxu0 %v263
    %333 = vmatpush1.msra.mxu0 %v262
    %334 = vmatprep.subr.mxu0 %v255
    %335 = vmatpush1.msra.mxu0 %v254
    %336 = vmatprep.subr.mxu0 %v247
    %337 = vmatpush1.msra.mxu0 %v246
    %338 = vmatprep.subr.mxu0 %v239
    %339 = vmatpush1.msra.mxu0 %v238
    %340 = vmatprep.subr.mxu0 %v231
    %341 = vmatpush1.msra.mxu0 %v230
    %342 = vmatprep.subr.mxu0 %v223
    %343 = vmatpush1.msra.mxu0 %v222
    %344 = vmatprep.subr.mxu0 %v215
    %345 = vmatpush1.msra.mxu0 %v214
    %346 = vmatprep.subr.mxu0 %v207
    %347 = vmatpush1.msra.mxu0 %v206
    %348 = vmatprep.subr.mxu0 %v199
    %349 = vmatpush1.msra.mxu0 %v198
    %350 = vmatprep.subr.mxu0 %v191
    %351 = vmatpush1.msra.mxu0 %v190
    %352 = vmatprep.subr.mxu0 %v183
    %353 = vmatpush1.msra.mxu0 %v182
    %354 = vmatprep.subr.mxu0 %v175
    %355 = vmatpush1.msra.mxu0 %v174
    %356 = vmatprep.subr.mxu0 %v167
    %357 = vmatpush1.msra.mxu0 %v166
    %358 = vmatprep.subr.mxu0 %v159
    %359 = vmatpush1.msra.mxu0 %v158
    %360 = vmatprep.subr.mxu0 0.0
    %361 = vmatpush2.msra.mxu0 0.0
    %362 = vmatprep.subr.mxu0 0.0
    %363 = vmatpush2.msra.mxu0 0.0
    %364 = vmatprep.subr.mxu0 0.0
    %365 = vmatpush2.msra.mxu0 0.0
    %366 = vmatprep.subr.mxu0 0.0
    %367 = vmatpush2.msra.mxu0 0.0
    %368 = vmatprep.subr.mxu0 0.0
    %369 = vmatpush2.msra.mxu0 0.0
    %370 = vmatprep.subr.mxu0 0.0
    %371 = vmatpush2.msra.mxu0 0.0
    %372 = vmatprep.subr.mxu0 0.0
    %373 = vmatpush2.msra.mxu0 0.0
    %374 = vmatprep.subr.mxu0 0.0
    %375 = vmatpush2.msra.mxu0 0.0
    %376 = vmatprep.subr.mxu0 0.0
    %377 = vmatpush2.msra.mxu0 0.0
    %378 = vmatprep.subr.mxu0 0.0
    %379 = vmatpush2.msra.mxu0 0.0
    %380 = vmatprep.subr.mxu0 0.0
    %381 = vmatpush2.msra.mxu0 0.0
    %382 = vmatprep.subr.mxu0 0.0
    %383 = vmatpush2.msra.mxu0 0.0
    %384 = vmatprep.subr.mxu0 0.0
    %385 = vmatpush2.msra.mxu0 0.0
    %386 = vmatprep.subr.mxu0 0.0
    %387 = vmatpush2.msra.mxu0 0.0
    %388 = vmatprep.subr.mxu0 0.0
    %389 = vmatpush2.msra.mxu0 0.0
    %390 = vmatprep.subr.mxu0 0.0
    %391 = vmatpush2.msra.mxu0 0.0
    %392 = vmatprep.mubr.f32.mxu0 0.0
    %393 = vmatmul.mubr.f32.gmra.mxu0 %v157
    %v394 = vpop.f32.mrf.mxu0
    %v395 = vadd.f32 %v291, %v394
    %v396 = vpop.f32.mrf.mxu0
    %v397 = vadd.f32 %v295, %v396
    %398 = vdwg.mxu0
    %399 = vmatprep.subr.mxu0 %v281
    %400 = vmatpush1.msra.mxu0 %v280
    %401 = vmatprep.subr.mxu0 %v273
    %402 = vmatpush1.msra.mxu0 %v272
    %403 = vmatprep.subr.mxu0 %v265
    %404 = vmatpush1.msra.mxu0 %v264
    %405 = vmatprep.subr.mxu0 %v257
    %406 = vmatpush1.msra.mxu0 %v256
    %407 = vmatprep.subr.mxu0 %v249
    %408 = vmatpush1.msra.mxu0 %v248
    %409 = vmatprep.subr.mxu0 %v241
    %410 = vmatpush1.msra.mxu0 %v240
    %411 = vmatprep.subr.mxu0 %v233
    %412 = vmatpush1.msra.mxu0 %v232
    %413 = vmatprep.subr.mxu0 %v225
    %414 = vmatpush1.msra.mxu0 %v224
    %415 = vmatprep.subr.mxu0 %v217
    %416 = vmatpush1.msra.mxu0 %v216
    %417 = vmatprep.subr.mxu0 %v209
    %418 = vmatpush1.msra.mxu0 %v208
    %419 = vmatprep.subr.mxu0 %v201
    %420 = vmatpush1.msra.mxu0 %v200
    %421 = vmatprep.subr.mxu0 %v193
    %422 = vmatpush1.msra.mxu0 %v192
    %423 = vmatprep.subr.mxu0 %v185
    %424 = vmatpush1.msra.mxu0 %v184
    %425 = vmatprep.subr.mxu0 %v177
    %426 = vmatpush1.msra.mxu0 %v176
    %427 = vmatprep.subr.mxu0 %v169
    %428 = vmatpush1.msra.mxu0 %v168
    %429 = vmatprep.subr.mxu0 %v161
    %430 = vmatpush1.msra.mxu0 %v160
    %431 = vmatprep.subr.mxu0 0.0
    %432 = vmatpush2.msra.mxu0 0.0
    %433 = vmatprep.subr.mxu0 0.0
    %434 = vmatpush2.msra.mxu0 0.0
    %435 = vmatprep.subr.mxu0 0.0
    %436 = vmatpush2.msra.mxu0 0.0
    %437 = vmatprep.subr.mxu0 0.0
    %438 = vmatpush2.msra.mxu0 0.0
    %439 = vmatprep.subr.mxu0 0.0
    %440 = vmatpush2.msra.mxu0 0.0
    %441 = vmatprep.subr.mxu0 0.0
    %442 = vmatpush2.msra.mxu0 0.0
    %443 = vmatprep.subr.mxu0 0.0
    %444 = vmatpush2.msra.mxu0 0.0
    %445 = vmatprep.subr.mxu0 0.0
    %446 = vmatpush2.msra.mxu0 0.0
    %447 = vmatprep.subr.mxu0 0.0
    %448 = vmatpush2.msra.mxu0 0.0
    %449 = vmatprep.subr.mxu0 0.0
    %450 = vmatpush2.msra.mxu0 0.0
    %451 = vmatprep.subr.mxu0 0.0
    %452 = vmatpush2.msra.mxu0 0.0
    %453 = vmatprep.subr.mxu0 0.0
    %454 = vmatpush2.msra.mxu0 0.0
    %455 = vmatprep.subr.mxu0 0.0
    %456 = vmatpush2.msra.mxu0 0.0
    %457 = vmatprep.subr.mxu0 0.0
    %458 = vmatpush2.msra.mxu0 0.0
    %459 = vmatprep.subr.mxu0 0.0
    %460 = vmatpush2.msra.mxu0 0.0
    %461 = vmatprep.subr.mxu0 0.0
    %462 = vmatpush2.msra.mxu0 0.0
    %463 = vmatprep.mubr.f32.mxu0 0.0
    %464 = vmatmul.mubr.f32.gmra.mxu0 %v157
    %v465 = vpop.f32.mrf.mxu0
    %v466 = vadd.f32 %v299, %v465
    %v467 = vpop.f32.mrf.mxu0
    %v468 = vadd.f32 %v303, %v467
    %469 = vdwg.mxu0
    %470 = vmatprep.subr.mxu0 %v283
    %471 = vmatpush1.msra.mxu0 %v282
    %472 = vmatprep.subr.mxu0 %v275
    %473 = vmatpush1.msra.mxu0 %v274
    %474 = vmatprep.subr.mxu0 %v267
    %475 = vmatpush1.msra.mxu0 %v266
    %476 = vmatprep.subr.mxu0 %v259
    %477 = vmatpush1.msra.mxu0 %v258
    %478 = vmatprep.subr.mxu0 %v251
    %479 = vmatpush1.msra.mxu0 %v250
    %480 = vmatprep.subr.mxu0 %v243
    %481 = vmatpush1.msra.mxu0 %v242
    %482 = vmatprep.subr.mxu0 %v235
    %483 = vmatpush1.msra.mxu0 %v234
    %484 = vmatprep.subr.mxu0 %v227
    %485 = vmatpush1.msra.mxu0 %v226
    %486 = vmatprep.subr.mxu0 %v219
    %487 = vmatpush1.msra.mxu0 %v218
    %488 = vmatprep.subr.mxu0 %v211
    %489 = vmatpush1.msra.mxu0 %v210
    %490 = vmatprep.subr.mxu0 %v203
    %491 = vmatpush1.msra.mxu0 %v202
    %492 = vmatprep.subr.mxu0 %v195
    %493 = vmatpush1.msra.mxu0 %v194
    %494 = vmatprep.subr.mxu0 %v187
    %495 = vmatpush1.msra.mxu0 %v186
    %496 = vmatprep.subr.mxu0 %v179
    %497 = vmatpush1.msra.mxu0 %v178
    %498 = vmatprep.subr.mxu0 %v171
    %499 = vmatpush1.msra.mxu0 %v170
    %500 = vmatprep.subr.mxu0 %v163
    %501 = vmatpush1.msra.mxu0 %v162
    %502 = vmatprep.subr.mxu0 0.0
    %503 = vmatpush2.msra.mxu0 0.0
    %504 = vmatprep.subr.mxu0 0.0
    %505 = vmatpush2.msra.mxu0 0.0
    %506 = vmatprep.subr.mxu0 0.0
    %507 = vmatpush2.msra.mxu0 0.0
    %508 = vmatprep.subr.mxu0 0.0
    %509 = vmatpush2.msra.mxu0 0.0
    %510 = vmatprep.subr.mxu0 0.0
    %511 = vmatpush2.msra.mxu0 0.0
    %512 = vmatprep.subr.mxu0 0.0
    %513 = vmatpush2.msra.mxu0 0.0
    %514 = vmatprep.subr.mxu0 0.0
    %515 = vmatpush2.msra.mxu0 0.0
    %516 = vmatprep.subr.mxu0 0.0
    %517 = vmatpush2.msra.mxu0 0.0
    %518 = vmatprep.subr.mxu0 0.0
    %519 = vmatpush2.msra.mxu0 0.0
    %520 = vmatprep.subr.mxu0 0.0
    %521 = vmatpush2.msra.mxu0 0.0
    %522 = vmatprep.subr.mxu0 0.0
    %523 = vmatpush2.msra.mxu0 0.0
    %524 = vmatprep.subr.mxu0 0.0
    %525 = vmatpush2.msra.mxu0 0.0
    %526 = vmatprep.subr.mxu0 0.0
    %527 = vmatpush2.msra.mxu0 0.0
    %528 = vmatprep.subr.mxu0 0.0
    %529 = vmatpush2.msra.mxu0 0.0
    %530 = vmatprep.subr.mxu0 0.0
    %531 = vmatpush2.msra.mxu0 0.0
    %532 = vmatprep.subr.mxu0 0.0
    %533 = vmatpush2.msra.mxu0 0.0
    %534 = vmatprep.mubr.f32.mxu0 0.0
    %535 = vmatmul.mubr.f32.gmra.mxu0 %v157
    %v536 = vpop.f32.mrf.mxu0
    %v537 = vadd.f32 %v307, %v536
    %v538 = vpop.f32.mrf.mxu0
    %v539 = vadd.f32 %v311, %v538
    %540 = vdwg.mxu0
    %541 = vmatprep.subr.mxu0 %v285
    %542 = vmatpush1.msra.mxu0 %v284
    %543 = vmatprep.subr.mxu0 %v277
    %544 = vmatpush1.msra.mxu0 %v276
    %545 = vmatprep.subr.mxu0 %v269
    %546 = vmatpush1.msra.mxu0 %v268
    %547 = vmatprep.subr.mxu0 %v261
    %548 = vmatpush1.msra.mxu0 %v260
    %549 = vmatprep.subr.mxu0 %v253
    %550 = vmatpush1.msra.mxu0 %v252
    %551 = vmatprep.subr.mxu0 %v245
    %552 = vmatpush1.msra.mxu0 %v244
    %553 = vmatprep.subr.mxu0 %v237
    %554 = vmatpush1.msra.mxu0 %v236
    %555 = vmatprep.subr.mxu0 %v229
    %556 = vmatpush1.msra.mxu0 %v228
    %557 = vmatprep.subr.mxu0 %v221
    %558 = vmatpush1.msra.mxu0 %v220
    %559 = vmatprep.subr.mxu0 %v213
    %560 = vmatpush1.msra.mxu0 %v212
    %561 = vmatprep.subr.mxu0 %v205
    %562 = vmatpush1.msra.mxu0 %v204
    %563 = vmatprep.subr.mxu0 %v197
    %564 = vmatpush1.msra.mxu0 %v196
    %565 = vmatprep.subr.mxu0 %v189
    %566 = vmatpush1.msra.mxu0 %v188
    %567 = vmatprep.subr.mxu0 %v181
    %568 = vmatpush1.msra.mxu0 %v180
    %569 = vmatprep.subr.mxu0 %v173
    %570 = vmatpush1.msra.mxu0 %v172
    %571 = vmatprep.subr.mxu0 %v165
    %572 = vmatpush1.msra.mxu0 %v164
    %573 = vmatprep.subr.mxu0 0.0
    %574 = vmatpush2.msra.mxu0 0.0
    %575 = vmatprep.subr.mxu0 0.0
    %576 = vmatpush2.msra.mxu0 0.0
    %577 = vmatprep.subr.mxu0 0.0
    %578 = vmatpush2.msra.mxu0 0.0
    %579 = vmatprep.subr.mxu0 0.0
    %580 = vmatpush2.msra.mxu0 0.0
    %581 = vmatprep.subr.mxu0 0.0
    %582 = vmatpush2.msra.mxu0 0.0
    %583 = vmatprep.subr.mxu0 0.0
    %584 = vmatpush2.msra.mxu0 0.0
    %585 = vmatprep.subr.mxu0 0.0
    %586 = vmatpush2.msra.mxu0 0.0
    %587 = vmatprep.subr.mxu0 0.0
    %588 = vmatpush2.msra.mxu0 0.0
    %589 = vmatprep.subr.mxu0 0.0
    %590 = vmatpush2.msra.mxu0 0.0
    %591 = vmatprep.subr.mxu0 0.0
    %592 = vmatpush2.msra.mxu0 0.0
    %593 = vmatprep.subr.mxu0 0.0
    %594 = vmatpush2.msra.mxu0 0.0
    %595 = vmatprep.subr.mxu0 0.0
    %596 = vmatpush2.msra.mxu0 0.0
    %597 = vmatprep.subr.mxu0 0.0
    %598 = vmatpush2.msra.mxu0 0.0
    %599 = vmatprep.subr.mxu0 0.0
    %600 = vmatpush2.msra.mxu0 0.0
    %601 = vmatprep.subr.mxu0 0.0
    %602 = vmatpush2.msra.mxu0 0.0
    %603 = vmatprep.subr.mxu0 0.0
    %604 = vmatpush2.msra.mxu0 0.0
    %605 = vmatprep.mubr.f32.mxu0 0.0
    %606 = vmatmul.mubr.f32.gmra.mxu0 %v157
    %v607 = vpop.f32.mrf.mxu0
    %v608 = vadd.f32 %v315, %v607
    %v609 = vpop.f32.mrf.mxu0
    %v610 = vadd.f32 %v319, %v609
    %611 = vdwg.mxu0
    %v612 = vmax.f32 %v395, 0.0
    %v613 = vmax.f32 %v397, 0.0
    %v614 = vmax.f32 %v466, 0.0
    %v615 = vmax.f32 %v468, 0.0
    %v616 = vmax.f32 %v537, 0.0
    %v617 = vmax.f32 %v539, 0.0
    %v618 = vmax.f32 %v608, 0.0
    %v619 = vmax.f32 %v610, 0.0
    %v620 = vld [vmem:[#allocation7] sm:$0xff]
    %v621 = vld [vmem:[#allocation7 + $0x8] sm:$0xff]
    %v622 = vld [vmem:[#allocation7 + $0x10] sm:$0xff]
    %v623 = vld [vmem:[#allocation7 + $0x18] sm:$0xff]
    %v624 = vld [vmem:[#allocation7 + $0x20] sm:$0xff]
    %v625 = vld [vmem:[#allocation7 + $0x28] sm:$0xff]
    %v626 = vld [vmem:[#allocation7 + $0x30] sm:$0xff]
    %v627 = vld [vmem:[#allocation7 + $0x38] sm:$0xff]
    %v628 = vld [vmem:[#allocation7 + $0x40] sm:$0xff]
    %v629 = vld [vmem:[#allocation7 + $0x48] sm:$0xff]
    %v630 = vld [vmem:[#allocation7 + $0x50] sm:$0xff]
    %v631 = vld [vmem:[#allocation7 + $0x58] sm:$0xff]
    %v632 = vld [vmem:[#allocation7 + $0x60] sm:$0xff]
    %v633 = vld [vmem:[#allocation7 + $0x68] sm:$0xff]
    %v634 = vld [vmem:[#allocation7 + $0x70] sm:$0xff]
    %v635 = vld [vmem:[#allocation7 + $0x78] sm:$0xff]
    %v636 = vld [vmem:[#allocation7 + $0x80] sm:$0xff]
    %v637 = vld [vmem:[#allocation7 + $0x88] sm:$0xff]
    %v638 = vld [vmem:[#allocation7 + $0x90] sm:$0xff]
    %v639 = vld [vmem:[#allocation7 + $0x98] sm:$0xff]
    %v640 = vld [vmem:[#allocation7 + $0xa0] sm:$0xff]
    %v641 = vld [vmem:[#allocation7 + $0xa8] sm:$0xff]
    %v642 = vld [vmem:[#allocation7 + $0xb0] sm:$0xff]
    %v643 = vld [vmem:[#allocation7 + $0xb8] sm:$0xff]
    %v644 = vld [vmem:[#allocation7 + $0xc0] sm:$0xff]
    %v645 = vld [vmem:[#allocation7 + $0xc8] sm:$0xff]
    %v646 = vld [vmem:[#allocation7 + $0xd0] sm:$0xff]
    %v647 = vld [vmem:[#allocation7 + $0xd8] sm:$0xff]
    %v648 = vld [vmem:[#allocation7 + $0xe0] sm:$0xff]
    %v649 = vld [vmem:[#allocation7 + $0xe8] sm:$0xff]
    %v650 = vld [vmem:[#allocation7 + $0xf0] sm:$0xff]
    %v651 = vld [vmem:[#allocation7 + $0xf8] sm:$0xff]
    %v652 = vld [vmem:[#allocation7 + $0x100] sm:$0xff]
    %v653 = vld [vmem:[#allocation7 + $0x108] sm:$0xff]
    %v654 = vld [vmem:[#allocation7 + $0x110] sm:$0xff]
    %v655 = vld [vmem:[#allocation7 + $0x118] sm:$0xff]
    %v656 = vld [vmem:[#allocation7 + $0x120] sm:$0xff]
    %v657 = vld [vmem:[#allocation7 + $0x128] sm:$0xff]
    %v658 = vld [vmem:[#allocation7 + $0x130] sm:$0xff]
    %v659 = vld [vmem:[#allocation7 + $0x138] sm:$0xff]
    %v660 = vld [vmem:[#allocation7 + $0x140] sm:$0xff]
    %v661 = vld [vmem:[#allocation7 + $0x148] sm:$0xff]
    %v662 = vld [vmem:[#allocation7 + $0x150] sm:$0xff]
    %v663 = vld [vmem:[#allocation7 + $0x158] sm:$0xff]
    %v664 = vld [vmem:[#allocation7 + $0x160] sm:$0xff]
    %v665 = vld [vmem:[#allocation7 + $0x168] sm:$0xff]
    %v666 = vld [vmem:[#allocation7 + $0x170] sm:$0xff]
    %v667 = vld [vmem:[#allocation7 + $0x178] sm:$0xff]
    %v668 = vld [vmem:[#allocation7 + $0x180] sm:$0xff]
    %v669 = vld [vmem:[#allocation7 + $0x188] sm:$0xff]
    %v670 = vld [vmem:[#allocation7 + $0x190] sm:$0xff]
    %v671 = vld [vmem:[#allocation7 + $0x198] sm:$0xff]
    %v672 = vld [vmem:[#allocation7 + $0x1a0] sm:$0xff]
    %v673 = vld [vmem:[#allocation7 + $0x1a8] sm:$0xff]
    %v674 = vld [vmem:[#allocation7 + $0x1b0] sm:$0xff]
    %v675 = vld [vmem:[#allocation7 + $0x1b8] sm:$0xff]
    %v676 = vld [vmem:[#allocation7 + $0x1c0] sm:$0xff]
    %v677 = vld [vmem:[#allocation7 + $0x1c8] sm:$0xff]
    %v678 = vld [vmem:[#allocation7 + $0x1d0] sm:$0xff]
    %v679 = vld [vmem:[#allocation7 + $0x1d8] sm:$0xff]
    %v680 = vld [vmem:[#allocation7 + $0x1e0] sm:$0xff]
    %v681 = vld [vmem:[#allocation7 + $0x1e8] sm:$0xff]
    %v682 = vld [vmem:[#allocation7 + $0x1f0] sm:$0xff]
    %v683 = vld [vmem:[#allocation7 + $0x1f8] sm:$0xff]
    %v684 = vld [vmem:[#allocation7 + $0x200] sm:$0xff]
    %v685 = vld [vmem:[#allocation7 + $0x208] sm:$0xff]
    %v686 = vld [vmem:[#allocation7 + $0x210] sm:$0xff]
    %v687 = vld [vmem:[#allocation7 + $0x218] sm:$0xff]
    %v688 = vld [vmem:[#allocation7 + $0x220] sm:$0xff]
    %v689 = vld [vmem:[#allocation7 + $0x228] sm:$0xff]
    %v690 = vld [vmem:[#allocation7 + $0x230] sm:$0xff]
    %v691 = vld [vmem:[#allocation7 + $0x238] sm:$0xff]
    %v692 = vld [vmem:[#allocation7 + $0x240] sm:$0xff]
    %v693 = vld [vmem:[#allocation7 + $0x248] sm:$0xff]
    %v694 = vld [vmem:[#allocation7 + $0x250] sm:$0xff]
    %v695 = vld [vmem:[#allocation7 + $0x258] sm:$0xff]
    %v696 = vld [vmem:[#allocation7 + $0x260] sm:$0xff]
    %v697 = vld [vmem:[#allocation7 + $0x268] sm:$0xff]
    %v698 = vld [vmem:[#allocation7 + $0x270] sm:$0xff]
    %v699 = vld [vmem:[#allocation7 + $0x278] sm:$0xff]
    %v700 = vld [vmem:[#allocation7 + $0x280] sm:$0xff]
    %v701 = vld [vmem:[#allocation7 + $0x288] sm:$0xff]
    %v702 = vld [vmem:[#allocation7 + $0x290] sm:$0xff]
    %v703 = vld [vmem:[#allocation7 + $0x298] sm:$0xff]
    %v704 = vld [vmem:[#allocation7 + $0x2a0] sm:$0xff]
    %v705 = vld [vmem:[#allocation7 + $0x2a8] sm:$0xff]
    %v706 = vld [vmem:[#allocation7 + $0x2b0] sm:$0xff]
    %v707 = vld [vmem:[#allocation7 + $0x2b8] sm:$0xff]
    %v708 = vld [vmem:[#allocation7 + $0x2c0] sm:$0xff]
    %v709 = vld [vmem:[#allocation7 + $0x2c8] sm:$0xff]
    %v710 = vld [vmem:[#allocation7 + $0x2d0] sm:$0xff]
    %v711 = vld [vmem:[#allocation7 + $0x2d8] sm:$0xff]
    %v712 = vld [vmem:[#allocation7 + $0x2e0] sm:$0xff]
    %v713 = vld [vmem:[#allocation7 + $0x2e8] sm:$0xff]
    %v714 = vld [vmem:[#allocation7 + $0x2f0] sm:$0xff]
    %v715 = vld [vmem:[#allocation7 + $0x2f8] sm:$0xff]
    %v716 = vld [vmem:[#allocation7 + $0x300] sm:$0xff]
    %v717 = vld [vmem:[#allocation7 + $0x308] sm:$0xff]
    %v718 = vld [vmem:[#allocation7 + $0x310] sm:$0xff]
    %v719 = vld [vmem:[#allocation7 + $0x318] sm:$0xff]
    %v720 = vld [vmem:[#allocation7 + $0x320] sm:$0xff]
    %v721 = vld [vmem:[#allocation7 + $0x328] sm:$0xff]
    %v722 = vld [vmem:[#allocation7 + $0x330] sm:$0xff]
    %v723 = vld [vmem:[#allocation7 + $0x338] sm:$0xff]
    %v724 = vld [vmem:[#allocation7 + $0x340] sm:$0xff]
    %v725 = vld [vmem:[#allocation7 + $0x348] sm:$0xff]
    %v726 = vld [vmem:[#allocation7 + $0x350] sm:$0xff]
    %v727 = vld [vmem:[#allocation7 + $0x358] sm:$0xff]
    %v728 = vld [vmem:[#allocation7 + $0x360] sm:$0xff]
    %v729 = vld [vmem:[#allocation7 + $0x368] sm:$0xff]
    %v730 = vld [vmem:[#allocation7 + $0x370] sm:$0xff]
    %v731 = vld [vmem:[#allocation7 + $0x378] sm:$0xff]
    %v732 = vld [vmem:[#allocation7 + $0x380] sm:$0xff]
    %v733 = vld [vmem:[#allocation7 + $0x388] sm:$0xff]
    %v734 = vld [vmem:[#allocation7 + $0x390] sm:$0xff]
    %v735 = vld [vmem:[#allocation7 + $0x398] sm:$0xff]
    %v736 = vld [vmem:[#allocation7 + $0x3a0] sm:$0xff]
    %v737 = vld [vmem:[#allocation7 + $0x3a8] sm:$0xff]
    %v738 = vld [vmem:[#allocation7 + $0x3b0] sm:$0xff]
    %v739 = vld [vmem:[#allocation7 + $0x3b8] sm:$0xff]
    %v740 = vld [vmem:[#allocation7 + $0x3c0] sm:$0xff]
    %v741 = vld [vmem:[#allocation7 + $0x3c8] sm:$0xff]
    %v742 = vld [vmem:[#allocation7 + $0x3d0] sm:$0xff]
    %v743 = vld [vmem:[#allocation7 + $0x3d8] sm:$0xff]
    %v744 = vld [vmem:[#allocation7 + $0x3e0] sm:$0xff]
    %v745 = vld [vmem:[#allocation7 + $0x3e8] sm:$0xff]
    %v746 = vld [vmem:[#allocation7 + $0x3f0] sm:$0xff]
    %v747 = vld [vmem:[#allocation7 + $0x3f8] sm:$0xff]
    %v748 = vld [vmem:[#allocation7 + $0x400] sm:$0xff]
    %v749 = vld [vmem:[#allocation7 + $0x408] sm:$0xff]
    %v750 = vld [vmem:[#allocation7 + $0x410] sm:$0xff]
    %v751 = vld [vmem:[#allocation7 + $0x418] sm:$0xff]
    %v752 = vld [vmem:[#allocation7 + $0x420] sm:$0xff]
    %v753 = vld [vmem:[#allocation7 + $0x428] sm:$0xff]
    %v754 = vld [vmem:[#allocation7 + $0x430] sm:$0xff]
    %v755 = vld [vmem:[#allocation7 + $0x438] sm:$0xff]
    %v756 = vld [vmem:[#allocation7 + $0x440] sm:$0xff]
    %v757 = vld [vmem:[#allocation7 + $0x448] sm:$0xff]
    %v758 = vld [vmem:[#allocation7 + $0x450] sm:$0xff]
    %v759 = vld [vmem:[#allocation7 + $0x458] sm:$0xff]
    %v760 = vld [vmem:[#allocation7 + $0x460] sm:$0xff]
    %v761 = vld [vmem:[#allocation7 + $0x468] sm:$0xff]
    %v762 = vld [vmem:[#allocation7 + $0x470] sm:$0xff]
    %v763 = vld [vmem:[#allocation7 + $0x478] sm:$0xff]
    %v764 = vld [vmem:[#allocation7 + $0x480] sm:$0xff]
    %v765 = vld [vmem:[#allocation7 + $0x488] sm:$0xff]
    %v766 = vld [vmem:[#allocation7 + $0x490] sm:$0xff]
    %v767 = vld [vmem:[#allocation7 + $0x498] sm:$0xff]
    %v768 = vld [vmem:[#allocation7 + $0x4a0] sm:$0xff]
    %v769 = vld [vmem:[#allocation7 + $0x4a8] sm:$0xff]
    %v770 = vld [vmem:[#allocation7 + $0x4b0] sm:$0xff]
    %v771 = vld [vmem:[#allocation7 + $0x4b8] sm:$0xff]
    %v772 = vld [vmem:[#allocation7 + $0x4c0] sm:$0xff]
    %v773 = vld [vmem:[#allocation7 + $0x4c8] sm:$0xff]
    %v774 = vld [vmem:[#allocation7 + $0x4d0] sm:$0xff]
    %v775 = vld [vmem:[#allocation7 + $0x4d8] sm:$0xff]
    %v776 = vld [vmem:[#allocation7 + $0x4e0] sm:$0xff]
    %v777 = vld [vmem:[#allocation7 + $0x4e8] sm:$0xff]
    %v778 = vld [vmem:[#allocation7 + $0x4f0] sm:$0xff]
    %v779 = vld [vmem:[#allocation7 + $0x4f8] sm:$0xff]
    %v780 = vld [vmem:[#allocation7 + $0x500] sm:$0xff]
    %v781 = vld [vmem:[#allocation7 + $0x508] sm:$0xff]
    %v782 = vld [vmem:[#allocation7 + $0x510] sm:$0xff]
    %v783 = vld [vmem:[#allocation7 + $0x518] sm:$0xff]
    %v784 = vld [vmem:[#allocation7 + $0x520] sm:$0xff]
    %v785 = vld [vmem:[#allocation7 + $0x528] sm:$0xff]
    %v786 = vld [vmem:[#allocation7 + $0x530] sm:$0xff]
    %v787 = vld [vmem:[#allocation7 + $0x538] sm:$0xff]
    %v788 = vld [vmem:[#allocation7 + $0x540] sm:$0xff]
    %v789 = vld [vmem:[#allocation7 + $0x548] sm:$0xff]
    %v790 = vld [vmem:[#allocation7 + $0x550] sm:$0xff]
    %v791 = vld [vmem:[#allocation7 + $0x558] sm:$0xff]
    %v792 = vld [vmem:[#allocation7 + $0x560] sm:$0xff]
    %v793 = vld [vmem:[#allocation7 + $0x568] sm:$0xff]
    %v794 = vld [vmem:[#allocation7 + $0x570] sm:$0xff]
    %v795 = vld [vmem:[#allocation7 + $0x578] sm:$0xff]
    %v796 = vld [vmem:[#allocation7 + $0x580] sm:$0xff]
    %v797 = vld [vmem:[#allocation7 + $0x588] sm:$0xff]
    %v798 = vld [vmem:[#allocation7 + $0x590] sm:$0xff]
    %v799 = vld [vmem:[#allocation7 + $0x598] sm:$0xff]
    %v800 = vld [vmem:[#allocation7 + $0x5a0] sm:$0xff]
    %v801 = vld [vmem:[#allocation7 + $0x5a8] sm:$0xff]
    %v802 = vld [vmem:[#allocation7 + $0x5b0] sm:$0xff]
    %v803 = vld [vmem:[#allocation7 + $0x5b8] sm:$0xff]
    %v804 = vld [vmem:[#allocation7 + $0x5c0] sm:$0xff]
    %v805 = vld [vmem:[#allocation7 + $0x5c8] sm:$0xff]
    %v806 = vld [vmem:[#allocation7 + $0x5d0] sm:$0xff]
    %v807 = vld [vmem:[#allocation7 + $0x5d8] sm:$0xff]
    %v808 = vld [vmem:[#allocation7 + $0x5e0] sm:$0xff]
    %v809 = vld [vmem:[#allocation7 + $0x5e8] sm:$0xff]
    %v810 = vld [vmem:[#allocation7 + $0x5f0] sm:$0xff]
    %v811 = vld [vmem:[#allocation7 + $0x5f8] sm:$0xff]
    %v812 = vld [vmem:[#allocation7 + $0x600] sm:$0xff]
    %v813 = vld [vmem:[#allocation7 + $0x608] sm:$0xff]
    %v814 = vld [vmem:[#allocation7 + $0x610] sm:$0xff]
    %v815 = vld [vmem:[#allocation7 + $0x618] sm:$0xff]
    %v816 = vld [vmem:[#allocation7 + $0x620] sm:$0xff]
    %v817 = vld [vmem:[#allocation7 + $0x628] sm:$0xff]
    %v818 = vld [vmem:[#allocation7 + $0x630] sm:$0xff]
    %v819 = vld [vmem:[#allocation7 + $0x638] sm:$0xff]
    %v820 = vld [vmem:[#allocation7 + $0x640] sm:$0xff]
    %v821 = vld [vmem:[#allocation7 + $0x648] sm:$0xff]
    %v822 = vld [vmem:[#allocation7 + $0x650] sm:$0xff]
    %v823 = vld [vmem:[#allocation7 + $0x658] sm:$0xff]
    %v824 = vld [vmem:[#allocation7 + $0x660] sm:$0xff]
    %v825 = vld [vmem:[#allocation7 + $0x668] sm:$0xff]
    %v826 = vld [vmem:[#allocation7 + $0x670] sm:$0xff]
    %v827 = vld [vmem:[#allocation7 + $0x678] sm:$0xff]
    %v828 = vld [vmem:[#allocation7 + $0x680] sm:$0xff]
    %v829 = vld [vmem:[#allocation7 + $0x688] sm:$0xff]
    %v830 = vld [vmem:[#allocation7 + $0x690] sm:$0xff]
    %v831 = vld [vmem:[#allocation7 + $0x698] sm:$0xff]
    %v832 = vld [vmem:[#allocation7 + $0x6a0] sm:$0xff]
    %v833 = vld [vmem:[#allocation7 + $0x6a8] sm:$0xff]
    %v834 = vld [vmem:[#allocation7 + $0x6b0] sm:$0xff]
    %v835 = vld [vmem:[#allocation7 + $0x6b8] sm:$0xff]
    %v836 = vld [vmem:[#allocation7 + $0x6c0] sm:$0xff]
    %v837 = vld [vmem:[#allocation7 + $0x6c8] sm:$0xff]
    %v838 = vld [vmem:[#allocation7 + $0x6d0] sm:$0xff]
    %v839 = vld [vmem:[#allocation7 + $0x6d8] sm:$0xff]
    %v840 = vld [vmem:[#allocation7 + $0x6e0] sm:$0xff]
    %v841 = vld [vmem:[#allocation7 + $0x6e8] sm:$0xff]
    %v842 = vld [vmem:[#allocation7 + $0x6f0] sm:$0xff]
    %v843 = vld [vmem:[#allocation7 + $0x6f8] sm:$0xff]
    %v844 = vld [vmem:[#allocation7 + $0x700] sm:$0xff]
    %v845 = vld [vmem:[#allocation7 + $0x708] sm:$0xff]
    %v846 = vld [vmem:[#allocation7 + $0x710] sm:$0xff]
    %v847 = vld [vmem:[#allocation7 + $0x718] sm:$0xff]
    %v848 = vld [vmem:[#allocation7 + $0x720] sm:$0xff]
    %v849 = vld [vmem:[#allocation7 + $0x728] sm:$0xff]
    %v850 = vld [vmem:[#allocation7 + $0x730] sm:$0xff]
    %v851 = vld [vmem:[#allocation7 + $0x738] sm:$0xff]
    %v852 = vld [vmem:[#allocation7 + $0x740] sm:$0xff]
    %v853 = vld [vmem:[#allocation7 + $0x748] sm:$0xff]
    %v854 = vld [vmem:[#allocation7 + $0x750] sm:$0xff]
    %v855 = vld [vmem:[#allocation7 + $0x758] sm:$0xff]
    %v856 = vld [vmem:[#allocation7 + $0x760] sm:$0xff]
    %v857 = vld [vmem:[#allocation7 + $0x768] sm:$0xff]
    %v858 = vld [vmem:[#allocation7 + $0x770] sm:$0xff]
    %v859 = vld [vmem:[#allocation7 + $0x778] sm:$0xff]
    %v860 = vld [vmem:[#allocation7 + $0x780] sm:$0xff]
    %v861 = vld [vmem:[#allocation7 + $0x788] sm:$0xff]
    %v862 = vld [vmem:[#allocation7 + $0x790] sm:$0xff]
    %v863 = vld [vmem:[#allocation7 + $0x798] sm:$0xff]
    %v864 = vld [vmem:[#allocation7 + $0x7a0] sm:$0xff]
    %v865 = vld [vmem:[#allocation7 + $0x7a8] sm:$0xff]
    %v866 = vld [vmem:[#allocation7 + $0x7b0] sm:$0xff]
    %v867 = vld [vmem:[#allocation7 + $0x7b8] sm:$0xff]
    %v868 = vld [vmem:[#allocation7 + $0x7c0] sm:$0xff]
    %v869 = vld [vmem:[#allocation7 + $0x7c8] sm:$0xff]
    %v870 = vld [vmem:[#allocation7 + $0x7d0] sm:$0xff]
    %v871 = vld [vmem:[#allocation7 + $0x7d8] sm:$0xff]
    %v872 = vld [vmem:[#allocation7 + $0x7e0] sm:$0xff]
    %v873 = vld [vmem:[#allocation7 + $0x7e8] sm:$0xff]
    %v874 = vld [vmem:[#allocation7 + $0x7f0] sm:$0xff]
    %v875 = vld [vmem:[#allocation7 + $0x7f8] sm:$0xff]
    %v876 = vld [vmem:[#allocation7 + $0x800] sm:$0xff]
    %v877 = vld [vmem:[#allocation7 + $0x808] sm:$0xff]
    %v878 = vld [vmem:[#allocation7 + $0x810] sm:$0xff]
    %v879 = vld [vmem:[#allocation7 + $0x818] sm:$0xff]
    %v880 = vld [vmem:[#allocation7 + $0x820] sm:$0xff]
    %v881 = vld [vmem:[#allocation7 + $0x828] sm:$0xff]
    %v882 = vld [vmem:[#allocation7 + $0x830] sm:$0xff]
    %v883 = vld [vmem:[#allocation7 + $0x838] sm:$0xff]
    %v884 = vld [vmem:[#allocation7 + $0x840] sm:$0xff]
    %v885 = vld [vmem:[#allocation7 + $0x848] sm:$0xff]
    %v886 = vld [vmem:[#allocation7 + $0x850] sm:$0xff]
    %v887 = vld [vmem:[#allocation7 + $0x858] sm:$0xff]
    %v888 = vld [vmem:[#allocation7 + $0x860] sm:$0xff]
    %v889 = vld [vmem:[#allocation7 + $0x868] sm:$0xff]
    %v890 = vld [vmem:[#allocation7 + $0x870] sm:$0xff]
    %v891 = vld [vmem:[#allocation7 + $0x878] sm:$0xff]
    %v892 = vld [vmem:[#allocation7 + $0x880] sm:$0xff]
    %v893 = vld [vmem:[#allocation7 + $0x888] sm:$0xff]
    %v894 = vld [vmem:[#allocation7 + $0x890] sm:$0xff]
    %v895 = vld [vmem:[#allocation7 + $0x898] sm:$0xff]
    %v896 = vld [vmem:[#allocation7 + $0x8a0] sm:$0xff]
    %v897 = vld [vmem:[#allocation7 + $0x8a8] sm:$0xff]
    %v898 = vld [vmem:[#allocation7 + $0x8b0] sm:$0xff]
    %v899 = vld [vmem:[#allocation7 + $0x8b8] sm:$0xff]
    %v900 = vld [vmem:[#allocation7 + $0x8c0] sm:$0xff]
    %v901 = vld [vmem:[#allocation7 + $0x8c8] sm:$0xff]
    %v902 = vld [vmem:[#allocation7 + $0x8d0] sm:$0xff]
    %v903 = vld [vmem:[#allocation7 + $0x8d8] sm:$0xff]
    %v904 = vld [vmem:[#allocation7 + $0x8e0] sm:$0xff]
    %v905 = vld [vmem:[#allocation7 + $0x8e8] sm:$0xff]
    %v906 = vld [vmem:[#allocation7 + $0x8f0] sm:$0xff]
    %v907 = vld [vmem:[#allocation7 + $0x8f8] sm:$0xff]
    %v908 = vld [vmem:[#allocation7 + $0x900] sm:$0xff]
    %v909 = vld [vmem:[#allocation7 + $0x908] sm:$0xff]
    %v910 = vld [vmem:[#allocation7 + $0x910] sm:$0xff]
    %v911 = vld [vmem:[#allocation7 + $0x918] sm:$0xff]
    %v912 = vld [vmem:[#allocation7 + $0x920] sm:$0xff]
    %v913 = vld [vmem:[#allocation7 + $0x928] sm:$0xff]
    %v914 = vld [vmem:[#allocation7 + $0x930] sm:$0xff]
    %v915 = vld [vmem:[#allocation7 + $0x938] sm:$0xff]
    %v916 = vld [vmem:[#allocation7 + $0x940] sm:$0xff]
    %v917 = vld [vmem:[#allocation7 + $0x948] sm:$0xff]
    %v918 = vld [vmem:[#allocation7 + $0x950] sm:$0xff]
    %v919 = vld [vmem:[#allocation7 + $0x958] sm:$0xff]
    %v920 = vld [vmem:[#allocation7 + $0x960] sm:$0xff]
    %v921 = vld [vmem:[#allocation7 + $0x968] sm:$0xff]
    %v922 = vld [vmem:[#allocation7 + $0x970] sm:$0xff]
    %v923 = vld [vmem:[#allocation7 + $0x978] sm:$0xff]
    %v924 = vld [vmem:[#allocation7 + $0x980] sm:$0xff]
    %v925 = vld [vmem:[#allocation7 + $0x988] sm:$0xff]
    %v926 = vld [vmem:[#allocation7 + $0x990] sm:$0xff]
    %v927 = vld [vmem:[#allocation7 + $0x998] sm:$0xff]
    %v928 = vld [vmem:[#allocation7 + $0x9a0] sm:$0xff]
    %v929 = vld [vmem:[#allocation7 + $0x9a8] sm:$0xff]
    %v930 = vld [vmem:[#allocation7 + $0x9b0] sm:$0xff]
    %v931 = vld [vmem:[#allocation7 + $0x9b8] sm:$0xff]
    %v932 = vld [vmem:[#allocation7 + $0x9c0] sm:$0xff]
    %v933 = vld [vmem:[#allocation7 + $0x9c8] sm:$0xff]
    %v934 = vld [vmem:[#allocation7 + $0x9d0] sm:$0xff]
    %v935 = vld [vmem:[#allocation7 + $0x9d8] sm:$0xff]
    %v936 = vld [vmem:[#allocation7 + $0x9e0] sm:$0xff]
    %v937 = vld [vmem:[#allocation7 + $0x9e8] sm:$0xff]
    %v938 = vld [vmem:[#allocation7 + $0x9f0] sm:$0xff]
    %v939 = vld [vmem:[#allocation7 + $0x9f8] sm:$0xff]
    %v940 = vld [vmem:[#allocation7 + $0xa00] sm:$0xff]
    %v941 = vld [vmem:[#allocation7 + $0xa08] sm:$0xff]
    %v942 = vld [vmem:[#allocation7 + $0xa10] sm:$0xff]
    %v943 = vld [vmem:[#allocation7 + $0xa18] sm:$0xff]
    %v944 = vld [vmem:[#allocation7 + $0xa20] sm:$0xff]
    %v945 = vld [vmem:[#allocation7 + $0xa28] sm:$0xff]
    %v946 = vld [vmem:[#allocation7 + $0xa30] sm:$0xff]
    %v947 = vld [vmem:[#allocation7 + $0xa38] sm:$0xff]
    %v948 = vld [vmem:[#allocation7 + $0xa40] sm:$0xff]
    %v949 = vld [vmem:[#allocation7 + $0xa48] sm:$0xff]
    %v950 = vld [vmem:[#allocation7 + $0xa50] sm:$0xff]
    %v951 = vld [vmem:[#allocation7 + $0xa58] sm:$0xff]
    %v952 = vld [vmem:[#allocation7 + $0xa60] sm:$0xff]
    %v953 = vld [vmem:[#allocation7 + $0xa68] sm:$0xff]
    %v954 = vld [vmem:[#allocation7 + $0xa70] sm:$0xff]
    %v955 = vld [vmem:[#allocation7 + $0xa78] sm:$0xff]
    %v956 = vld [vmem:[#allocation7 + $0xa80] sm:$0xff]
    %v957 = vld [vmem:[#allocation7 + $0xa88] sm:$0xff]
    %v958 = vld [vmem:[#allocation7 + $0xa90] sm:$0xff]
    %v959 = vld [vmem:[#allocation7 + $0xa98] sm:$0xff]
    %v960 = vld [vmem:[#allocation7 + $0xaa0] sm:$0xff]
    %v961 = vld [vmem:[#allocation7 + $0xaa8] sm:$0xff]
    %v962 = vld [vmem:[#allocation7 + $0xab0] sm:$0xff]
    %v963 = vld [vmem:[#allocation7 + $0xab8] sm:$0xff]
    %v964 = vld [vmem:[#allocation7 + $0xac0] sm:$0xff]
    %v965 = vld [vmem:[#allocation7 + $0xac8] sm:$0xff]
    %v966 = vld [vmem:[#allocation7 + $0xad0] sm:$0xff]
    %v967 = vld [vmem:[#allocation7 + $0xad8] sm:$0xff]
    %v968 = vld [vmem:[#allocation7 + $0xae0] sm:$0xff]
    %v969 = vld [vmem:[#allocation7 + $0xae8] sm:$0xff]
    %v970 = vld [vmem:[#allocation7 + $0xaf0] sm:$0xff]
    %v971 = vld [vmem:[#allocation7 + $0xaf8] sm:$0xff]
    %v972 = vld [vmem:[#allocation7 + $0xb00] sm:$0xff]
    %v973 = vld [vmem:[#allocation7 + $0xb08] sm:$0xff]
    %v974 = vld [vmem:[#allocation7 + $0xb10] sm:$0xff]
    %v975 = vld [vmem:[#allocation7 + $0xb18] sm:$0xff]
    %v976 = vld [vmem:[#allocation7 + $0xb20] sm:$0xff]
    %v977 = vld [vmem:[#allocation7 + $0xb28] sm:$0xff]
    %v978 = vld [vmem:[#allocation7 + $0xb30] sm:$0xff]
    %v979 = vld [vmem:[#allocation7 + $0xb38] sm:$0xff]
    %v980 = vld [vmem:[#allocation7 + $0xb40] sm:$0xff]
    %v981 = vld [vmem:[#allocation7 + $0xb48] sm:$0xff]
    %v982 = vld [vmem:[#allocation7 + $0xb50] sm:$0xff]
    %v983 = vld [vmem:[#allocation7 + $0xb58] sm:$0xff]
    %v984 = vld [vmem:[#allocation7 + $0xb60] sm:$0xff]
    %v985 = vld [vmem:[#allocation7 + $0xb68] sm:$0xff]
    %v986 = vld [vmem:[#allocation7 + $0xb70] sm:$0xff]
    %v987 = vld [vmem:[#allocation7 + $0xb78] sm:$0xff]
    %v988 = vld [vmem:[#allocation7 + $0xb80] sm:$0xff]
    %v989 = vld [vmem:[#allocation7 + $0xb88] sm:$0xff]
    %v990 = vld [vmem:[#allocation7 + $0xb90] sm:$0xff]
    %v991 = vld [vmem:[#allocation7 + $0xb98] sm:$0xff]
    %v992 = vld [vmem:[#allocation7 + $0xba0] sm:$0xff]
    %v993 = vld [vmem:[#allocation7 + $0xba8] sm:$0xff]
    %v994 = vld [vmem:[#allocation7 + $0xbb0] sm:$0xff]
    %v995 = vld [vmem:[#allocation7 + $0xbb8] sm:$0xff]
    %v996 = vld [vmem:[#allocation7 + $0xbc0] sm:$0xff]
    %v997 = vld [vmem:[#allocation7 + $0xbc8] sm:$0xff]
    %v998 = vld [vmem:[#allocation7 + $0xbd0] sm:$0xff]
    %v999 = vld [vmem:[#allocation7 + $0xbd8] sm:$0xff]
    %v1000 = vld [vmem:[#allocation7 + $0xbe0] sm:$0xff]
    %v1001 = vld [vmem:[#allocation7 + $0xbe8] sm:$0xff]
    %v1002 = vld [vmem:[#allocation7 + $0xbf0] sm:$0xff]
    %v1003 = vld [vmem:[#allocation7 + $0xbf8] sm:$0xff]
    %v1004 = vld [vmem:[#allocation7 + $0xc00] sm:$0xff]
    %v1005 = vld [vmem:[#allocation7 + $0xc08] sm:$0xff]
    %v1006 = vld [vmem:[#allocation7 + $0xc10] sm:$0xff]
    %v1007 = vld [vmem:[#allocation7 + $0xc18] sm:$0xff]
    %v1008 = vld [vmem:[#allocation7 + $0xc20] sm:$0xff]
    %v1009 = vld [vmem:[#allocation7 + $0xc28] sm:$0xff]
    %v1010 = vld [vmem:[#allocation7 + $0xc30] sm:$0xff]
    %v1011 = vld [vmem:[#allocation7 + $0xc38] sm:$0xff]
    %v1012 = vld [vmem:[#allocation7 + $0xc40] sm:$0xff]
    %v1013 = vld [vmem:[#allocation7 + $0xc48] sm:$0xff]
    %v1014 = vld [vmem:[#allocation7 + $0xc50] sm:$0xff]
    %v1015 = vld [vmem:[#allocation7 + $0xc58] sm:$0xff]
    %v1016 = vld [vmem:[#allocation7 + $0xc60] sm:$0xff]
    %v1017 = vld [vmem:[#allocation7 + $0xc68] sm:$0xff]
    %v1018 = vld [vmem:[#allocation7 + $0xc70] sm:$0xff]
    %v1019 = vld [vmem:[#allocation7 + $0xc78] sm:$0xff]
    %v1020 = vld [vmem:[#allocation7 + $0xc80] sm:$0xff]
    %v1021 = vld [vmem:[#allocation7 + $0xc88] sm:$0xff]
    %v1022 = vld [vmem:[#allocation7 + $0xc90] sm:$0xff]
    %v1023 = vld [vmem:[#allocation7 + $0xc98] sm:$0xff]
    %v1024 = vld [vmem:[#allocation7 + $0xca0] sm:$0xff]
    %v1025 = vld [vmem:[#allocation7 + $0xca8] sm:$0xff]
    %v1026 = vld [vmem:[#allocation7 + $0xcb0] sm:$0xff]
    %v1027 = vld [vmem:[#allocation7 + $0xcb8] sm:$0xff]
    %v1028 = vld [vmem:[#allocation7 + $0xcc0] sm:$0xff]
    %v1029 = vld [vmem:[#allocation7 + $0xcc8] sm:$0xff]
    %v1030 = vld [vmem:[#allocation7 + $0xcd0] sm:$0xff]
    %v1031 = vld [vmem:[#allocation7 + $0xcd8] sm:$0xff]
    %v1032 = vld [vmem:[#allocation7 + $0xce0] sm:$0xff]
    %v1033 = vld [vmem:[#allocation7 + $0xce8] sm:$0xff]
    %v1034 = vld [vmem:[#allocation7 + $0xcf0] sm:$0xff]
    %v1035 = vld [vmem:[#allocation7 + $0xcf8] sm:$0xff]
    %v1036 = vld [vmem:[#allocation7 + $0xd00] sm:$0xff]
    %v1037 = vld [vmem:[#allocation7 + $0xd08] sm:$0xff]
    %v1038 = vld [vmem:[#allocation7 + $0xd10] sm:$0xff]
    %v1039 = vld [vmem:[#allocation7 + $0xd18] sm:$0xff]
    %v1040 = vld [vmem:[#allocation7 + $0xd20] sm:$0xff]
    %v1041 = vld [vmem:[#allocation7 + $0xd28] sm:$0xff]
    %v1042 = vld [vmem:[#allocation7 + $0xd30] sm:$0xff]
    %v1043 = vld [vmem:[#allocation7 + $0xd38] sm:$0xff]
    %v1044 = vld [vmem:[#allocation7 + $0xd40] sm:$0xff]
    %v1045 = vld [vmem:[#allocation7 + $0xd48] sm:$0xff]
    %v1046 = vld [vmem:[#allocation7 + $0xd50] sm:$0xff]
    %v1047 = vld [vmem:[#allocation7 + $0xd58] sm:$0xff]
    %v1048 = vld [vmem:[#allocation7 + $0xd60] sm:$0xff]
    %v1049 = vld [vmem:[#allocation7 + $0xd68] sm:$0xff]
    %v1050 = vld [vmem:[#allocation7 + $0xd70] sm:$0xff]
    %v1051 = vld [vmem:[#allocation7 + $0xd78] sm:$0xff]
    %v1052 = vld [vmem:[#allocation7 + $0xd80] sm:$0xff]
    %v1053 = vld [vmem:[#allocation7 + $0xd88] sm:$0xff]
    %v1054 = vld [vmem:[#allocation7 + $0xd90] sm:$0xff]
    %v1055 = vld [vmem:[#allocation7 + $0xd98] sm:$0xff]
    %v1056 = vld [vmem:[#allocation7 + $0xda0] sm:$0xff]
    %v1057 = vld [vmem:[#allocation7 + $0xda8] sm:$0xff]
    %v1058 = vld [vmem:[#allocation7 + $0xdb0] sm:$0xff]
    %v1059 = vld [vmem:[#allocation7 + $0xdb8] sm:$0xff]
    %v1060 = vld [vmem:[#allocation7 + $0xdc0] sm:$0xff]
    %v1061 = vld [vmem:[#allocation7 + $0xdc8] sm:$0xff]
    %v1062 = vld [vmem:[#allocation7 + $0xdd0] sm:$0xff]
    %v1063 = vld [vmem:[#allocation7 + $0xdd8] sm:$0xff]
    %v1064 = vld [vmem:[#allocation7 + $0xde0] sm:$0xff]
    %v1065 = vld [vmem:[#allocation7 + $0xde8] sm:$0xff]
    %v1066 = vld [vmem:[#allocation7 + $0xdf0] sm:$0xff]
    %v1067 = vld [vmem:[#allocation7 + $0xdf8] sm:$0xff]
    %v1068 = vld [vmem:[#allocation7 + $0xe00] sm:$0xff]
    %v1069 = vld [vmem:[#allocation7 + $0xe08] sm:$0xff]
    %v1070 = vld [vmem:[#allocation7 + $0xe10] sm:$0xff]
    %v1071 = vld [vmem:[#allocation7 + $0xe18] sm:$0xff]
    %v1072 = vld [vmem:[#allocation7 + $0xe20] sm:$0xff]
    %v1073 = vld [vmem:[#allocation7 + $0xe28] sm:$0xff]
    %v1074 = vld [vmem:[#allocation7 + $0xe30] sm:$0xff]
    %v1075 = vld [vmem:[#allocation7 + $0xe38] sm:$0xff]
    %v1076 = vld [vmem:[#allocation7 + $0xe40] sm:$0xff]
    %v1077 = vld [vmem:[#allocation7 + $0xe48] sm:$0xff]
    %v1078 = vld [vmem:[#allocation7 + $0xe50] sm:$0xff]
    %v1079 = vld [vmem:[#allocation7 + $0xe58] sm:$0xff]
    %v1080 = vld [vmem:[#allocation7 + $0xe60] sm:$0xff]
    %v1081 = vld [vmem:[#allocation7 + $0xe68] sm:$0xff]
    %v1082 = vld [vmem:[#allocation7 + $0xe70] sm:$0xff]
    %v1083 = vld [vmem:[#allocation7 + $0xe78] sm:$0xff]
    %v1084 = vld [vmem:[#allocation7 + $0xe80] sm:$0xff]
    %v1085 = vld [vmem:[#allocation7 + $0xe88] sm:$0xff]
    %v1086 = vld [vmem:[#allocation7 + $0xe90] sm:$0xff]
    %v1087 = vld [vmem:[#allocation7 + $0xe98] sm:$0xff]
    %v1088 = vld [vmem:[#allocation7 + $0xea0] sm:$0xff]
    %v1089 = vld [vmem:[#allocation7 + $0xea8] sm:$0xff]
    %v1090 = vld [vmem:[#allocation7 + $0xeb0] sm:$0xff]
    %v1091 = vld [vmem:[#allocation7 + $0xeb8] sm:$0xff]
    %v1092 = vld [vmem:[#allocation7 + $0xec0] sm:$0xff]
    %v1093 = vld [vmem:[#allocation7 + $0xec8] sm:$0xff]
    %v1094 = vld [vmem:[#allocation7 + $0xed0] sm:$0xff]
    %v1095 = vld [vmem:[#allocation7 + $0xed8] sm:$0xff]
    %v1096 = vld [vmem:[#allocation7 + $0xee0] sm:$0xff]
    %v1097 = vld [vmem:[#allocation7 + $0xee8] sm:$0xff]
    %v1098 = vld [vmem:[#allocation7 + $0xef0] sm:$0xff]
    %v1099 = vld [vmem:[#allocation7 + $0xef8] sm:$0xff]
    %v1100 = vld [vmem:[#allocation7 + $0xf00] sm:$0xff]
    %v1101 = vld [vmem:[#allocation7 + $0xf08] sm:$0xff]
    %v1102 = vld [vmem:[#allocation7 + $0xf10] sm:$0xff]
    %v1103 = vld [vmem:[#allocation7 + $0xf18] sm:$0xff]
    %v1104 = vld [vmem:[#allocation7 + $0xf20] sm:$0xff]
    %v1105 = vld [vmem:[#allocation7 + $0xf28] sm:$0xff]
    %v1106 = vld [vmem:[#allocation7 + $0xf30] sm:$0xff]
    %v1107 = vld [vmem:[#allocation7 + $0xf38] sm:$0xff]
    %v1108 = vld [vmem:[#allocation7 + $0xf40] sm:$0xff]
    %v1109 = vld [vmem:[#allocation7 + $0xf48] sm:$0xff]
    %v1110 = vld [vmem:[#allocation7 + $0xf50] sm:$0xff]
    %v1111 = vld [vmem:[#allocation7 + $0xf58] sm:$0xff]
    %v1112 = vld [vmem:[#allocation7 + $0xf60] sm:$0xff]
    %v1113 = vld [vmem:[#allocation7 + $0xf68] sm:$0xff]
    %v1114 = vld [vmem:[#allocation7 + $0xf70] sm:$0xff]
    %v1115 = vld [vmem:[#allocation7 + $0xf78] sm:$0xff]
    %v1116 = vld [vmem:[#allocation7 + $0xf80] sm:$0xff]
    %v1117 = vld [vmem:[#allocation7 + $0xf88] sm:$0xff]
    %v1118 = vld [vmem:[#allocation7 + $0xf90] sm:$0xff]
    %v1119 = vld [vmem:[#allocation7 + $0xf98] sm:$0xff]
    %v1120 = vld [vmem:[#allocation7 + $0xfa0] sm:$0xff]
    %v1121 = vld [vmem:[#allocation7 + $0xfa8] sm:$0xff]
    %v1122 = vld [vmem:[#allocation7 + $0xfb0] sm:$0xff]
    %v1123 = vld [vmem:[#allocation7 + $0xfb8] sm:$0xff]
    %v1124 = vld [vmem:[#allocation7 + $0xfc0] sm:$0xff]
    %v1125 = vld [vmem:[#allocation7 + $0xfc8] sm:$0xff]
    %v1126 = vld [vmem:[#allocation7 + $0xfd0] sm:$0xff]
    %v1127 = vld [vmem:[#allocation7 + $0xfd8] sm:$0xff]
    %v1128 = vld [vmem:[#allocation7 + $0xfe0] sm:$0xff]
    %v1129 = vld [vmem:[#allocation7 + $0xfe8] sm:$0xff]
    %v1130 = vld [vmem:[#allocation7 + $0xff0] sm:$0xff]
    %v1131 = vld [vmem:[#allocation7 + $0xff8] sm:$0xff]
    %v1132 = vld [vmem:[#allocation8] sm:$0xf]
    %v1134 = vlaneseq
    %v1135 = vshrl.u32 %v1134, 7
    %v1136 = vsub.s32 0, %v1135
    %v1137 = vrot.slane %v1132, %v1136
    %v1138 = vlaneseq
    %v1139 = vshrl.u32 %v1138, 7
    %v1140 = vsub.s32 1, %v1139
    %v1141 = vrot.slane %v1132, %v1140
    %v1142 = vlaneseq
    %v1143 = vshrl.u32 %v1142, 7
    %v1144 = vsub.s32 2, %v1143
    %v1145 = vrot.slane %v1132, %v1144
    %v1146 = vlaneseq
    %v1147 = vshrl.u32 %v1146, 7
    %v1148 = vsub.s32 3, %v1147
    %v1149 = vrot.slane %v1132, %v1148
    %1154 = vmatprep.subr.mxu0 %v681
    %1155 = vmatpush1.msra.mxu0 %v680
    %1156 = vmatprep.subr.mxu0 %v677
    %1157 = vmatpush1.msra.mxu0 %v676
    %1158 = vmatprep.subr.mxu0 %v673
    %1159 = vmatpush1.msra.mxu0 %v672
    %1160 = vmatprep.subr.mxu0 %v669
    %1161 = vmatpush1.msra.mxu0 %v668
    %1162 = vmatprep.subr.mxu0 %v665
    %1163 = vmatpush1.msra.mxu0 %v664
    %1164 = vmatprep.subr.mxu0 %v661
    %1165 = vmatpush1.msra.mxu0 %v660
    %1166 = vmatprep.subr.mxu0 %v657
    %1167 = vmatpush1.msra.mxu0 %v656
    %1168 = vmatprep.subr.mxu0 %v653
    %1169 = vmatpush1.msra.mxu0 %v652
    %1170 = vmatprep.subr.mxu0 %v649
    %1171 = vmatpush1.msra.mxu0 %v648
    %1172 = vmatprep.subr.mxu0 %v645
    %1173 = vmatpush1.msra.mxu0 %v644
    %1174 = vmatprep.subr.mxu0 %v641
    %1175 = vmatpush1.msra.mxu0 %v640
    %1176 = vmatprep.subr.mxu0 %v637
    %1177 = vmatpush1.msra.mxu0 %v636
    %1178 = vmatprep.subr.mxu0 %v633
    %1179 = vmatpush1.msra.mxu0 %v632
    %1180 = vmatprep.subr.mxu0 %v629
    %1181 = vmatpush1.msra.mxu0 %v628
    %1182 = vmatprep.subr.mxu0 %v625
    %1183 = vmatpush1.msra.mxu0 %v624
    %1184 = vmatprep.subr.mxu0 %v621
    %1185 = vmatpush1.msra.mxu0 %v620
    %1186 = vmatprep.subr.mxu0 %v745
    %1187 = vmatpush2.msra.mxu0 %v744
    %1188 = vmatprep.subr.mxu0 %v741
    %1189 = vmatpush2.msra.mxu0 %v740
    %1190 = vmatprep.subr.mxu0 %v737
    %1191 = vmatpush2.msra.mxu0 %v736
    %1192 = vmatprep.subr.mxu0 %v733
    %1193 = vmatpush2.msra.mxu0 %v732
    %1194 = vmatprep.subr.mxu0 %v729
    %1195 = vmatpush2.msra.mxu0 %v728
    %1196 = vmatprep.subr.mxu0 %v725
    %1197 = vmatpush2.msra.mxu0 %v724
    %1198 = vmatprep.subr.mxu0 %v721
    %1199 = vmatpush2.msra.mxu0 %v720
    %1200 = vmatprep.subr.mxu0 %v717
    %1201 = vmatpush2.msra.mxu0 %v716
    %1202 = vmatprep.subr.mxu0 %v713
    %1203 = vmatpush2.msra.mxu0 %v712
    %1204 = vmatprep.subr.mxu0 %v709
    %1205 = vmatpush2.msra.mxu0 %v708
    %1206 = vmatprep.subr.mxu0 %v705
    %1207 = vmatpush2.msra.mxu0 %v704
    %1208 = vmatprep.subr.mxu0 %v701
    %1209 = vmatpush2.msra.mxu0 %v700
    %1210 = vmatprep.subr.mxu0 %v697
    %1211 = vmatpush2.msra.mxu0 %v696
    %1212 = vmatprep.subr.mxu0 %v693
    %1213 = vmatpush2.msra.mxu0 %v692
    %1214 = vmatprep.subr.mxu0 %v689
    %1215 = vmatpush2.msra.mxu0 %v688
    %1216 = vmatprep.subr.mxu0 %v685
    %1217 = vmatpush2.msra.mxu0 %v684
    %1218 = vmatprep.mubr.f32.mxu0 %v613
    %1219 = vmatmul.mubr.f32.gmra.mxu0 %v612
    %v1220 = vpop.f32.mrf.mxu0
    %v1221 = vadd.f32 %v1137, %v1220
    %v1222 = vpop.f32.mrf.mxu0
    %v1223 = vadd.f32 %v1141, %v1222
    %1224 = vdwg.mxu0
    %1225 = vmatprep.subr.mxu0 %v809
    %1226 = vmatpush1.msra.mxu0 %v808
    %1227 = vmatprep.subr.mxu0 %v805
    %1228 = vmatpush1.msra.mxu0 %v804
    %1229 = vmatprep.subr.mxu0 %v801
    %1230 = vmatpush1.msra.mxu0 %v800
    %1231 = vmatprep.subr.mxu0 %v797
    %1232 = vmatpush1.msra.mxu0 %v796
    %1233 = vmatprep.subr.mxu0 %v793
    %1234 = vmatpush1.msra.mxu0 %v792
    %1235 = vmatprep.subr.mxu0 %v789
    %1236 = vmatpush1.msra.mxu0 %v788
    %1237 = vmatprep.subr.mxu0 %v785
    %1238 = vmatpush1.msra.mxu0 %v784
    %1239 = vmatprep.subr.mxu0 %v781
    %1240 = vmatpush1.msra.mxu0 %v780
    %1241 = vmatprep.subr.mxu0 %v777
    %1242 = vmatpush1.msra.mxu0 %v776
    %1243 = vmatprep.subr.mxu0 %v773
    %1244 = vmatpush1.msra.mxu0 %v772
    %1245 = vmatprep.subr.mxu0 %v769
    %1246 = vmatpush1.msra.mxu0 %v768
    %1247 = vmatprep.subr.mxu0 %v765
    %1248 = vmatpush1.msra.mxu0 %v764
    %1249 = vmatprep.subr.mxu0 %v761
    %1250 = vmatpush1.msra.mxu0 %v760
    %1251 = vmatprep.subr.mxu0 %v757
    %1252 = vmatpush1.msra.mxu0 %v756
    %1253 = vmatprep.subr.mxu0 %v753
    %1254 = vmatpush1.msra.mxu0 %v752
    %1255 = vmatprep.subr.mxu0 %v749
    %1256 = vmatpush1.msra.mxu0 %v748
    %1257 = vmatprep.subr.mxu0 %v873
    %1258 = vmatpush2.msra.mxu0 %v872
    %1259 = vmatprep.subr.mxu0 %v869
    %1260 = vmatpush2.msra.mxu0 %v868
    %1261 = vmatprep.subr.mxu0 %v865
    %1262 = vmatpush2.msra.mxu0 %v864
    %1263 = vmatprep.subr.mxu0 %v861
    %1264 = vmatpush2.msra.mxu0 %v860
    %1265 = vmatprep.subr.mxu0 %v857
    %1266 = vmatpush2.msra.mxu0 %v856
    %1267 = vmatprep.subr.mxu0 %v853
    %1268 = vmatpush2.msra.mxu0 %v852
    %1269 = vmatprep.subr.mxu0 %v849
    %1270 = vmatpush2.msra.mxu0 %v848
    %1271 = vmatprep.subr.mxu0 %v845
    %1272 = vmatpush2.msra.mxu0 %v844
    %1273 = vmatprep.subr.mxu0 %v841
    %1274 = vmatpush2.msra.mxu0 %v840
    %1275 = vmatprep.subr.mxu0 %v837
    %1276 = vmatpush2.msra.mxu0 %v836
    %1277 = vmatprep.subr.mxu0 %v833
    %1278 = vmatpush2.msra.mxu0 %v832
    %1279 = vmatprep.subr.mxu0 %v829
    %1280 = vmatpush2.msra.mxu0 %v828
    %1281 = vmatprep.subr.mxu0 %v825
    %1282 = vmatpush2.msra.mxu0 %v824
    %1283 = vmatprep.subr.mxu0 %v821
    %1284 = vmatpush2.msra.mxu0 %v820
    %1285 = vmatprep.subr.mxu0 %v817
    %1286 = vmatpush2.msra.mxu0 %v816
    %1287 = vmatprep.subr.mxu0 %v813
    %1288 = vmatpush2.msra.mxu0 %v812
    %1289 = vmatprep.mubr.f32.mxu0 %v615
    %1290 = vmatmul.mubr.f32.gmra.mxu0 %v614
    %v1291 = vpop.f32.mrf.mxu0
    %v1292 = vadd.f32 %v1221, %v1291
    %v1293 = vpop.f32.mrf.mxu0
    %v1294 = vadd.f32 %v1223, %v1293
    %1295 = vdwg.mxu0
    %1296 = vmatprep.subr.mxu0 %v937
    %1297 = vmatpush1.msra.mxu0 %v936
    %1298 = vmatprep.subr.mxu0 %v933
    %1299 = vmatpush1.msra.mxu0 %v932
    %1300 = vmatprep.subr.mxu0 %v929
    %1301 = vmatpush1.msra.mxu0 %v928
    %1302 = vmatprep.subr.mxu0 %v925
    %1303 = vmatpush1.msra.mxu0 %v924
    %1304 = vmatprep.subr.mxu0 %v921
    %1305 = vmatpush1.msra.mxu0 %v920
    %1306 = vmatprep.subr.mxu0 %v917
    %1307 = vmatpush1.msra.mxu0 %v916
    %1308 = vmatprep.subr.mxu0 %v913
    %1309 = vmatpush1.msra.mxu0 %v912
    %1310 = vmatprep.subr.mxu0 %v909
    %1311 = vmatpush1.msra.mxu0 %v908
    %1312 = vmatprep.subr.mxu0 %v905
    %1313 = vmatpush1.msra.mxu0 %v904
    %1314 = vmatprep.subr.mxu0 %v901
    %1315 = vmatpush1.msra.mxu0 %v900
    %1316 = vmatprep.subr.mxu0 %v897
    %1317 = vmatpush1.msra.mxu0 %v896
    %1318 = vmatprep.subr.mxu0 %v893
    %1319 = vmatpush1.msra.mxu0 %v892
    %1320 = vmatprep.subr.mxu0 %v889
    %1321 = vmatpush1.msra.mxu0 %v888
    %1322 = vmatprep.subr.mxu0 %v885
    %1323 = vmatpush1.msra.mxu0 %v884
    %1324 = vmatprep.subr.mxu0 %v881
    %1325 = vmatpush1.msra.mxu0 %v880
    %1326 = vmatprep.subr.mxu0 %v877
    %1327 = vmatpush1.msra.mxu0 %v876
    %1328 = vmatprep.subr.mxu0 %v1001
    %1329 = vmatpush2.msra.mxu0 %v1000
    %1330 = vmatprep.subr.mxu0 %v997
    %1331 = vmatpush2.msra.mxu0 %v996
    %1332 = vmatprep.subr.mxu0 %v993
    %1333 = vmatpush2.msra.mxu0 %v992
    %1334 = vmatprep.subr.mxu0 %v989
    %1335 = vmatpush2.msra.mxu0 %v988
    %1336 = vmatprep.subr.mxu0 %v985
    %1337 = vmatpush2.msra.mxu0 %v984
    %1338 = vmatprep.subr.mxu0 %v981
    %1339 = vmatpush2.msra.mxu0 %v980
    %1340 = vmatprep.subr.mxu0 %v977
    %1341 = vmatpush2.msra.mxu0 %v976
    %1342 = vmatprep.subr.mxu0 %v973
    %1343 = vmatpush2.msra.mxu0 %v972
    %1344 = vmatprep.subr.mxu0 %v969
    %1345 = vmatpush2.msra.mxu0 %v968
    %1346 = vmatprep.subr.mxu0 %v965
    %1347 = vmatpush2.msra.mxu0 %v964
    %1348 = vmatprep.subr.mxu0 %v961
    %1349 = vmatpush2.msra.mxu0 %v960
    %1350 = vmatprep.subr.mxu0 %v957
    %1351 = vmatpush2.msra.mxu0 %v956
    %1352 = vmatprep.subr.mxu0 %v953
    %1353 = vmatpush2.msra.mxu0 %v952
    %1354 = vmatprep.subr.mxu0 %v949
    %1355 = vmatpush2.msra.mxu0 %v948
    %1356 = vmatprep.subr.mxu0 %v945
    %1357 = vmatpush2.msra.mxu0 %v944
    %1358 = vmatprep.subr.mxu0 %v941
    %1359 = vmatpush2.msra.mxu0 %v940
    %1360 = vmatprep.mubr.f32.mxu0 %v617
    %1361 = vmatmul.mubr.f32.gmra.mxu0 %v616
    %v1362 = vpop.f32.mrf.mxu0
    %v1363 = vadd.f32 %v1292, %v1362
    %v1364 = vpop.f32.mrf.mxu0
    %v1365 = vadd.f32 %v1294, %v1364
    %1366 = vdwg.mxu0
    %1367 = vmatprep.subr.mxu0 %v1065
    %1368 = vmatpush1.msra.mxu0 %v1064
    %1369 = vmatprep.subr.mxu0 %v1061
    %1370 = vmatpush1.msra.mxu0 %v1060
    %1371 = vmatprep.subr.mxu0 %v1057
    %1372 = vmatpush1.msra.mxu0 %v1056
    %1373 = vmatprep.subr.mxu0 %v1053
    %1374 = vmatpush1.msra.mxu0 %v1052
    %1375 = vmatprep.subr.mxu0 %v1049
    %1376 = vmatpush1.msra.mxu0 %v1048
    %1377 = vmatprep.subr.mxu0 %v1045
    %1378 = vmatpush1.msra.mxu0 %v1044
    %1379 = vmatprep.subr.mxu0 %v1041
    %1380 = vmatpush1.msra.mxu0 %v1040
    %1381 = vmatprep.subr.mxu0 %v1037
    %1382 = vmatpush1.msra.mxu0 %v1036
    %1383 = vmatprep.subr.mxu0 %v1033
    %1384 = vmatpush1.msra.mxu0 %v1032
    %1385 = vmatprep.subr.mxu0 %v1029
    %1386 = vmatpush1.msra.mxu0 %v1028
    %1387 = vmatprep.subr.mxu0 %v1025
    %1388 = vmatpush1.msra.mxu0 %v1024
    %1389 = vmatprep.subr.mxu0 %v1021
    %1390 = vmatpush1.msra.mxu0 %v1020
    %1391 = vmatprep.subr.mxu0 %v1017
    %1392 = vmatpush1.msra.mxu0 %v1016
    %1393 = vmatprep.subr.mxu0 %v1013
    %1394 = vmatpush1.msra.mxu0 %v1012
    %1395 = vmatprep.subr.mxu0 %v1009
    %1396 = vmatpush1.msra.mxu0 %v1008
    %1397 = vmatprep.subr.mxu0 %v1005
    %1398 = vmatpush1.msra.mxu0 %v1004
    %1399 = vmatprep.subr.mxu0 %v1129
    %1400 = vmatpush2.msra.mxu0 %v1128
    %1401 = vmatprep.subr.mxu0 %v1125
    %1402 = vmatpush2.msra.mxu0 %v1124
    %1403 = vmatprep.subr.mxu0 %v1121
    %1404 = vmatpush2.msra.mxu0 %v1120
    %1405 = vmatprep.subr.mxu0 %v1117
    %1406 = vmatpush2.msra.mxu0 %v1116
    %1407 = vmatprep.subr.mxu0 %v1113
    %1408 = vmatpush2.msra.mxu0 %v1112
    %1409 = vmatprep.subr.mxu0 %v1109
    %1410 = vmatpush2.msra.mxu0 %v1108
    %1411 = vmatprep.subr.mxu0 %v1105
    %1412 = vmatpush2.msra.mxu0 %v1104
    %1413 = vmatprep.subr.mxu0 %v1101
    %1414 = vmatpush2.msra.mxu0 %v1100
    %1415 = vmatprep.subr.mxu0 %v1097
    %1416 = vmatpush2.msra.mxu0 %v1096
    %1417 = vmatprep.subr.mxu0 %v1093
    %1418 = vmatpush2.msra.mxu0 %v1092
    %1419 = vmatprep.subr.mxu0 %v1089
    %1420 = vmatpush2.msra.mxu0 %v1088
    %1421 = vmatprep.subr.mxu0 %v1085
    %1422 = vmatpush2.msra.mxu0 %v1084
    %1423 = vmatprep.subr.mxu0 %v1081
    %1424 = vmatpush2.msra.mxu0 %v1080
    %1425 = vmatprep.subr.mxu0 %v1077
    %1426 = vmatpush2.msra.mxu0 %v1076
    %1427 = vmatprep.subr.mxu0 %v1073
    %1428 = vmatpush2.msra.mxu0 %v1072
    %1429 = vmatprep.subr.mxu0 %v1069
    %1430 = vmatpush2.msra.mxu0 %v1068
    %1431 = vmatprep.mubr.f32.mxu0 %v619
    %1432 = vmatmul.mubr.f32.gmra.mxu0 %v618
    %v1433 = vpop.f32.mrf.mxu0
    %v1434 = vadd.f32 %v1363, %v1433
    %v1435 = vpop.f32.mrf.mxu0
    %v1436 = vadd.f32 %v1365, %v1435
    %1437 = vdwg.mxu0
    %1438 = vmatprep.subr.mxu0 %v683
    %1439 = vmatpush1.msra.mxu0 %v682
    %1440 = vmatprep.subr.mxu0 %v679
    %1441 = vmatpush1.msra.mxu0 %v678
    %1442 = vmatprep.subr.mxu0 %v675
    %1443 = vmatpush1.msra.mxu0 %v674
    %1444 = vmatprep.subr.mxu0 %v671
    %1445 = vmatpush1.msra.mxu0 %v670
    %1446 = vmatprep.subr.mxu0 %v667
    %1447 = vmatpush1.msra.mxu0 %v666
    %1448 = vmatprep.subr.mxu0 %v663
    %1449 = vmatpush1.msra.mxu0 %v662
    %1450 = vmatprep.subr.mxu0 %v659
    %1451 = vmatpush1.msra.mxu0 %v658
    %1452 = vmatprep.subr.mxu0 %v655
    %1453 = vmatpush1.msra.mxu0 %v654
    %1454 = vmatprep.subr.mxu0 %v651
    %1455 = vmatpush1.msra.mxu0 %v650
    %1456 = vmatprep.subr.mxu0 %v647
    %1457 = vmatpush1.msra.mxu0 %v646
    %1458 = vmatprep.subr.mxu0 %v643
    %1459 = vmatpush1.msra.mxu0 %v642
    %1460 = vmatprep.subr.mxu0 %v639
    %1461 = vmatpush1.msra.mxu0 %v638
    %1462 = vmatprep.subr.mxu0 %v635
    %1463 = vmatpush1.msra.mxu0 %v634
    %1464 = vmatprep.subr.mxu0 %v631
    %1465 = vmatpush1.msra.mxu0 %v630
    %1466 = vmatprep.subr.mxu0 %v627
    %1467 = vmatpush1.msra.mxu0 %v626
    %1468 = vmatprep.subr.mxu0 %v623
    %1469 = vmatpush1.msra.mxu0 %v622
    %1470 = vmatprep.subr.mxu0 %v747
    %1471 = vmatpush2.msra.mxu0 %v746
    %1472 = vmatprep.subr.mxu0 %v743
    %1473 = vmatpush2.msra.mxu0 %v742
    %1474 = vmatprep.subr.mxu0 %v739
    %1475 = vmatpush2.msra.mxu0 %v738
    %1476 = vmatprep.subr.mxu0 %v735
    %1477 = vmatpush2.msra.mxu0 %v734
    %1478 = vmatprep.subr.mxu0 %v731
    %1479 = vmatpush2.msra.mxu0 %v730
    %1480 = vmatprep.subr.mxu0 %v727
    %1481 = vmatpush2.msra.mxu0 %v726
    %1482 = vmatprep.subr.mxu0 %v723
    %1483 = vmatpush2.msra.mxu0 %v722
    %1484 = vmatprep.subr.mxu0 %v719
    %1485 = vmatpush2.msra.mxu0 %v718
    %1486 = vmatprep.subr.mxu0 %v715
    %1487 = vmatpush2.msra.mxu0 %v714
    %1488 = vmatprep.subr.mxu0 %v711
    %1489 = vmatpush2.msra.mxu0 %v710
    %1490 = vmatprep.subr.mxu0 %v707
    %1491 = vmatpush2.msra.mxu0 %v706
    %1492 = vmatprep.subr.mxu0 %v703
    %1493 = vmatpush2.msra.mxu0 %v702
    %1494 = vmatprep.subr.mxu0 %v699
    %1495 = vmatpush2.msra.mxu0 %v698
    %1496 = vmatprep.subr.mxu0 %v695
    %1497 = vmatpush2.msra.mxu0 %v694
    %1498 = vmatprep.subr.mxu0 %v691
    %1499 = vmatpush2.msra.mxu0 %v690
    %1500 = vmatprep.subr.mxu0 %v687
    %1501 = vmatpush2.msra.mxu0 %v686
    %1502 = vmatprep.mubr.f32.mxu0 %v613
    %1503 = vmatmul.mubr.f32.gmra.mxu0 %v612
    %v1504 = vpop.f32.mrf.mxu0
    %v1505 = vadd.f32 %v1145, %v1504
    %v1506 = vpop.f32.mrf.mxu0
    %v1507 = vadd.f32 %v1149, %v1506
    %1508 = vdwg.mxu0
    %1509 = vmatprep.subr.mxu0 %v811
    %1510 = vmatpush1.msra.mxu0 %v810
    %1511 = vmatprep.subr.mxu0 %v807
    %1512 = vmatpush1.msra.mxu0 %v806
    %1513 = vmatprep.subr.mxu0 %v803
    %1514 = vmatpush1.msra.mxu0 %v802
    %1515 = vmatprep.subr.mxu0 %v799
    %1516 = vmatpush1.msra.mxu0 %v798
    %1517 = vmatprep.subr.mxu0 %v795
    %1518 = vmatpush1.msra.mxu0 %v794
    %1519 = vmatprep.subr.mxu0 %v791
    %1520 = vmatpush1.msra.mxu0 %v790
    %1521 = vmatprep.subr.mxu0 %v787
    %1522 = vmatpush1.msra.mxu0 %v786
    %1523 = vmatprep.subr.mxu0 %v783
    %1524 = vmatpush1.msra.mxu0 %v782
    %1525 = vmatprep.subr.mxu0 %v779
    %1526 = vmatpush1.msra.mxu0 %v778
    %1527 = vmatprep.subr.mxu0 %v775
    %1528 = vmatpush1.msra.mxu0 %v774
    %1529 = vmatprep.subr.mxu0 %v771
    %1530 = vmatpush1.msra.mxu0 %v770
    %1531 = vmatprep.subr.mxu0 %v767
    %1532 = vmatpush1.msra.mxu0 %v766
    %1533 = vmatprep.subr.mxu0 %v763
    %1534 = vmatpush1.msra.mxu0 %v762
    %1535 = vmatprep.subr.mxu0 %v759
    %1536 = vmatpush1.msra.mxu0 %v758
    %1537 = vmatprep.subr.mxu0 %v755
    %1538 = vmatpush1.msra.mxu0 %v754
    %1539 = vmatprep.subr.mxu0 %v751
    %1540 = vmatpush1.msra.mxu0 %v750
    %1541 = vmatprep.subr.mxu0 %v875
    %1542 = vmatpush2.msra.mxu0 %v874
    %1543 = vmatprep.subr.mxu0 %v871
    %1544 = vmatpush2.msra.mxu0 %v870
    %1545 = vmatprep.subr.mxu0 %v867
    %1546 = vmatpush2.msra.mxu0 %v866
    %1547 = vmatprep.subr.mxu0 %v863
    %1548 = vmatpush2.msra.mxu0 %v862
    %1549 = vmatprep.subr.mxu0 %v859
    %1550 = vmatpush2.msra.mxu0 %v858
    %1551 = vmatprep.subr.mxu0 %v855
    %1552 = vmatpush2.msra.mxu0 %v854
    %1553 = vmatprep.subr.mxu0 %v851
    %1554 = vmatpush2.msra.mxu0 %v850
    %1555 = vmatprep.subr.mxu0 %v847
    %1556 = vmatpush2.msra.mxu0 %v846
    %1557 = vmatprep.subr.mxu0 %v843
    %1558 = vmatpush2.msra.mxu0 %v842
    %1559 = vmatprep.subr.mxu0 %v839
    %1560 = vmatpush2.msra.mxu0 %v838
    %1561 = vmatprep.subr.mxu0 %v835
    %1562 = vmatpush2.msra.mxu0 %v834
    %1563 = vmatprep.subr.mxu0 %v831
    %1564 = vmatpush2.msra.mxu0 %v830
    %1565 = vmatprep.subr.mxu0 %v827
    %1566 = vmatpush2.msra.mxu0 %v826
    %1567 = vmatprep.subr.mxu0 %v823
    %1568 = vmatpush2.msra.mxu0 %v822
    %1569 = vmatprep.subr.mxu0 %v819
    %1570 = vmatpush2.msra.mxu0 %v818
    %1571 = vmatprep.subr.mxu0 %v815
    %1572 = vmatpush2.msra.mxu0 %v814
    %1573 = vmatprep.mubr.f32.mxu0 %v615
    %1574 = vmatmul.mubr.f32.gmra.mxu0 %v614
    %v1575 = vpop.f32.mrf.mxu0
    %v1576 = vadd.f32 %v1505, %v1575
    %v1577 = vpop.f32.mrf.mxu0
    %v1578 = vadd.f32 %v1507, %v1577
    %1579 = vdwg.mxu0
    %1580 = vmatprep.subr.mxu0 %v939
    %1581 = vmatpush1.msra.mxu0 %v938
    %1582 = vmatprep.subr.mxu0 %v935
    %1583 = vmatpush1.msra.mxu0 %v934
    %1584 = vmatprep.subr.mxu0 %v931
    %1585 = vmatpush1.msra.mxu0 %v930
    %1586 = vmatprep.subr.mxu0 %v927
    %1587 = vmatpush1.msra.mxu0 %v926
    %1588 = vmatprep.subr.mxu0 %v923
    %1589 = vmatpush1.msra.mxu0 %v922
    %1590 = vmatprep.subr.mxu0 %v919
    %1591 = vmatpush1.msra.mxu0 %v918
    %1592 = vmatprep.subr.mxu0 %v915
    %1593 = vmatpush1.msra.mxu0 %v914
    %1594 = vmatprep.subr.mxu0 %v911
    %1595 = vmatpush1.msra.mxu0 %v910
    %1596 = vmatprep.subr.mxu0 %v907
    %1597 = vmatpush1.msra.mxu0 %v906
    %1598 = vmatprep.subr.mxu0 %v903
    %1599 = vmatpush1.msra.mxu0 %v902
    %1600 = vmatprep.subr.mxu0 %v899
    %1601 = vmatpush1.msra.mxu0 %v898
    %1602 = vmatprep.subr.mxu0 %v895
    %1603 = vmatpush1.msra.mxu0 %v894
    %1604 = vmatprep.subr.mxu0 %v891
    %1605 = vmatpush1.msra.mxu0 %v890
    %1606 = vmatprep.subr.mxu0 %v887
    %1607 = vmatpush1.msra.mxu0 %v886
    %1608 = vmatprep.subr.mxu0 %v883
    %1609 = vmatpush1.msra.mxu0 %v882
    %1610 = vmatprep.subr.mxu0 %v879
    %1611 = vmatpush1.msra.mxu0 %v878
    %1612 = vmatprep.subr.mxu0 %v1003
    %1613 = vmatpush2.msra.mxu0 %v1002
    %1614 = vmatprep.subr.mxu0 %v999
    %1615 = vmatpush2.msra.mxu0 %v998
    %1616 = vmatprep.subr.mxu0 %v995
    %1617 = vmatpush2.msra.mxu0 %v994
    %1618 = vmatprep.subr.mxu0 %v991
    %1619 = vmatpush2.msra.mxu0 %v990
    %1620 = vmatprep.subr.mxu0 %v987
    %1621 = vmatpush2.msra.mxu0 %v986
    %1622 = vmatprep.subr.mxu0 %v983
    %1623 = vmatpush2.msra.mxu0 %v982
    %1624 = vmatprep.subr.mxu0 %v979
    %1625 = vmatpush2.msra.mxu0 %v978
    %1626 = vmatprep.subr.mxu0 %v975
    %1627 = vmatpush2.msra.mxu0 %v974
    %1628 = vmatprep.subr.mxu0 %v971
    %1629 = vmatpush2.msra.mxu0 %v970
    %1630 = vmatprep.subr.mxu0 %v967
    %1631 = vmatpush2.msra.mxu0 %v966
    %1632 = vmatprep.subr.mxu0 %v963
    %1633 = vmatpush2.msra.mxu0 %v962
    %1634 = vmatprep.subr.mxu0 %v959
    %1635 = vmatpush2.msra.mxu0 %v958
    %1636 = vmatprep.subr.mxu0 %v955
    %1637 = vmatpush2.msra.mxu0 %v954
    %1638 = vmatprep.subr.mxu0 %v951
    %1639 = vmatpush2.msra.mxu0 %v950
    %1640 = vmatprep.subr.mxu0 %v947
    %1641 = vmatpush2.msra.mxu0 %v946
    %1642 = vmatprep.subr.mxu0 %v943
    %1643 = vmatpush2.msra.mxu0 %v942
    %1644 = vmatprep.mubr.f32.mxu0 %v617
    %1645 = vmatmul.mubr.f32.gmra.mxu0 %v616
    %v1646 = vpop.f32.mrf.mxu0
    %v1647 = vadd.f32 %v1576, %v1646
    %v1648 = vpop.f32.mrf.mxu0
    %v1649 = vadd.f32 %v1578, %v1648
    %1650 = vdwg.mxu0
    %1651 = vmatprep.subr.mxu0 %v1067
    %1652 = vmatpush1.msra.mxu0 %v1066
    %1653 = vmatprep.subr.mxu0 %v1063
    %1654 = vmatpush1.msra.mxu0 %v1062
    %1655 = vmatprep.subr.mxu0 %v1059
    %1656 = vmatpush1.msra.mxu0 %v1058
    %1657 = vmatprep.subr.mxu0 %v1055
    %1658 = vmatpush1.msra.mxu0 %v1054
    %1659 = vmatprep.subr.mxu0 %v1051
    %1660 = vmatpush1.msra.mxu0 %v1050
    %1661 = vmatprep.subr.mxu0 %v1047
    %1662 = vmatpush1.msra.mxu0 %v1046
    %1663 = vmatprep.subr.mxu0 %v1043
    %1664 = vmatpush1.msra.mxu0 %v1042
    %1665 = vmatprep.subr.mxu0 %v1039
    %1666 = vmatpush1.msra.mxu0 %v1038
    %1667 = vmatprep.subr.mxu0 %v1035
    %1668 = vmatpush1.msra.mxu0 %v1034
    %1669 = vmatprep.subr.mxu0 %v1031
    %1670 = vmatpush1.msra.mxu0 %v1030
    %1671 = vmatprep.subr.mxu0 %v1027
    %1672 = vmatpush1.msra.mxu0 %v1026
    %1673 = vmatprep.subr.mxu0 %v1023
    %1674 = vmatpush1.msra.mxu0 %v1022
    %1675 = vmatprep.subr.mxu0 %v1019
    %1676 = vmatpush1.msra.mxu0 %v1018
    %1677 = vmatprep.subr.mxu0 %v1015
    %1678 = vmatpush1.msra.mxu0 %v1014
    %1679 = vmatprep.subr.mxu0 %v1011
    %1680 = vmatpush1.msra.mxu0 %v1010
    %1681 = vmatprep.subr.mxu0 %v1007
    %1682 = vmatpush1.msra.mxu0 %v1006
    %1683 = vmatprep.subr.mxu0 %v1131
    %1684 = vmatpush2.msra.mxu0 %v1130
    %1685 = vmatprep.subr.mxu0 %v1127
    %1686 = vmatpush2.msra.mxu0 %v1126
    %1687 = vmatprep.subr.mxu0 %v1123
    %1688 = vmatpush2.msra.mxu0 %v1122
    %1689 = vmatprep.subr.mxu0 %v1119
    %1690 = vmatpush2.msra.mxu0 %v1118
    %1691 = vmatprep.subr.mxu0 %v1115
    %1692 = vmatpush2.msra.mxu0 %v1114
    %1693 = vmatprep.subr.mxu0 %v1111
    %1694 = vmatpush2.msra.mxu0 %v1110
    %1695 = vmatprep.subr.mxu0 %v1107
    %1696 = vmatpush2.msra.mxu0 %v1106
    %1697 = vmatprep.subr.mxu0 %v1103
    %1698 = vmatpush2.msra.mxu0 %v1102
    %1699 = vmatprep.subr.mxu0 %v1099
    %1700 = vmatpush2.msra.mxu0 %v1098
    %1701 = vmatprep.subr.mxu0 %v1095
    %1702 = vmatpush2.msra.mxu0 %v1094
    %1703 = vmatprep.subr.mxu0 %v1091
    %1704 = vmatpush2.msra.mxu0 %v1090
    %1705 = vmatprep.subr.mxu0 %v1087
    %1706 = vmatpush2.msra.mxu0 %v1086
    %1707 = vmatprep.subr.mxu0 %v1083
    %1708 = vmatpush2.msra.mxu0 %v1082
    %1709 = vmatprep.subr.mxu0 %v1079
    %1710 = vmatpush2.msra.mxu0 %v1078
    %1711 = vmatprep.subr.mxu0 %v1075
    %1712 = vmatpush2.msra.mxu0 %v1074
    %1713 = vmatprep.subr.mxu0 %v1071
    %1714 = vmatpush2.msra.mxu0 %v1070
    %1715 = vmatprep.mubr.f32.mxu0 %v619
    %1716 = vmatmul.mubr.f32.gmra.mxu0 %v618
    %v1717 = vpop.f32.mrf.mxu0
    %v1718 = vadd.f32 %v1647, %v1717
    %v1719 = vpop.f32.mrf.mxu0
    %v1720 = vadd.f32 %v1649, %v1719
    %1721 = vdwg.mxu0
    %v1722 = vmax.f32 %v1434, 0.0
    %v1723 = vmax.f32 %v1436, 0.0
    %v1724 = vmax.f32 %v1718, 0.0
    %v1725 = vmax.f32 %v1720, 0.0
    %v1726 = vld [vmem:[#allocation10] sm:$0xff]
    %v1727 = vld [vmem:[#allocation10 + $0x8] sm:$0xff]
    %v1728 = vld [vmem:[#allocation10 + $0x10] sm:$0xff]
    %v1729 = vld [vmem:[#allocation10 + $0x18] sm:$0xff]
    %v1730 = vld [vmem:[#allocation10 + $0x20] sm:$0xff]
    %v1731 = vld [vmem:[#allocation10 + $0x28] sm:$0xff]
    %v1732 = vld [vmem:[#allocation10 + $0x30] sm:$0xff]
    %v1733 = vld [vmem:[#allocation10 + $0x38] sm:$0xff]
    %v1734 = vld [vmem:[#allocation10 + $0x40] sm:$0xff]
    %v1735 = vld [vmem:[#allocation10 + $0x48] sm:$0xff]
    %v1736 = vld [vmem:[#allocation10 + $0x50] sm:$0xff]
    %v1737 = vld [vmem:[#allocation10 + $0x58] sm:$0xff]
    %v1738 = vld [vmem:[#allocation10 + $0x60] sm:$0xff]
    %v1739 = vld [vmem:[#allocation10 + $0x68] sm:$0xff]
    %v1740 = vld [vmem:[#allocation10 + $0x70] sm:$0xff]
    %v1741 = vld [vmem:[#allocation10 + $0x78] sm:$0xff]
    %v1742 = vld [vmem:[#allocation10 + $0x80] sm:$0xff]
    %v1743 = vld [vmem:[#allocation10 + $0x88] sm:$0xff]
    %v1744 = vld [vmem:[#allocation10 + $0x90] sm:$0xff]
    %v1745 = vld [vmem:[#allocation10 + $0x98] sm:$0xff]
    %v1746 = vld [vmem:[#allocation10 + $0xa0] sm:$0xff]
    %v1747 = vld [vmem:[#allocation10 + $0xa8] sm:$0xff]
    %v1748 = vld [vmem:[#allocation10 + $0xb0] sm:$0xff]
    %v1749 = vld [vmem:[#allocation10 + $0xb8] sm:$0xff]
    %v1750 = vld [vmem:[#allocation10 + $0xc0] sm:$0xff]
    %v1751 = vld [vmem:[#allocation10 + $0xc8] sm:$0xff]
    %v1752 = vld [vmem:[#allocation10 + $0xd0] sm:$0xff]
    %v1753 = vld [vmem:[#allocation10 + $0xd8] sm:$0xff]
    %v1754 = vld [vmem:[#allocation10 + $0xe0] sm:$0xff]
    %v1755 = vld [vmem:[#allocation10 + $0xe8] sm:$0xff]
    %v1756 = vld [vmem:[#allocation10 + $0xf0] sm:$0xff]
    %v1757 = vld [vmem:[#allocation10 + $0xf8] sm:$0xff]
    %v1758 = vld [vmem:[#allocation10 + $0x100] sm:$0xff]
    %v1759 = vld [vmem:[#allocation10 + $0x108] sm:$0xff]
    %v1760 = vld [vmem:[#allocation10 + $0x110] sm:$0xff]
    %v1761 = vld [vmem:[#allocation10 + $0x118] sm:$0xff]
    %v1762 = vld [vmem:[#allocation10 + $0x120] sm:$0xff]
    %v1763 = vld [vmem:[#allocation10 + $0x128] sm:$0xff]
    %v1764 = vld [vmem:[#allocation10 + $0x130] sm:$0xff]
    %v1765 = vld [vmem:[#allocation10 + $0x138] sm:$0xff]
    %v1766 = vld [vmem:[#allocation10 + $0x140] sm:$0xff]
    %v1767 = vld [vmem:[#allocation10 + $0x148] sm:$0xff]
    %v1768 = vld [vmem:[#allocation10 + $0x150] sm:$0xff]
    %v1769 = vld [vmem:[#allocation10 + $0x158] sm:$0xff]
    %v1770 = vld [vmem:[#allocation10 + $0x160] sm:$0xff]
    %v1771 = vld [vmem:[#allocation10 + $0x168] sm:$0xff]
    %v1772 = vld [vmem:[#allocation10 + $0x170] sm:$0xff]
    %v1773 = vld [vmem:[#allocation10 + $0x178] sm:$0xff]
    %v1774 = vld [vmem:[#allocation10 + $0x180] sm:$0xff]
    %v1775 = vld [vmem:[#allocation10 + $0x188] sm:$0xff]
    %v1776 = vld [vmem:[#allocation10 + $0x190] sm:$0xff]
    %v1777 = vld [vmem:[#allocation10 + $0x198] sm:$0xff]
    %v1778 = vld [vmem:[#allocation10 + $0x1a0] sm:$0xff]
    %v1779 = vld [vmem:[#allocation10 + $0x1a8] sm:$0xff]
    %v1780 = vld [vmem:[#allocation10 + $0x1b0] sm:$0xff]
    %v1781 = vld [vmem:[#allocation10 + $0x1b8] sm:$0xff]
    %v1782 = vld [vmem:[#allocation10 + $0x1c0] sm:$0xff]
    %v1783 = vld [vmem:[#allocation10 + $0x1c8] sm:$0xff]
    %v1784 = vld [vmem:[#allocation10 + $0x1d0] sm:$0xff]
    %v1785 = vld [vmem:[#allocation10 + $0x1d8] sm:$0xff]
    %v1786 = vld [vmem:[#allocation10 + $0x1e0] sm:$0xff]
    %v1787 = vld [vmem:[#allocation10 + $0x1e8] sm:$0xff]
    %v1788 = vld [vmem:[#allocation10 + $0x1f0] sm:$0xff]
    %v1789 = vld [vmem:[#allocation10 + $0x1f8] sm:$0xff]
    %v1790 = vld [vmem:[#allocation10 + $0x200] sm:$0xff]
    %v1791 = vld [vmem:[#allocation10 + $0x208] sm:$0xff]
    %v1792 = vld [vmem:[#allocation10 + $0x210] sm:$0xff]
    %v1793 = vld [vmem:[#allocation10 + $0x218] sm:$0xff]
    %v1794 = vld [vmem:[#allocation10 + $0x220] sm:$0xff]
    %v1795 = vld [vmem:[#allocation10 + $0x228] sm:$0xff]
    %v1796 = vld [vmem:[#allocation10 + $0x230] sm:$0xff]
    %v1797 = vld [vmem:[#allocation10 + $0x238] sm:$0xff]
    %v1798 = vld [vmem:[#allocation10 + $0x240] sm:$0xff]
    %v1799 = vld [vmem:[#allocation10 + $0x248] sm:$0xff]
    %v1800 = vld [vmem:[#allocation10 + $0x250] sm:$0xff]
    %v1801 = vld [vmem:[#allocation10 + $0x258] sm:$0xff]
    %v1802 = vld [vmem:[#allocation10 + $0x260] sm:$0xff]
    %v1803 = vld [vmem:[#allocation10 + $0x268] sm:$0xff]
    %v1804 = vld [vmem:[#allocation10 + $0x270] sm:$0xff]
    %v1805 = vld [vmem:[#allocation10 + $0x278] sm:$0xff]
    %v1806 = vld [vmem:[#allocation10 + $0x280] sm:$0xff]
    %v1807 = vld [vmem:[#allocation10 + $0x288] sm:$0xff]
    %v1808 = vld [vmem:[#allocation10 + $0x290] sm:$0xff]
    %v1809 = vld [vmem:[#allocation10 + $0x298] sm:$0xff]
    %v1810 = vld [vmem:[#allocation10 + $0x2a0] sm:$0xff]
    %v1811 = vld [vmem:[#allocation10 + $0x2a8] sm:$0xff]
    %v1812 = vld [vmem:[#allocation10 + $0x2b0] sm:$0xff]
    %v1813 = vld [vmem:[#allocation10 + $0x2b8] sm:$0xff]
    %v1814 = vld [vmem:[#allocation10 + $0x2c0] sm:$0xff]
    %v1815 = vld [vmem:[#allocation10 + $0x2c8] sm:$0xff]
    %v1816 = vld [vmem:[#allocation10 + $0x2d0] sm:$0xff]
    %v1817 = vld [vmem:[#allocation10 + $0x2d8] sm:$0xff]
    %v1818 = vld [vmem:[#allocation10 + $0x2e0] sm:$0xff]
    %v1819 = vld [vmem:[#allocation10 + $0x2e8] sm:$0xff]
    %v1820 = vld [vmem:[#allocation10 + $0x2f0] sm:$0xff]
    %v1821 = vld [vmem:[#allocation10 + $0x2f8] sm:$0xff]
    %v1822 = vld [vmem:[#allocation10 + $0x300] sm:$0xff]
    %v1823 = vld [vmem:[#allocation10 + $0x308] sm:$0xff]
    %v1824 = vld [vmem:[#allocation10 + $0x310] sm:$0xff]
    %v1825 = vld [vmem:[#allocation10 + $0x318] sm:$0xff]
    %v1826 = vld [vmem:[#allocation10 + $0x320] sm:$0xff]
    %v1827 = vld [vmem:[#allocation10 + $0x328] sm:$0xff]
    %v1828 = vld [vmem:[#allocation10 + $0x330] sm:$0xff]
    %v1829 = vld [vmem:[#allocation10 + $0x338] sm:$0xff]
    %v1830 = vld [vmem:[#allocation10 + $0x340] sm:$0xff]
    %v1831 = vld [vmem:[#allocation10 + $0x348] sm:$0xff]
    %v1832 = vld [vmem:[#allocation10 + $0x350] sm:$0xff]
    %v1833 = vld [vmem:[#allocation10 + $0x358] sm:$0xff]
    %v1834 = vld [vmem:[#allocation10 + $0x360] sm:$0xff]
    %v1835 = vld [vmem:[#allocation10 + $0x368] sm:$0xff]
    %v1836 = vld [vmem:[#allocation10 + $0x370] sm:$0xff]
    %v1837 = vld [vmem:[#allocation10 + $0x378] sm:$0xff]
    %v1838 = vld [vmem:[#allocation10 + $0x380] sm:$0xff]
    %v1839 = vld [vmem:[#allocation10 + $0x388] sm:$0xff]
    %v1840 = vld [vmem:[#allocation10 + $0x390] sm:$0xff]
    %v1841 = vld [vmem:[#allocation10 + $0x398] sm:$0xff]
    %v1842 = vld [vmem:[#allocation10 + $0x3a0] sm:$0xff]
    %v1843 = vld [vmem:[#allocation10 + $0x3a8] sm:$0xff]
    %v1844 = vld [vmem:[#allocation10 + $0x3b0] sm:$0xff]
    %v1845 = vld [vmem:[#allocation10 + $0x3b8] sm:$0xff]
    %v1846 = vld [vmem:[#allocation10 + $0x3c0] sm:$0xff]
    %v1847 = vld [vmem:[#allocation10 + $0x3c8] sm:$0xff]
    %v1848 = vld [vmem:[#allocation10 + $0x3d0] sm:$0xff]
    %v1849 = vld [vmem:[#allocation10 + $0x3d8] sm:$0xff]
    %v1850 = vld [vmem:[#allocation10 + $0x3e0] sm:$0xff]
    %v1851 = vld [vmem:[#allocation10 + $0x3e8] sm:$0xff]
    %v1852 = vld [vmem:[#allocation10 + $0x3f0] sm:$0xff]
    %v1853 = vld [vmem:[#allocation10 + $0x3f8] sm:$0xff]
    %1854 = vmatprep.subr.mxu0 %v1757
    %1855 = vmatpush1.msra.mxu0 %v1756
    %1856 = vmatprep.subr.mxu0 %v1755
    %1857 = vmatpush1.msra.mxu0 %v1754
    %1858 = vmatprep.subr.mxu0 %v1753
    %1859 = vmatpush1.msra.mxu0 %v1752
    %1860 = vmatprep.subr.mxu0 %v1751
    %1861 = vmatpush1.msra.mxu0 %v1750
    %1862 = vmatprep.subr.mxu0 %v1749
    %1863 = vmatpush1.msra.mxu0 %v1748
    %1864 = vmatprep.subr.mxu0 %v1747
    %1865 = vmatpush1.msra.mxu0 %v1746
    %1866 = vmatprep.subr.mxu0 %v1745
    %1867 = vmatpush1.msra.mxu0 %v1744
    %1868 = vmatprep.subr.mxu0 %v1743
    %1869 = vmatpush1.msra.mxu0 %v1742
    %1870 = vmatprep.subr.mxu0 %v1741
    %1871 = vmatpush1.msra.mxu0 %v1740
    %1872 = vmatprep.subr.mxu0 %v1739
    %1873 = vmatpush1.msra.mxu0 %v1738
    %1874 = vmatprep.subr.mxu0 %v1737
    %1875 = vmatpush1.msra.mxu0 %v1736
    %1876 = vmatprep.subr.mxu0 %v1735
    %1877 = vmatpush1.msra.mxu0 %v1734
    %1878 = vmatprep.subr.mxu0 %v1733
    %1879 = vmatpush1.msra.mxu0 %v1732
    %1880 = vmatprep.subr.mxu0 %v1731
    %1881 = vmatpush1.msra.mxu0 %v1730
    %1882 = vmatprep.subr.mxu0 %v1729
    %1883 = vmatpush1.msra.mxu0 %v1728
    %1884 = vmatprep.subr.mxu0 %v1727
    %1885 = vmatpush1.msra.mxu0 %v1726
    %1886 = vmatprep.subr.mxu0 %v1789
    %1887 = vmatpush2.msra.mxu0 %v1788
    %1888 = vmatprep.subr.mxu0 %v1787
    %1889 = vmatpush2.msra.mxu0 %v1786
    %1890 = vmatprep.subr.mxu0 %v1785
    %1891 = vmatpush2.msra.mxu0 %v1784
    %1892 = vmatprep.subr.mxu0 %v1783
    %1893 = vmatpush2.msra.mxu0 %v1782
    %1894 = vmatprep.subr.mxu0 %v1781
    %1895 = vmatpush2.msra.mxu0 %v1780
    %1896 = vmatprep.subr.mxu0 %v1779
    %1897 = vmatpush2.msra.mxu0 %v1778
    %1898 = vmatprep.subr.mxu0 %v1777
    %1899 = vmatpush2.msra.mxu0 %v1776
    %1900 = vmatprep.subr.mxu0 %v1775
    %1901 = vmatpush2.msra.mxu0 %v1774
    %1902 = vmatprep.subr.mxu0 %v1773
    %1903 = vmatpush2.msra.mxu0 %v1772
    %1904 = vmatprep.subr.mxu0 %v1771
    %1905 = vmatpush2.msra.mxu0 %v1770
    %1906 = vmatprep.subr.mxu0 %v1769
    %1907 = vmatpush2.msra.mxu0 %v1768
    %1908 = vmatprep.subr.mxu0 %v1767
    %1909 = vmatpush2.msra.mxu0 %v1766
    %1910 = vmatprep.subr.mxu0 %v1765
    %1911 = vmatpush2.msra.mxu0 %v1764
    %1912 = vmatprep.subr.mxu0 %v1763
    %1913 = vmatpush2.msra.mxu0 %v1762
    %1914 = vmatprep.subr.mxu0 %v1761
    %1915 = vmatpush2.msra.mxu0 %v1760
    %1916 = vmatprep.subr.mxu0 %v1759
    %1917 = vmatpush2.msra.mxu0 %v1758
    %1918 = vmatprep.mubr.f32.mxu0 %v1723
    %1919 = vmatmul.mubr.f32.gmra.mxu0 %v1722
    %v1920 = vpop.f32.mrf.mxu0
    %v1921 = vadd.f32 0.0, %v1920
    %v1922 = vpop.f32.mrf.mxu0
    %v1923 = vadd.f32 0.0, %v1922
    %1924 = vdwg.mxu0
    %1925 = vmatprep.subr.mxu0 %v1821
    %1926 = vmatpush1.msra.mxu0 %v1820
    %1927 = vmatprep.subr.mxu0 %v1819
    %1928 = vmatpush1.msra.mxu0 %v1818
    %1929 = vmatprep.subr.mxu0 %v1817
    %1930 = vmatpush1.msra.mxu0 %v1816
    %1931 = vmatprep.subr.mxu0 %v1815
    %1932 = vmatpush1.msra.mxu0 %v1814
    %1933 = vmatprep.subr.mxu0 %v1813
    %1934 = vmatpush1.msra.mxu0 %v1812
    %1935 = vmatprep.subr.mxu0 %v1811
    %1936 = vmatpush1.msra.mxu0 %v1810
    %1937 = vmatprep.subr.mxu0 %v1809
    %1938 = vmatpush1.msra.mxu0 %v1808
    %1939 = vmatprep.subr.mxu0 %v1807
    %1940 = vmatpush1.msra.mxu0 %v1806
    %1941 = vmatprep.subr.mxu0 %v1805
    %1942 = vmatpush1.msra.mxu0 %v1804
    %1943 = vmatprep.subr.mxu0 %v1803
    %1944 = vmatpush1.msra.mxu0 %v1802
    %1945 = vmatprep.subr.mxu0 %v1801
    %1946 = vmatpush1.msra.mxu0 %v1800
    %1947 = vmatprep.subr.mxu0 %v1799
    %1948 = vmatpush1.msra.mxu0 %v1798
    %1949 = vmatprep.subr.mxu0 %v1797
    %1950 = vmatpush1.msra.mxu0 %v1796
    %1951 = vmatprep.subr.mxu0 %v1795
    %1952 = vmatpush1.msra.mxu0 %v1794
    %1953 = vmatprep.subr.mxu0 %v1793
    %1954 = vmatpush1.msra.mxu0 %v1792
    %1955 = vmatprep.subr.mxu0 %v1791
    %1956 = vmatpush1.msra.mxu0 %v1790
    %1957 = vmatprep.subr.mxu0 %v1853
    %1958 = vmatpush2.msra.mxu0 %v1852
    %1959 = vmatprep.subr.mxu0 %v1851
    %1960 = vmatpush2.msra.mxu0 %v1850
    %1961 = vmatprep.subr.mxu0 %v1849
    %1962 = vmatpush2.msra.mxu0 %v1848
    %1963 = vmatprep.subr.mxu0 %v1847
    %1964 = vmatpush2.msra.mxu0 %v1846
    %1965 = vmatprep.subr.mxu0 %v1845
    %1966 = vmatpush2.msra.mxu0 %v1844
    %1967 = vmatprep.subr.mxu0 %v1843
    %1968 = vmatpush2.msra.mxu0 %v1842
    %1969 = vmatprep.subr.mxu0 %v1841
    %1970 = vmatpush2.msra.mxu0 %v1840
    %1971 = vmatprep.subr.mxu0 %v1839
    %1972 = vmatpush2.msra.mxu0 %v1838
    %1973 = vmatprep.subr.mxu0 %v1837
    %1974 = vmatpush2.msra.mxu0 %v1836
    %1975 = vmatprep.subr.mxu0 %v1835
    %1976 = vmatpush2.msra.mxu0 %v1834
    %1977 = vmatprep.subr.mxu0 %v1833
    %1978 = vmatpush2.msra.mxu0 %v1832
    %1979 = vmatprep.subr.mxu0 %v1831
    %1980 = vmatpush2.msra.mxu0 %v1830
    %1981 = vmatprep.subr.mxu0 %v1829
    %1982 = vmatpush2.msra.mxu0 %v1828
    %1983 = vmatprep.subr.mxu0 %v1827
    %1984 = vmatpush2.msra.mxu0 %v1826
    %1985 = vmatprep.subr.mxu0 %v1825
    %1986 = vmatpush2.msra.mxu0 %v1824
    %1987 = vmatprep.subr.mxu0 %v1823
    %1988 = vmatpush2.msra.mxu0 %v1822
    %1989 = vmatprep.mubr.f32.mxu0 %v1725
    %1990 = vmatmul.mubr.f32.gmra.mxu0 %v1724
    %v1991 = vpop.f32.mrf.mxu0
    %v1992 = vadd.f32 %v1921, %v1991
    %v1993 = vpop.f32.mrf.mxu0
    %v1994 = vadd.f32 %v1923, %v1993
    %1995 = vdwg.mxu0
    %v1996 = vld [vmem:[#allocation11] sm:$0xff]
    %v1997 = vld [vmem:[#allocation11 + $0x8] sm:$0xff]
    %v1998 = vld [vmem:[#allocation11 + $0x10] sm:$0xff]
    %v1999 = vld [vmem:[#allocation11 + $0x18] sm:$0xff]
    %v2000 = vld [vmem:[#allocation11 + $0x20] sm:$0xff]
    %v2001 = vld [vmem:[#allocation11 + $0x28] sm:$0xff]
    %v2002 = vld [vmem:[#allocation11 + $0x30] sm:$0xff]
    %v2003 = vld [vmem:[#allocation11 + $0x38] sm:$0xff]
    %v2004 = vld [vmem:[#allocation11 + $0x40] sm:$0xff]
    %v2005 = vld [vmem:[#allocation11 + $0x48] sm:$0xff]
    %v2006 = vld [vmem:[#allocation11 + $0x50] sm:$0xff]
    %v2007 = vld [vmem:[#allocation11 + $0x58] sm:$0xff]
    %v2008 = vld [vmem:[#allocation11 + $0x60] sm:$0xff]
    %v2009 = vld [vmem:[#allocation11 + $0x68] sm:$0xff]
    %v2010 = vld [vmem:[#allocation11 + $0x70] sm:$0xff]
    %v2011 = vld [vmem:[#allocation11 + $0x78] sm:$0xff]
    %v2012 = vld [vmem:[#allocation11 + $0x80] sm:$0xff]
    %v2013 = vld [vmem:[#allocation11 + $0x88] sm:$0xff]
    %v2014 = vld [vmem:[#allocation11 + $0x90] sm:$0xff]
    %v2015 = vld [vmem:[#allocation11 + $0x98] sm:$0xff]
    %v2016 = vld [vmem:[#allocation11 + $0xa0] sm:$0xff]
    %v2017 = vld [vmem:[#allocation11 + $0xa8] sm:$0xff]
    %v2018 = vld [vmem:[#allocation11 + $0xb0] sm:$0xff]
    %v2019 = vld [vmem:[#allocation11 + $0xb8] sm:$0xff]
    %v2020 = vld [vmem:[#allocation11 + $0xc0] sm:$0xff]
    %v2021 = vld [vmem:[#allocation11 + $0xc8] sm:$0xff]
    %v2022 = vld [vmem:[#allocation11 + $0xd0] sm:$0xff]
    %v2023 = vld [vmem:[#allocation11 + $0xd8] sm:$0xff]
    %v2024 = vld [vmem:[#allocation11 + $0xe0] sm:$0xff]
    %v2025 = vld [vmem:[#allocation11 + $0xe8] sm:$0xff]
    %v2026 = vld [vmem:[#allocation11 + $0xf0] sm:$0xff]
    %v2027 = vld [vmem:[#allocation11 + $0xf8] sm:$0xff]
    %v2028 = vld [vmem:[#allocation11 + $0x100] sm:$0xff]
    %v2029 = vld [vmem:[#allocation11 + $0x108] sm:$0xff]
    %v2030 = vld [vmem:[#allocation11 + $0x110] sm:$0xff]
    %v2031 = vld [vmem:[#allocation11 + $0x118] sm:$0xff]
    %v2032 = vld [vmem:[#allocation11 + $0x120] sm:$0xff]
    %v2033 = vld [vmem:[#allocation11 + $0x128] sm:$0xff]
    %v2034 = vld [vmem:[#allocation11 + $0x130] sm:$0xff]
    %v2035 = vld [vmem:[#allocation11 + $0x138] sm:$0xff]
    %v2036 = vld [vmem:[#allocation11 + $0x140] sm:$0xff]
    %v2037 = vld [vmem:[#allocation11 + $0x148] sm:$0xff]
    %v2038 = vld [vmem:[#allocation11 + $0x150] sm:$0xff]
    %v2039 = vld [vmem:[#allocation11 + $0x158] sm:$0xff]
    %v2040 = vld [vmem:[#allocation11 + $0x160] sm:$0xff]
    %v2041 = vld [vmem:[#allocation11 + $0x168] sm:$0xff]
    %v2042 = vld [vmem:[#allocation11 + $0x170] sm:$0xff]
    %v2043 = vld [vmem:[#allocation11 + $0x178] sm:$0xff]
    %v2044 = vld [vmem:[#allocation11 + $0x180] sm:$0xff]
    %v2045 = vld [vmem:[#allocation11 + $0x188] sm:$0xff]
    %v2046 = vld [vmem:[#allocation11 + $0x190] sm:$0xff]
    %v2047 = vld [vmem:[#allocation11 + $0x198] sm:$0xff]
    %v2048 = vld [vmem:[#allocation11 + $0x1a0] sm:$0xff]
    %v2049 = vld [vmem:[#allocation11 + $0x1a8] sm:$0xff]
    %v2050 = vld [vmem:[#allocation11 + $0x1b0] sm:$0xff]
    %v2051 = vld [vmem:[#allocation11 + $0x1b8] sm:$0xff]
    %v2052 = vld [vmem:[#allocation11 + $0x1c0] sm:$0xff]
    %v2053 = vld [vmem:[#allocation11 + $0x1c8] sm:$0xff]
    %v2054 = vld [vmem:[#allocation11 + $0x1d0] sm:$0xff]
    %v2055 = vld [vmem:[#allocation11 + $0x1d8] sm:$0xff]
    %v2056 = vld [vmem:[#allocation11 + $0x1e0] sm:$0xff]
    %v2057 = vld [vmem:[#allocation11 + $0x1e8] sm:$0xff]
    %v2058 = vld [vmem:[#allocation11 + $0x1f0] sm:$0xff]
    %v2059 = vld [vmem:[#allocation11 + $0x1f8] sm:$0xff]
    %v2060 = vld [vmem:[#allocation11 + $0x200] sm:$0xff]
    %v2061 = vld [vmem:[#allocation11 + $0x208] sm:$0xff]
    %v2062 = vld [vmem:[#allocation11 + $0x210] sm:$0xff]
    %v2063 = vld [vmem:[#allocation11 + $0x218] sm:$0xff]
    %v2064 = vld [vmem:[#allocation11 + $0x220] sm:$0xff]
    %v2065 = vld [vmem:[#allocation11 + $0x228] sm:$0xff]
    %v2066 = vld [vmem:[#allocation11 + $0x230] sm:$0xff]
    %v2067 = vld [vmem:[#allocation11 + $0x238] sm:$0xff]
    %v2068 = vld [vmem:[#allocation11 + $0x240] sm:$0xff]
    %v2069 = vld [vmem:[#allocation11 + $0x248] sm:$0xff]
    %v2070 = vld [vmem:[#allocation11 + $0x250] sm:$0xff]
    %v2071 = vld [vmem:[#allocation11 + $0x258] sm:$0xff]
    %v2072 = vld [vmem:[#allocation11 + $0x260] sm:$0xff]
    %v2073 = vld [vmem:[#allocation11 + $0x268] sm:$0xff]
    %v2074 = vld [vmem:[#allocation11 + $0x270] sm:$0xff]
    %v2075 = vld [vmem:[#allocation11 + $0x278] sm:$0xff]
    %v2076 = vld [vmem:[#allocation11 + $0x280] sm:$0xff]
    %v2077 = vld [vmem:[#allocation11 + $0x288] sm:$0xff]
    %v2078 = vld [vmem:[#allocation11 + $0x290] sm:$0xff]
    %v2079 = vld [vmem:[#allocation11 + $0x298] sm:$0xff]
    %v2080 = vld [vmem:[#allocation11 + $0x2a0] sm:$0xff]
    %v2081 = vld [vmem:[#allocation11 + $0x2a8] sm:$0xff]
    %v2082 = vld [vmem:[#allocation11 + $0x2b0] sm:$0xff]
    %v2083 = vld [vmem:[#allocation11 + $0x2b8] sm:$0xff]
    %v2084 = vld [vmem:[#allocation11 + $0x2c0] sm:$0xff]
    %v2085 = vld [vmem:[#allocation11 + $0x2c8] sm:$0xff]
    %v2086 = vld [vmem:[#allocation11 + $0x2d0] sm:$0xff]
    %v2087 = vld [vmem:[#allocation11 + $0x2d8] sm:$0xff]
    %v2088 = vld [vmem:[#allocation11 + $0x2e0] sm:$0xff]
    %v2089 = vld [vmem:[#allocation11 + $0x2e8] sm:$0xff]
    %v2090 = vld [vmem:[#allocation11 + $0x2f0] sm:$0xff]
    %v2091 = vld [vmem:[#allocation11 + $0x2f8] sm:$0xff]
    %v2092 = vld [vmem:[#allocation11 + $0x300] sm:$0xff]
    %v2093 = vld [vmem:[#allocation11 + $0x308] sm:$0xff]
    %v2094 = vld [vmem:[#allocation11 + $0x310] sm:$0xff]
    %v2095 = vld [vmem:[#allocation11 + $0x318] sm:$0xff]
    %v2096 = vld [vmem:[#allocation11 + $0x320] sm:$0xff]
    %v2097 = vld [vmem:[#allocation11 + $0x328] sm:$0xff]
    %v2098 = vld [vmem:[#allocation11 + $0x330] sm:$0xff]
    %v2099 = vld [vmem:[#allocation11 + $0x338] sm:$0xff]
    %v2100 = vld [vmem:[#allocation11 + $0x340] sm:$0xff]
    %v2101 = vld [vmem:[#allocation11 + $0x348] sm:$0xff]
    %v2102 = vld [vmem:[#allocation11 + $0x350] sm:$0xff]
    %v2103 = vld [vmem:[#allocation11 + $0x358] sm:$0xff]
    %v2104 = vld [vmem:[#allocation11 + $0x360] sm:$0xff]
    %v2105 = vld [vmem:[#allocation11 + $0x368] sm:$0xff]
    %v2106 = vld [vmem:[#allocation11 + $0x370] sm:$0xff]
    %v2107 = vld [vmem:[#allocation11 + $0x378] sm:$0xff]
    %v2108 = vld [vmem:[#allocation11 + $0x380] sm:$0xff]
    %v2109 = vld [vmem:[#allocation11 + $0x388] sm:$0xff]
    %v2110 = vld [vmem:[#allocation11 + $0x390] sm:$0xff]
    %v2111 = vld [vmem:[#allocation11 + $0x398] sm:$0xff]
    %v2112 = vld [vmem:[#allocation11 + $0x3a0] sm:$0xff]
    %v2113 = vld [vmem:[#allocation11 + $0x3a8] sm:$0xff]
    %v2114 = vld [vmem:[#allocation11 + $0x3b0] sm:$0xff]
    %v2115 = vld [vmem:[#allocation11 + $0x3b8] sm:$0xff]
    %v2116 = vld [vmem:[#allocation11 + $0x3c0] sm:$0xff]
    %v2117 = vld [vmem:[#allocation11 + $0x3c8] sm:$0xff]
    %v2118 = vld [vmem:[#allocation11 + $0x3d0] sm:$0xff]
    %v2119 = vld [vmem:[#allocation11 + $0x3d8] sm:$0xff]
    %v2120 = vld [vmem:[#allocation11 + $0x3e0] sm:$0xff]
    %v2121 = vld [vmem:[#allocation11 + $0x3e8] sm:$0xff]
    %v2122 = vld [vmem:[#allocation11 + $0x3f0] sm:$0xff]
    %v2123 = vld [vmem:[#allocation11 + $0x3f8] sm:$0xff]
    %v2124 = vld [vmem:[#allocation13] sm:$0xf]
    %v2126 = vlaneseq
    %v2127 = vshrl.u32 %v2126, 7
    %v2128 = vsub.s32 0, %v2127
    %v2129 = vrot.slane %v2124, %v2128
    %v2130 = vlaneseq
    %v2131 = vshrl.u32 %v2130, 7
    %v2132 = vsub.s32 1, %v2131
    %v2133 = vrot.slane %v2124, %v2132
    %v2134 = vlaneseq
    %v2135 = vshrl.u32 %v2134, 7
    %v2136 = vsub.s32 2, %v2135
    %v2137 = vrot.slane %v2124, %v2136
    %v2138 = vlaneseq
    %v2139 = vshrl.u32 %v2138, 7
    %v2140 = vsub.s32 3, %v2139
    %v2141 = vrot.slane %v2124, %v2140
    %2146 = vmatprep.subr.mxu0 %v2057
    %2147 = vmatpush1.msra.mxu0 %v2056
    %2148 = vmatprep.subr.mxu0 %v2053
    %2149 = vmatpush1.msra.mxu0 %v2052
    %2150 = vmatprep.subr.mxu0 %v2049
    %2151 = vmatpush1.msra.mxu0 %v2048
    %2152 = vmatprep.subr.mxu0 %v2045
    %2153 = vmatpush1.msra.mxu0 %v2044
    %2154 = vmatprep.subr.mxu0 %v2041
    %2155 = vmatpush1.msra.mxu0 %v2040
    %2156 = vmatprep.subr.mxu0 %v2037
    %2157 = vmatpush1.msra.mxu0 %v2036
    %2158 = vmatprep.subr.mxu0 %v2033
    %2159 = vmatpush1.msra.mxu0 %v2032
    %2160 = vmatprep.subr.mxu0 %v2029
    %2161 = vmatpush1.msra.mxu0 %v2028
    %2162 = vmatprep.subr.mxu0 %v2025
    %2163 = vmatpush1.msra.mxu0 %v2024
    %2164 = vmatprep.subr.mxu0 %v2021
    %2165 = vmatpush1.msra.mxu0 %v2020
    %2166 = vmatprep.subr.mxu0 %v2017
    %2167 = vmatpush1.msra.mxu0 %v2016
    %2168 = vmatprep.subr.mxu0 %v2013
    %2169 = vmatpush1.msra.mxu0 %v2012
    %2170 = vmatprep.subr.mxu0 %v2009
    %2171 = vmatpush1.msra.mxu0 %v2008
    %2172 = vmatprep.subr.mxu0 %v2005
    %2173 = vmatpush1.msra.mxu0 %v2004
    %2174 = vmatprep.subr.mxu0 %v2001
    %2175 = vmatpush1.msra.mxu0 %v2000
    %2176 = vmatprep.subr.mxu0 %v1997
    %2177 = vmatpush1.msra.mxu0 %v1996
    %2178 = vmatprep.subr.mxu0 %v2121
    %2179 = vmatpush2.msra.mxu0 %v2120
    %2180 = vmatprep.subr.mxu0 %v2117
    %2181 = vmatpush2.msra.mxu0 %v2116
    %2182 = vmatprep.subr.mxu0 %v2113
    %2183 = vmatpush2.msra.mxu0 %v2112
    %2184 = vmatprep.subr.mxu0 %v2109
    %2185 = vmatpush2.msra.mxu0 %v2108
    %2186 = vmatprep.subr.mxu0 %v2105
    %2187 = vmatpush2.msra.mxu0 %v2104
    %2188 = vmatprep.subr.mxu0 %v2101
    %2189 = vmatpush2.msra.mxu0 %v2100
    %2190 = vmatprep.subr.mxu0 %v2097
    %2191 = vmatpush2.msra.mxu0 %v2096
    %2192 = vmatprep.subr.mxu0 %v2093
    %2193 = vmatpush2.msra.mxu0 %v2092
    %2194 = vmatprep.subr.mxu0 %v2089
    %2195 = vmatpush2.msra.mxu0 %v2088
    %2196 = vmatprep.subr.mxu0 %v2085
    %2197 = vmatpush2.msra.mxu0 %v2084
    %2198 = vmatprep.subr.mxu0 %v2081
    %2199 = vmatpush2.msra.mxu0 %v2080
    %2200 = vmatprep.subr.mxu0 %v2077
    %2201 = vmatpush2.msra.mxu0 %v2076
    %2202 = vmatprep.subr.mxu0 %v2073
    %2203 = vmatpush2.msra.mxu0 %v2072
    %2204 = vmatprep.subr.mxu0 %v2069
    %2205 = vmatpush2.msra.mxu0 %v2068
    %2206 = vmatprep.subr.mxu0 %v2065
    %2207 = vmatpush2.msra.mxu0 %v2064
    %2208 = vmatprep.subr.mxu0 %v2061
    %2209 = vmatpush2.msra.mxu0 %v2060
    %2210 = vmatprep.mubr.f32.mxu0 %v1994
    %2211 = vmatmul.mubr.f32.gmra.mxu0 %v1992
    %v2212 = vpop.f32.mrf.mxu0
    %v2213 = vadd.f32 %v2129, %v2212
    %v2214 = vpop.f32.mrf.mxu0
    %v2215 = vadd.f32 %v2133, %v2214
    %2216 = vdwg.mxu0
    %2217 = vmatprep.subr.mxu0 %v2059
    %2218 = vmatpush1.msra.mxu0 %v2058
    %2219 = vmatprep.subr.mxu0 %v2055
    %2220 = vmatpush1.msra.mxu0 %v2054
    %2221 = vmatprep.subr.mxu0 %v2051
    %2222 = vmatpush1.msra.mxu0 %v2050
    %2223 = vmatprep.subr.mxu0 %v2047
    %2224 = vmatpush1.msra.mxu0 %v2046
    %2225 = vmatprep.subr.mxu0 %v2043
    %2226 = vmatpush1.msra.mxu0 %v2042
    %2227 = vmatprep.subr.mxu0 %v2039
    %2228 = vmatpush1.msra.mxu0 %v2038
    %2229 = vmatprep.subr.mxu0 %v2035
    %2230 = vmatpush1.msra.mxu0 %v2034
    %2231 = vmatprep.subr.mxu0 %v2031
    %2232 = vmatpush1.msra.mxu0 %v2030
    %2233 = vmatprep.subr.mxu0 %v2027
    %2234 = vmatpush1.msra.mxu0 %v2026
    %2235 = vmatprep.subr.mxu0 %v2023
    %2236 = vmatpush1.msra.mxu0 %v2022
    %2237 = vmatprep.subr.mxu0 %v2019
    %2238 = vmatpush1.msra.mxu0 %v2018
    %2239 = vmatprep.subr.mxu0 %v2015
    %2240 = vmatpush1.msra.mxu0 %v2014
    %2241 = vmatprep.subr.mxu0 %v2011
    %2242 = vmatpush1.msra.mxu0 %v2010
    %2243 = vmatprep.subr.mxu0 %v2007
    %2244 = vmatpush1.msra.mxu0 %v2006
    %2245 = vmatprep.subr.mxu0 %v2003
    %2246 = vmatpush1.msra.mxu0 %v2002
    %2247 = vmatprep.subr.mxu0 %v1999
    %2248 = vmatpush1.msra.mxu0 %v1998
    %2249 = vmatprep.subr.mxu0 %v2123
    %2250 = vmatpush2.msra.mxu0 %v2122
    %2251 = vmatprep.subr.mxu0 %v2119
    %2252 = vmatpush2.msra.mxu0 %v2118
    %2253 = vmatprep.subr.mxu0 %v2115
    %2254 = vmatpush2.msra.mxu0 %v2114
    %2255 = vmatprep.subr.mxu0 %v2111
    %2256 = vmatpush2.msra.mxu0 %v2110
    %2257 = vmatprep.subr.mxu0 %v2107
    %2258 = vmatpush2.msra.mxu0 %v2106
    %2259 = vmatprep.subr.mxu0 %v2103
    %2260 = vmatpush2.msra.mxu0 %v2102
    %2261 = vmatprep.subr.mxu0 %v2099
    %2262 = vmatpush2.msra.mxu0 %v2098
    %2263 = vmatprep.subr.mxu0 %v2095
    %2264 = vmatpush2.msra.mxu0 %v2094
    %2265 = vmatprep.subr.mxu0 %v2091
    %2266 = vmatpush2.msra.mxu0 %v2090
    %2267 = vmatprep.subr.mxu0 %v2087
    %2268 = vmatpush2.msra.mxu0 %v2086
    %2269 = vmatprep.subr.mxu0 %v2083
    %2270 = vmatpush2.msra.mxu0 %v2082
    %2271 = vmatprep.subr.mxu0 %v2079
    %2272 = vmatpush2.msra.mxu0 %v2078
    %2273 = vmatprep.subr.mxu0 %v2075
    %2274 = vmatpush2.msra.mxu0 %v2074
    %2275 = vmatprep.subr.mxu0 %v2071
    %2276 = vmatpush2.msra.mxu0 %v2070
    %2277 = vmatprep.subr.mxu0 %v2067
    %2278 = vmatpush2.msra.mxu0 %v2066
    %2279 = vmatprep.subr.mxu0 %v2063
    %2280 = vmatpush2.msra.mxu0 %v2062
    %2281 = vmatprep.mubr.f32.mxu0 %v1994
    %2282 = vmatmul.mubr.f32.gmra.mxu0 %v1992
    %v2283 = vpop.f32.mrf.mxu0
    %v2284 = vadd.f32 %v2137, %v2283
    %v2285 = vpop.f32.mrf.mxu0
    %v2286 = vadd.f32 %v2141, %v2285
    %2287 = vdwg.mxu0
    %v2288 = vmax.f32 %v2213, 0.0
    %v2289 = vmax.f32 %v2215, 0.0
    %v2290 = vmax.f32 %v2284, 0.0
    %v2291 = vmax.f32 %v2286, 0.0
    %v2292 = vld [vmem:[#allocation14] sm:$0xff]
    %v2293 = vld [vmem:[#allocation14 + $0x8] sm:$0xff]
    %v2294 = vld [vmem:[#allocation14 + $0x10] sm:$0xff]
    %v2295 = vld [vmem:[#allocation14 + $0x18] sm:$0xff]
    %v2296 = vld [vmem:[#allocation14 + $0x20] sm:$0xff]
    %v2297 = vld [vmem:[#allocation14 + $0x28] sm:$0xff]
    %v2298 = vld [vmem:[#allocation14 + $0x30] sm:$0xff]
    %v2299 = vld [vmem:[#allocation14 + $0x38] sm:$0xff]
    %v2300 = vld [vmem:[#allocation14 + $0x40] sm:$0xff]
    %v2301 = vld [vmem:[#allocation14 + $0x48] sm:$0xff]
    %v2302 = vld [vmem:[#allocation14 + $0x50] sm:$0xff]
    %v2303 = vld [vmem:[#allocation14 + $0x58] sm:$0xff]
    %v2304 = vld [vmem:[#allocation14 + $0x60] sm:$0xff]
    %v2305 = vld [vmem:[#allocation14 + $0x68] sm:$0xff]
    %v2306 = vld [vmem:[#allocation14 + $0x70] sm:$0xff]
    %v2307 = vld [vmem:[#allocation14 + $0x78] sm:$0xff]
    %v2308 = vld [vmem:[#allocation14 + $0x80] sm:$0xff]
    %v2309 = vld [vmem:[#allocation14 + $0x88] sm:$0xff]
    %v2310 = vld [vmem:[#allocation14 + $0x90] sm:$0xff]
    %v2311 = vld [vmem:[#allocation14 + $0x98] sm:$0xff]
    %v2312 = vld [vmem:[#allocation14 + $0xa0] sm:$0xff]
    %v2313 = vld [vmem:[#allocation14 + $0xa8] sm:$0xff]
    %v2314 = vld [vmem:[#allocation14 + $0xb0] sm:$0xff]
    %v2315 = vld [vmem:[#allocation14 + $0xb8] sm:$0xff]
    %v2316 = vld [vmem:[#allocation14 + $0xc0] sm:$0xff]
    %v2317 = vld [vmem:[#allocation14 + $0xc8] sm:$0xff]
    %v2318 = vld [vmem:[#allocation14 + $0xd0] sm:$0xff]
    %v2319 = vld [vmem:[#allocation14 + $0xd8] sm:$0xff]
    %v2320 = vld [vmem:[#allocation14 + $0xe0] sm:$0xff]
    %v2321 = vld [vmem:[#allocation14 + $0xe8] sm:$0xff]
    %v2322 = vld [vmem:[#allocation14 + $0xf0] sm:$0xff]
    %v2323 = vld [vmem:[#allocation14 + $0xf8] sm:$0xff]
    %v2324 = vld [vmem:[#allocation14 + $0x100] sm:$0xff]
    %v2325 = vld [vmem:[#allocation14 + $0x108] sm:$0xff]
    %v2326 = vld [vmem:[#allocation14 + $0x110] sm:$0xff]
    %v2327 = vld [vmem:[#allocation14 + $0x118] sm:$0xff]
    %v2328 = vld [vmem:[#allocation14 + $0x120] sm:$0xff]
    %v2329 = vld [vmem:[#allocation14 + $0x128] sm:$0xff]
    %v2330 = vld [vmem:[#allocation14 + $0x130] sm:$0xff]
    %v2331 = vld [vmem:[#allocation14 + $0x138] sm:$0xff]
    %v2332 = vld [vmem:[#allocation14 + $0x140] sm:$0xff]
    %v2333 = vld [vmem:[#allocation14 + $0x148] sm:$0xff]
    %v2334 = vld [vmem:[#allocation14 + $0x150] sm:$0xff]
    %v2335 = vld [vmem:[#allocation14 + $0x158] sm:$0xff]
    %v2336 = vld [vmem:[#allocation14 + $0x160] sm:$0xff]
    %v2337 = vld [vmem:[#allocation14 + $0x168] sm:$0xff]
    %v2338 = vld [vmem:[#allocation14 + $0x170] sm:$0xff]
    %v2339 = vld [vmem:[#allocation14 + $0x178] sm:$0xff]
    %v2340 = vld [vmem:[#allocation14 + $0x180] sm:$0xff]
    %v2341 = vld [vmem:[#allocation14 + $0x188] sm:$0xff]
    %v2342 = vld [vmem:[#allocation14 + $0x190] sm:$0xff]
    %v2343 = vld [vmem:[#allocation14 + $0x198] sm:$0xff]
    %v2344 = vld [vmem:[#allocation14 + $0x1a0] sm:$0xff]
    %v2345 = vld [vmem:[#allocation14 + $0x1a8] sm:$0xff]
    %v2346 = vld [vmem:[#allocation14 + $0x1b0] sm:$0xff]
    %v2347 = vld [vmem:[#allocation14 + $0x1b8] sm:$0xff]
    %v2348 = vld [vmem:[#allocation14 + $0x1c0] sm:$0xff]
    %v2349 = vld [vmem:[#allocation14 + $0x1c8] sm:$0xff]
    %v2350 = vld [vmem:[#allocation14 + $0x1d0] sm:$0xff]
    %v2351 = vld [vmem:[#allocation14 + $0x1d8] sm:$0xff]
    %v2352 = vld [vmem:[#allocation14 + $0x1e0] sm:$0xff]
    %v2353 = vld [vmem:[#allocation14 + $0x1e8] sm:$0xff]
    %v2354 = vld [vmem:[#allocation14 + $0x1f0] sm:$0xff]
    %v2355 = vld [vmem:[#allocation14 + $0x1f8] sm:$0xff]
    %v2356 = vld [vmem:[#allocation14 + $0x200] sm:$0xff]
    %v2357 = vld [vmem:[#allocation14 + $0x208] sm:$0xff]
    %v2358 = vld [vmem:[#allocation14 + $0x210] sm:$0xff]
    %v2359 = vld [vmem:[#allocation14 + $0x218] sm:$0xff]
    %v2360 = vld [vmem:[#allocation14 + $0x220] sm:$0xff]
    %v2361 = vld [vmem:[#allocation14 + $0x228] sm:$0xff]
    %v2362 = vld [vmem:[#allocation14 + $0x230] sm:$0xff]
    %v2363 = vld [vmem:[#allocation14 + $0x238] sm:$0xff]
    %v2364 = vld [vmem:[#allocation14 + $0x240] sm:$0xff]
    %v2365 = vld [vmem:[#allocation14 + $0x248] sm:$0xff]
    %v2366 = vld [vmem:[#allocation14 + $0x250] sm:$0xff]
    %v2367 = vld [vmem:[#allocation14 + $0x258] sm:$0xff]
    %v2368 = vld [vmem:[#allocation14 + $0x260] sm:$0xff]
    %v2369 = vld [vmem:[#allocation14 + $0x268] sm:$0xff]
    %v2370 = vld [vmem:[#allocation14 + $0x270] sm:$0xff]
    %v2371 = vld [vmem:[#allocation14 + $0x278] sm:$0xff]
    %v2372 = vld [vmem:[#allocation14 + $0x280] sm:$0xff]
    %v2373 = vld [vmem:[#allocation14 + $0x288] sm:$0xff]
    %v2374 = vld [vmem:[#allocation14 + $0x290] sm:$0xff]
    %v2375 = vld [vmem:[#allocation14 + $0x298] sm:$0xff]
    %v2376 = vld [vmem:[#allocation14 + $0x2a0] sm:$0xff]
    %v2377 = vld [vmem:[#allocation14 + $0x2a8] sm:$0xff]
    %v2378 = vld [vmem:[#allocation14 + $0x2b0] sm:$0xff]
    %v2379 = vld [vmem:[#allocation14 + $0x2b8] sm:$0xff]
    %v2380 = vld [vmem:[#allocation14 + $0x2c0] sm:$0xff]
    %v2381 = vld [vmem:[#allocation14 + $0x2c8] sm:$0xff]
    %v2382 = vld [vmem:[#allocation14 + $0x2d0] sm:$0xff]
    %v2383 = vld [vmem:[#allocation14 + $0x2d8] sm:$0xff]
    %v2384 = vld [vmem:[#allocation14 + $0x2e0] sm:$0xff]
    %v2385 = vld [vmem:[#allocation14 + $0x2e8] sm:$0xff]
    %v2386 = vld [vmem:[#allocation14 + $0x2f0] sm:$0xff]
    %v2387 = vld [vmem:[#allocation14 + $0x2f8] sm:$0xff]
    %v2388 = vld [vmem:[#allocation14 + $0x300] sm:$0xff]
    %v2389 = vld [vmem:[#allocation14 + $0x308] sm:$0xff]
    %v2390 = vld [vmem:[#allocation14 + $0x310] sm:$0xff]
    %v2391 = vld [vmem:[#allocation14 + $0x318] sm:$0xff]
    %v2392 = vld [vmem:[#allocation14 + $0x320] sm:$0xff]
    %v2393 = vld [vmem:[#allocation14 + $0x328] sm:$0xff]
    %v2394 = vld [vmem:[#allocation14 + $0x330] sm:$0xff]
    %v2395 = vld [vmem:[#allocation14 + $0x338] sm:$0xff]
    %v2396 = vld [vmem:[#allocation14 + $0x340] sm:$0xff]
    %v2397 = vld [vmem:[#allocation14 + $0x348] sm:$0xff]
    %v2398 = vld [vmem:[#allocation14 + $0x350] sm:$0xff]
    %v2399 = vld [vmem:[#allocation14 + $0x358] sm:$0xff]
    %v2400 = vld [vmem:[#allocation14 + $0x360] sm:$0xff]
    %v2401 = vld [vmem:[#allocation14 + $0x368] sm:$0xff]
    %v2402 = vld [vmem:[#allocation14 + $0x370] sm:$0xff]
    %v2403 = vld [vmem:[#allocation14 + $0x378] sm:$0xff]
    %v2404 = vld [vmem:[#allocation14 + $0x380] sm:$0xff]
    %v2405 = vld [vmem:[#allocation14 + $0x388] sm:$0xff]
    %v2406 = vld [vmem:[#allocation14 + $0x390] sm:$0xff]
    %v2407 = vld [vmem:[#allocation14 + $0x398] sm:$0xff]
    %v2408 = vld [vmem:[#allocation14 + $0x3a0] sm:$0xff]
    %v2409 = vld [vmem:[#allocation14 + $0x3a8] sm:$0xff]
    %v2410 = vld [vmem:[#allocation14 + $0x3b0] sm:$0xff]
    %v2411 = vld [vmem:[#allocation14 + $0x3b8] sm:$0xff]
    %v2412 = vld [vmem:[#allocation14 + $0x3c0] sm:$0xff]
    %v2413 = vld [vmem:[#allocation14 + $0x3c8] sm:$0xff]
    %v2414 = vld [vmem:[#allocation14 + $0x3d0] sm:$0xff]
    %v2415 = vld [vmem:[#allocation14 + $0x3d8] sm:$0xff]
    %v2416 = vld [vmem:[#allocation14 + $0x3e0] sm:$0xff]
    %v2417 = vld [vmem:[#allocation14 + $0x3e8] sm:$0xff]
    %v2418 = vld [vmem:[#allocation14 + $0x3f0] sm:$0xff]
    %v2419 = vld [vmem:[#allocation14 + $0x3f8] sm:$0xff]
    %v2420 = vld [vmem:[#allocation16] sm:$0x3]
    %v2422 = vlaneseq
    %v2423 = vshrl.u32 %v2422, 7
    %v2424 = vsub.s32 0, %v2423
    %v2425 = vrot.slane %v2420, %v2424
    %v2426 = vlaneseq
    %v2427 = vshrl.u32 %v2426, 7
    %v2428 = vsub.s32 1, %v2427
    %v2429 = vrot.slane %v2420, %v2428
    %2432 = vmatprep.subr.mxu0 %v2323
    %2433 = vmatpush1.msra.mxu0 %v2322
    %2434 = vmatprep.subr.mxu0 %v2321
    %2435 = vmatpush1.msra.mxu0 %v2320
    %2436 = vmatprep.subr.mxu0 %v2319
    %2437 = vmatpush1.msra.mxu0 %v2318
    %2438 = vmatprep.subr.mxu0 %v2317
    %2439 = vmatpush1.msra.mxu0 %v2316
    %2440 = vmatprep.subr.mxu0 %v2315
    %2441 = vmatpush1.msra.mxu0 %v2314
    %2442 = vmatprep.subr.mxu0 %v2313
    %2443 = vmatpush1.msra.mxu0 %v2312
    %2444 = vmatprep.subr.mxu0 %v2311
    %2445 = vmatpush1.msra.mxu0 %v2310
    %2446 = vmatprep.subr.mxu0 %v2309
    %2447 = vmatpush1.msra.mxu0 %v2308
    %2448 = vmatprep.subr.mxu0 %v2307
    %2449 = vmatpush1.msra.mxu0 %v2306
    %2450 = vmatprep.subr.mxu0 %v2305
    %2451 = vmatpush1.msra.mxu0 %v2304
    %2452 = vmatprep.subr.mxu0 %v2303
    %2453 = vmatpush1.msra.mxu0 %v2302
    %2454 = vmatprep.subr.mxu0 %v2301
    %2455 = vmatpush1.msra.mxu0 %v2300
    %2456 = vmatprep.subr.mxu0 %v2299
    %2457 = vmatpush1.msra.mxu0 %v2298
    %2458 = vmatprep.subr.mxu0 %v2297
    %2459 = vmatpush1.msra.mxu0 %v2296
    %2460 = vmatprep.subr.mxu0 %v2295
    %2461 = vmatpush1.msra.mxu0 %v2294
    %2462 = vmatprep.subr.mxu0 %v2293
    %2463 = vmatpush1.msra.mxu0 %v2292
    %2464 = vmatprep.subr.mxu0 %v2355
    %2465 = vmatpush2.msra.mxu0 %v2354
    %2466 = vmatprep.subr.mxu0 %v2353
    %2467 = vmatpush2.msra.mxu0 %v2352
    %2468 = vmatprep.subr.mxu0 %v2351
    %2469 = vmatpush2.msra.mxu0 %v2350
    %2470 = vmatprep.subr.mxu0 %v2349
    %2471 = vmatpush2.msra.mxu0 %v2348
    %2472 = vmatprep.subr.mxu0 %v2347
    %2473 = vmatpush2.msra.mxu0 %v2346
    %2474 = vmatprep.subr.mxu0 %v2345
    %2475 = vmatpush2.msra.mxu0 %v2344
    %2476 = vmatprep.subr.mxu0 %v2343
    %2477 = vmatpush2.msra.mxu0 %v2342
    %2478 = vmatprep.subr.mxu0 %v2341
    %2479 = vmatpush2.msra.mxu0 %v2340
    %2480 = vmatprep.subr.mxu0 %v2339
    %2481 = vmatpush2.msra.mxu0 %v2338
    %2482 = vmatprep.subr.mxu0 %v2337
    %2483 = vmatpush2.msra.mxu0 %v2336
    %2484 = vmatprep.subr.mxu0 %v2335
    %2485 = vmatpush2.msra.mxu0 %v2334
    %2486 = vmatprep.subr.mxu0 %v2333
    %2487 = vmatpush2.msra.mxu0 %v2332
    %2488 = vmatprep.subr.mxu0 %v2331
    %2489 = vmatpush2.msra.mxu0 %v2330
    %2490 = vmatprep.subr.mxu0 %v2329
    %2491 = vmatpush2.msra.mxu0 %v2328
    %2492 = vmatprep.subr.mxu0 %v2327
    %2493 = vmatpush2.msra.mxu0 %v2326
    %2494 = vmatprep.subr.mxu0 %v2325
    %2495 = vmatpush2.msra.mxu0 %v2324
    %2496 = vmatprep.mubr.f32.mxu0 %v2289
    %2497 = vmatmul.mubr.f32.gmra.mxu0 %v2288
    %v2498 = vpop.f32.mrf.mxu0
    %v2499 = vadd.f32 %v2425, %v2498
    %v2500 = vpop.f32.mrf.mxu0
    %v2501 = vadd.f32 %v2429, %v2500
    %2502 = vdwg.mxu0
    %2503 = vmatprep.subr.mxu0 %v2387
    %2504 = vmatpush1.msra.mxu0 %v2386
    %2505 = vmatprep.subr.mxu0 %v2385
    %2506 = vmatpush1.msra.mxu0 %v2384
    %2507 = vmatprep.subr.mxu0 %v2383
    %2508 = vmatpush1.msra.mxu0 %v2382
    %2509 = vmatprep.subr.mxu0 %v2381
    %2510 = vmatpush1.msra.mxu0 %v2380
    %2511 = vmatprep.subr.mxu0 %v2379
    %2512 = vmatpush1.msra.mxu0 %v2378
    %2513 = vmatprep.subr.mxu0 %v2377
    %2514 = vmatpush1.msra.mxu0 %v2376
    %2515 = vmatprep.subr.mxu0 %v2375
    %2516 = vmatpush1.msra.mxu0 %v2374
    %2517 = vmatprep.subr.mxu0 %v2373
    %2518 = vmatpush1.msra.mxu0 %v2372
    %2519 = vmatprep.subr.mxu0 %v2371
    %2520 = vmatpush1.msra.mxu0 %v2370
    %2521 = vmatprep.subr.mxu0 %v2369
    %2522 = vmatpush1.msra.mxu0 %v2368
    %2523 = vmatprep.subr.mxu0 %v2367
    %2524 = vmatpush1.msra.mxu0 %v2366
    %2525 = vmatprep.subr.mxu0 %v2365
    %2526 = vmatpush1.msra.mxu0 %v2364
    %2527 = vmatprep.subr.mxu0 %v2363
    %2528 = vmatpush1.msra.mxu0 %v2362
    %2529 = vmatprep.subr.mxu0 %v2361
    %2530 = vmatpush1.msra.mxu0 %v2360
    %2531 = vmatprep.subr.mxu0 %v2359
    %2532 = vmatpush1.msra.mxu0 %v2358
    %2533 = vmatprep.subr.mxu0 %v2357
    %2534 = vmatpush1.msra.mxu0 %v2356
    %2535 = vmatprep.subr.mxu0 %v2419
    %2536 = vmatpush2.msra.mxu0 %v2418
    %2537 = vmatprep.subr.mxu0 %v2417
    %2538 = vmatpush2.msra.mxu0 %v2416
    %2539 = vmatprep.subr.mxu0 %v2415
    %2540 = vmatpush2.msra.mxu0 %v2414
    %2541 = vmatprep.subr.mxu0 %v2413
    %2542 = vmatpush2.msra.mxu0 %v2412
    %2543 = vmatprep.subr.mxu0 %v2411
    %2544 = vmatpush2.msra.mxu0 %v2410
    %2545 = vmatprep.subr.mxu0 %v2409
    %2546 = vmatpush2.msra.mxu0 %v2408
    %2547 = vmatprep.subr.mxu0 %v2407
    %2548 = vmatpush2.msra.mxu0 %v2406
    %2549 = vmatprep.subr.mxu0 %v2405
    %2550 = vmatpush2.msra.mxu0 %v2404
    %2551 = vmatprep.subr.mxu0 %v2403
    %2552 = vmatpush2.msra.mxu0 %v2402
    %2553 = vmatprep.subr.mxu0 %v2401
    %2554 = vmatpush2.msra.mxu0 %v2400
    %2555 = vmatprep.subr.mxu0 %v2399
    %2556 = vmatpush2.msra.mxu0 %v2398
    %2557 = vmatprep.subr.mxu0 %v2397
    %2558 = vmatpush2.msra.mxu0 %v2396
    %2559 = vmatprep.subr.mxu0 %v2395
    %2560 = vmatpush2.msra.mxu0 %v2394
    %2561 = vmatprep.subr.mxu0 %v2393
    %2562 = vmatpush2.msra.mxu0 %v2392
    %2563 = vmatprep.subr.mxu0 %v2391
    %2564 = vmatpush2.msra.mxu0 %v2390
    %2565 = vmatprep.subr.mxu0 %v2389
    %2566 = vmatpush2.msra.mxu0 %v2388
    %2567 = vmatprep.mubr.f32.mxu0 %v2291
    %2568 = vmatmul.mubr.f32.gmra.mxu0 %v2290
    %v2569 = vpop.f32.mrf.mxu0
    %v2570 = vadd.f32 %v2499, %v2569
    %v2571 = vpop.f32.mrf.mxu0
    %v2572 = vadd.f32 %v2501, %v2571
    %2573 = vdwg.mxu0
    %v2574 = vmax.f32 %v2570, 0.0
    %v2575 = vmax.f32 %v2572, 0.0
    %v2576 = vadd.f32 %v1992, %v2574
    %v2577 = vadd.f32 %v1994, %v2575
    %2578 = vmatprep.subr.mxu0 %v2057
    %2579 = vmatpush1.msra.mxu0 %v2056
    %2580 = vmatprep.subr.mxu0 %v2053
    %2581 = vmatpush1.msra.mxu0 %v2052
    %2582 = vmatprep.subr.mxu0 %v2049
    %2583 = vmatpush1.msra.mxu0 %v2048
    %2584 = vmatprep.subr.mxu0 %v2045
    %2585 = vmatpush1.msra.mxu0 %v2044
    %2586 = vmatprep.subr.mxu0 %v2041
    %2587 = vmatpush1.msra.mxu0 %v2040
    %2588 = vmatprep.subr.mxu0 %v2037
    %2589 = vmatpush1.msra.mxu0 %v2036
    %2590 = vmatprep.subr.mxu0 %v2033
    %2591 = vmatpush1.msra.mxu0 %v2032
    %2592 = vmatprep.subr.mxu0 %v2029
    %2593 = vmatpush1.msra.mxu0 %v2028
    %2594 = vmatprep.subr.mxu0 %v2025
    %2595 = vmatpush1.msra.mxu0 %v2024
    %2596 = vmatprep.subr.mxu0 %v2021
    %2597 = vmatpush1.msra.mxu0 %v2020
    %2598 = vmatprep.subr.mxu0 %v2017
    %2599 = vmatpush1.msra.mxu0 %v2016
    %2600 = vmatprep.subr.mxu0 %v2013
    %2601 = vmatpush1.msra.mxu0 %v2012
    %2602 = vmatprep.subr.mxu0 %v2009
    %2603 = vmatpush1.msra.mxu0 %v2008
    %2604 = vmatprep.subr.mxu0 %v2005
    %2605 = vmatpush1.msra.mxu0 %v2004
    %2606 = vmatprep.subr.mxu0 %v2001
    %2607 = vmatpush1.msra.mxu0 %v2000
    %2608 = vmatprep.subr.mxu0 %v1997
    %2609 = vmatpush1.msra.mxu0 %v1996
    %2610 = vmatprep.subr.mxu0 %v2121
    %2611 = vmatpush2.msra.mxu0 %v2120
    %2612 = vmatprep.subr.mxu0 %v2117
    %2613 = vmatpush2.msra.mxu0 %v2116
    %2614 = vmatprep.subr.mxu0 %v2113
    %2615 = vmatpush2.msra.mxu0 %v2112
    %2616 = vmatprep.subr.mxu0 %v2109
    %2617 = vmatpush2.msra.mxu0 %v2108
    %2618 = vmatprep.subr.mxu0 %v2105
    %2619 = vmatpush2.msra.mxu0 %v2104
    %2620 = vmatprep.subr.mxu0 %v2101
    %2621 = vmatpush2.msra.mxu0 %v2100
    %2622 = vmatprep.subr.mxu0 %v2097
    %2623 = vmatpush2.msra.mxu0 %v2096
    %2624 = vmatprep.subr.mxu0 %v2093
    %2625 = vmatpush2.msra.mxu0 %v2092
    %2626 = vmatprep.subr.mxu0 %v2089
    %2627 = vmatpush2.msra.mxu0 %v2088
    %2628 = vmatprep.subr.mxu0 %v2085
    %2629 = vmatpush2.msra.mxu0 %v2084
    %2630 = vmatprep.subr.mxu0 %v2081
    %2631 = vmatpush2.msra.mxu0 %v2080
    %2632 = vmatprep.subr.mxu0 %v2077
    %2633 = vmatpush2.msra.mxu0 %v2076
    %2634 = vmatprep.subr.mxu0 %v2073
    %2635 = vmatpush2.msra.mxu0 %v2072
    %2636 = vmatprep.subr.mxu0 %v2069
    %2637 = vmatpush2.msra.mxu0 %v2068
    %2638 = vmatprep.subr.mxu0 %v2065
    %2639 = vmatpush2.msra.mxu0 %v2064
    %2640 = vmatprep.subr.mxu0 %v2061
    %2641 = vmatpush2.msra.mxu0 %v2060
    %2642 = vmatprep.mubr.f32.mxu0 %v2577
    %2643 = vmatmul.mubr.f32.gmra.mxu0 %v2576
    %v2644 = vpop.f32.mrf.mxu0
    %v2645 = vadd.f32 %v2129, %v2644
    %v2646 = vpop.f32.mrf.mxu0
    %v2647 = vadd.f32 %v2133, %v2646
    %2648 = vdwg.mxu0
    %2649 = vmatprep.subr.mxu0 %v2059
    %2650 = vmatpush1.msra.mxu0 %v2058
    %2651 = vmatprep.subr.mxu0 %v2055
    %2652 = vmatpush1.msra.mxu0 %v2054
    %2653 = vmatprep.subr.mxu0 %v2051
    %2654 = vmatpush1.msra.mxu0 %v2050
    %2655 = vmatprep.subr.mxu0 %v2047
    %2656 = vmatpush1.msra.mxu0 %v2046
    %2657 = vmatprep.subr.mxu0 %v2043
    %2658 = vmatpush1.msra.mxu0 %v2042
    %2659 = vmatprep.subr.mxu0 %v2039
    %2660 = vmatpush1.msra.mxu0 %v2038
    %2661 = vmatprep.subr.mxu0 %v2035
    %2662 = vmatpush1.msra.mxu0 %v2034
    %2663 = vmatprep.subr.mxu0 %v2031
    %2664 = vmatpush1.msra.mxu0 %v2030
    %2665 = vmatprep.subr.mxu0 %v2027
    %2666 = vmatpush1.msra.mxu0 %v2026
    %2667 = vmatprep.subr.mxu0 %v2023
    %2668 = vmatpush1.msra.mxu0 %v2022
    %2669 = vmatprep.subr.mxu0 %v2019
    %2670 = vmatpush1.msra.mxu0 %v2018
    %2671 = vmatprep.subr.mxu0 %v2015
    %2672 = vmatpush1.msra.mxu0 %v2014
    %2673 = vmatprep.subr.mxu0 %v2011
    %2674 = vmatpush1.msra.mxu0 %v2010
    %2675 = vmatprep.subr.mxu0 %v2007
    %2676 = vmatpush1.msra.mxu0 %v2006
    %2677 = vmatprep.subr.mxu0 %v2003
    %2678 = vmatpush1.msra.mxu0 %v2002
    %2679 = vmatprep.subr.mxu0 %v1999
    %2680 = vmatpush1.msra.mxu0 %v1998
    %2681 = vmatprep.subr.mxu0 %v2123
    %2682 = vmatpush2.msra.mxu0 %v2122
    %2683 = vmatprep.subr.mxu0 %v2119
    %2684 = vmatpush2.msra.mxu0 %v2118
    %2685 = vmatprep.subr.mxu0 %v2115
    %2686 = vmatpush2.msra.mxu0 %v2114
    %2687 = vmatprep.subr.mxu0 %v2111
    %2688 = vmatpush2.msra.mxu0 %v2110
    %2689 = vmatprep.subr.mxu0 %v2107
    %2690 = vmatpush2.msra.mxu0 %v2106
    %2691 = vmatprep.subr.mxu0 %v2103
    %2692 = vmatpush2.msra.mxu0 %v2102
    %2693 = vmatprep.subr.mxu0 %v2099
    %2694 = vmatpush2.msra.mxu0 %v2098
    %2695 = vmatprep.subr.mxu0 %v2095
    %2696 = vmatpush2.msra.mxu0 %v2094
    %2697 = vmatprep.subr.mxu0 %v2091
    %2698 = vmatpush2.msra.mxu0 %v2090
    %2699 = vmatprep.subr.mxu0 %v2087
    %2700 = vmatpush2.msra.mxu0 %v2086
    %2701 = vmatprep.subr.mxu0 %v2083
    %2702 = vmatpush2.msra.mxu0 %v2082
    %2703 = vmatprep.subr.mxu0 %v2079
    %2704 = vmatpush2.msra.mxu0 %v2078
    %2705 = vmatprep.subr.mxu0 %v2075
    %2706 = vmatpush2.msra.mxu0 %v2074
    %2707 = vmatprep.subr.mxu0 %v2071
    %2708 = vmatpush2.msra.mxu0 %v2070
    %2709 = vmatprep.subr.mxu0 %v2067
    %2710 = vmatpush2.msra.mxu0 %v2066
    %2711 = vmatprep.subr.mxu0 %v2063
    %2712 = vmatpush2.msra.mxu0 %v2062
    %2713 = vmatprep.mubr.f32.mxu0 %v2577
    %2714 = vmatmul.mubr.f32.gmra.mxu0 %v2576
    %v2715 = vpop.f32.mrf.mxu0
    %v2716 = vadd.f32 %v2137, %v2715
    %v2717 = vpop.f32.mrf.mxu0
    %v2718 = vadd.f32 %v2141, %v2717
    %2719 = vdwg.mxu0
    %v2720 = vmax.f32 %v2645, 0.0
    %v2721 = vmax.f32 %v2647, 0.0
    %v2722 = vmax.f32 %v2716, 0.0
    %v2723 = vmax.f32 %v2718, 0.0
    %2724 = vmatprep.subr.mxu0 %v2323
    %2725 = vmatpush1.msra.mxu0 %v2322
    %2726 = vmatprep.subr.mxu0 %v2321
    %2727 = vmatpush1.msra.mxu0 %v2320
    %2728 = vmatprep.subr.mxu0 %v2319
    %2729 = vmatpush1.msra.mxu0 %v2318
    %2730 = vmatprep.subr.mxu0 %v2317
    %2731 = vmatpush1.msra.mxu0 %v2316
    %2732 = vmatprep.subr.mxu0 %v2315
    %2733 = vmatpush1.msra.mxu0 %v2314
    %2734 = vmatprep.subr.mxu0 %v2313
    %2735 = vmatpush1.msra.mxu0 %v2312
    %2736 = vmatprep.subr.mxu0 %v2311
    %2737 = vmatpush1.msra.mxu0 %v2310
    %2738 = vmatprep.subr.mxu0 %v2309
    %2739 = vmatpush1.msra.mxu0 %v2308
    %2740 = vmatprep.subr.mxu0 %v2307
    %2741 = vmatpush1.msra.mxu0 %v2306
    %2742 = vmatprep.subr.mxu0 %v2305
    %2743 = vmatpush1.msra.mxu0 %v2304
    %2744 = vmatprep.subr.mxu0 %v2303
    %2745 = vmatpush1.msra.mxu0 %v2302
    %2746 = vmatprep.subr.mxu0 %v2301
    %2747 = vmatpush1.msra.mxu0 %v2300
    %2748 = vmatprep.subr.mxu0 %v2299
    %2749 = vmatpush1.msra.mxu0 %v2298
    %2750 = vmatprep.subr.mxu0 %v2297
    %2751 = vmatpush1.msra.mxu0 %v2296
    %2752 = vmatprep.subr.mxu0 %v2295
    %2753 = vmatpush1.msra.mxu0 %v2294
    %2754 = vmatprep.subr.mxu0 %v2293
    %2755 = vmatpush1.msra.mxu0 %v2292
    %2756 = vmatprep.subr.mxu0 %v2355
    %2757 = vmatpush2.msra.mxu0 %v2354
    %2758 = vmatprep.subr.mxu0 %v2353
    %2759 = vmatpush2.msra.mxu0 %v2352
    %2760 = vmatprep.subr.mxu0 %v2351
    %2761 = vmatpush2.msra.mxu0 %v2350
    %2762 = vmatprep.subr.mxu0 %v2349
    %2763 = vmatpush2.msra.mxu0 %v2348
    %2764 = vmatprep.subr.mxu0 %v2347
    %2765 = vmatpush2.msra.mxu0 %v2346
    %2766 = vmatprep.subr.mxu0 %v2345
    %2767 = vmatpush2.msra.mxu0 %v2344
    %2768 = vmatprep.subr.mxu0 %v2343
    %2769 = vmatpush2.msra.mxu0 %v2342
    %2770 = vmatprep.subr.mxu0 %v2341
    %2771 = vmatpush2.msra.mxu0 %v2340
    %2772 = vmatprep.subr.mxu0 %v2339
    %2773 = vmatpush2.msra.mxu0 %v2338
    %2774 = vmatprep.subr.mxu0 %v2337
    %2775 = vmatpush2.msra.mxu0 %v2336
    %2776 = vmatprep.subr.mxu0 %v2335
    %2777 = vmatpush2.msra.mxu0 %v2334
    %2778 = vmatprep.subr.mxu0 %v2333
    %2779 = vmatpush2.msra.mxu0 %v2332
    %2780 = vmatprep.subr.mxu0 %v2331
    %2781 = vmatpush2.msra.mxu0 %v2330
    %2782 = vmatprep.subr.mxu0 %v2329
    %2783 = vmatpush2.msra.mxu0 %v2328
    %2784 = vmatprep.subr.mxu0 %v2327
    %2785 = vmatpush2.msra.mxu0 %v2326
    %2786 = vmatprep.subr.mxu0 %v2325
    %2787 = vmatpush2.msra.mxu0 %v2324
    %2788 = vmatprep.mubr.f32.mxu0 %v2721
    %2789 = vmatmul.mubr.f32.gmra.mxu0 %v2720
    %v2790 = vpop.f32.mrf.mxu0
    %v2791 = vadd.f32 %v2425, %v2790
    %v2792 = vpop.f32.mrf.mxu0
    %v2793 = vadd.f32 %v2429, %v2792
    %2794 = vdwg.mxu0
    %2795 = vmatprep.subr.mxu0 %v2387
    %2796 = vmatpush1.msra.mxu0 %v2386
    %2797 = vmatprep.subr.mxu0 %v2385
    %2798 = vmatpush1.msra.mxu0 %v2384
    %2799 = vmatprep.subr.mxu0 %v2383
    %2800 = vmatpush1.msra.mxu0 %v2382
    %2801 = vmatprep.subr.mxu0 %v2381
    %2802 = vmatpush1.msra.mxu0 %v2380
    %2803 = vmatprep.subr.mxu0 %v2379
    %2804 = vmatpush1.msra.mxu0 %v2378
    %2805 = vmatprep.subr.mxu0 %v2377
    %2806 = vmatpush1.msra.mxu0 %v2376
    %2807 = vmatprep.subr.mxu0 %v2375
    %2808 = vmatpush1.msra.mxu0 %v2374
    %2809 = vmatprep.subr.mxu0 %v2373
    %2810 = vmatpush1.msra.mxu0 %v2372
    %2811 = vmatprep.subr.mxu0 %v2371
    %2812 = vmatpush1.msra.mxu0 %v2370
    %2813 = vmatprep.subr.mxu0 %v2369
    %2814 = vmatpush1.msra.mxu0 %v2368
    %2815 = vmatprep.subr.mxu0 %v2367
    %2816 = vmatpush1.msra.mxu0 %v2366
    %2817 = vmatprep.subr.mxu0 %v2365
    %2818 = vmatpush1.msra.mxu0 %v2364
    %2819 = vmatprep.subr.mxu0 %v2363
    %2820 = vmatpush1.msra.mxu0 %v2362
    %2821 = vmatprep.subr.mxu0 %v2361
    %2822 = vmatpush1.msra.mxu0 %v2360
    %2823 = vmatprep.subr.mxu0 %v2359
    %2824 = vmatpush1.msra.mxu0 %v2358
    %2825 = vmatprep.subr.mxu0 %v2357
    %2826 = vmatpush1.msra.mxu0 %v2356
    %2827 = vmatprep.subr.mxu0 %v2419
    %2828 = vmatpush2.msra.mxu0 %v2418
    %2829 = vmatprep.subr.mxu0 %v2417
    %2830 = vmatpush2.msra.mxu0 %v2416
    %2831 = vmatprep.subr.mxu0 %v2415
    %2832 = vmatpush2.msra.mxu0 %v2414
    %2833 = vmatprep.subr.mxu0 %v2413
    %2834 = vmatpush2.msra.mxu0 %v2412
    %2835 = vmatprep.subr.mxu0 %v2411
    %2836 = vmatpush2.msra.mxu0 %v2410
    %2837 = vmatprep.subr.mxu0 %v2409
    %2838 = vmatpush2.msra.mxu0 %v2408
    %2839 = vmatprep.subr.mxu0 %v2407
    %2840 = vmatpush2.msra.mxu0 %v2406
    %2841 = vmatprep.subr.mxu0 %v2405
    %2842 = vmatpush2.msra.mxu0 %v2404
    %2843 = vmatprep.subr.mxu0 %v2403
    %2844 = vmatpush2.msra.mxu0 %v2402
    %2845 = vmatprep.subr.mxu0 %v2401
    %2846 = vmatpush2.msra.mxu0 %v2400
    %2847 = vmatprep.subr.mxu0 %v2399
    %2848 = vmatpush2.msra.mxu0 %v2398
    %2849 = vmatprep.subr.mxu0 %v2397
    %2850 = vmatpush2.msra.mxu0 %v2396
    %2851 = vmatprep.subr.mxu0 %v2395
    %2852 = vmatpush2.msra.mxu0 %v2394
    %2853 = vmatprep.subr.mxu0 %v2393
    %2854 = vmatpush2.msra.mxu0 %v2392
    %2855 = vmatprep.subr.mxu0 %v2391
    %2856 = vmatpush2.msra.mxu0 %v2390
    %2857 = vmatprep.subr.mxu0 %v2389
    %2858 = vmatpush2.msra.mxu0 %v2388
    %2859 = vmatprep.mubr.f32.mxu0 %v2723
    %2860 = vmatmul.mubr.f32.gmra.mxu0 %v2722
    %v2861 = vpop.f32.mrf.mxu0
    %v2862 = vadd.f32 %v2791, %v2861
    %v2863 = vpop.f32.mrf.mxu0
    %v2864 = vadd.f32 %v2793, %v2863
    %2865 = vdwg.mxu0
    %v2866 = vmax.f32 %v2862, 0.0
    %v2867 = vmax.f32 %v2864, 0.0
    %v2868 = vadd.f32 %v2576, %v2866
    %v2869 = vadd.f32 %v2577, %v2867
    %2870 = vmatprep.subr.mxu0 %v2057
    %2871 = vmatpush1.msra.mxu0 %v2056
    %2872 = vmatprep.subr.mxu0 %v2053
    %2873 = vmatpush1.msra.mxu0 %v2052
    %2874 = vmatprep.subr.mxu0 %v2049
    %2875 = vmatpush1.msra.mxu0 %v2048
    %2876 = vmatprep.subr.mxu0 %v2045
    %2877 = vmatpush1.msra.mxu0 %v2044
    %2878 = vmatprep.subr.mxu0 %v2041
    %2879 = vmatpush1.msra.mxu0 %v2040
    %2880 = vmatprep.subr.mxu0 %v2037
    %2881 = vmatpush1.msra.mxu0 %v2036
    %2882 = vmatprep.subr.mxu0 %v2033
    %2883 = vmatpush1.msra.mxu0 %v2032
    %2884 = vmatprep.subr.mxu0 %v2029
    %2885 = vmatpush1.msra.mxu0 %v2028
    %2886 = vmatprep.subr.mxu0 %v2025
    %2887 = vmatpush1.msra.mxu0 %v2024
    %2888 = vmatprep.subr.mxu0 %v2021
    %2889 = vmatpush1.msra.mxu0 %v2020
    %2890 = vmatprep.subr.mxu0 %v2017
    %2891 = vmatpush1.msra.mxu0 %v2016
    %2892 = vmatprep.subr.mxu0 %v2013
    %2893 = vmatpush1.msra.mxu0 %v2012
    %2894 = vmatprep.subr.mxu0 %v2009
    %2895 = vmatpush1.msra.mxu0 %v2008
    %2896 = vmatprep.subr.mxu0 %v2005
    %2897 = vmatpush1.msra.mxu0 %v2004
    %2898 = vmatprep.subr.mxu0 %v2001
    %2899 = vmatpush1.msra.mxu0 %v2000
    %2900 = vmatprep.subr.mxu0 %v1997
    %2901 = vmatpush1.msra.mxu0 %v1996
    %2902 = vmatprep.subr.mxu0 %v2121
    %2903 = vmatpush2.msra.mxu0 %v2120
    %2904 = vmatprep.subr.mxu0 %v2117
    %2905 = vmatpush2.msra.mxu0 %v2116
    %2906 = vmatprep.subr.mxu0 %v2113
    %2907 = vmatpush2.msra.mxu0 %v2112
    %2908 = vmatprep.subr.mxu0 %v2109
    %2909 = vmatpush2.msra.mxu0 %v2108
    %2910 = vmatprep.subr.mxu0 %v2105
    %2911 = vmatpush2.msra.mxu0 %v2104
    %2912 = vmatprep.subr.mxu0 %v2101
    %2913 = vmatpush2.msra.mxu0 %v2100
    %2914 = vmatprep.subr.mxu0 %v2097
    %2915 = vmatpush2.msra.mxu0 %v2096
    %2916 = vmatprep.subr.mxu0 %v2093
    %2917 = vmatpush2.msra.mxu0 %v2092
    %2918 = vmatprep.subr.mxu0 %v2089
    %2919 = vmatpush2.msra.mxu0 %v2088
    %2920 = vmatprep.subr.mxu0 %v2085
    %2921 = vmatpush2.msra.mxu0 %v2084
    %2922 = vmatprep.subr.mxu0 %v2081
    %2923 = vmatpush2.msra.mxu0 %v2080
    %2924 = vmatprep.subr.mxu0 %v2077
    %2925 = vmatpush2.msra.mxu0 %v2076
    %2926 = vmatprep.subr.mxu0 %v2073
    %2927 = vmatpush2.msra.mxu0 %v2072
    %2928 = vmatprep.subr.mxu0 %v2069
    %2929 = vmatpush2.msra.mxu0 %v2068
    %2930 = vmatprep.subr.mxu0 %v2065
    %2931 = vmatpush2.msra.mxu0 %v2064
    %2932 = vmatprep.subr.mxu0 %v2061
    %2933 = vmatpush2.msra.mxu0 %v2060
    %2934 = vmatprep.mubr.f32.mxu0 %v2869
    %2935 = vmatmul.mubr.f32.gmra.mxu0 %v2868
    %v2936 = vpop.f32.mrf.mxu0
    %v2937 = vadd.f32 %v2129, %v2936
    %v2938 = vpop.f32.mrf.mxu0
    %v2939 = vadd.f32 %v2133, %v2938
    %2940 = vdwg.mxu0
    %2941 = vmatprep.subr.mxu0 %v2059
    %2942 = vmatpush1.msra.mxu0 %v2058
    %2943 = vmatprep.subr.mxu0 %v2055
    %2944 = vmatpush1.msra.mxu0 %v2054
    %2945 = vmatprep.subr.mxu0 %v2051
    %2946 = vmatpush1.msra.mxu0 %v2050
    %2947 = vmatprep.subr.mxu0 %v2047
    %2948 = vmatpush1.msra.mxu0 %v2046
    %2949 = vmatprep.subr.mxu0 %v2043
    %2950 = vmatpush1.msra.mxu0 %v2042
    %2951 = vmatprep.subr.mxu0 %v2039
    %2952 = vmatpush1.msra.mxu0 %v2038
    %2953 = vmatprep.subr.mxu0 %v2035
    %2954 = vmatpush1.msra.mxu0 %v2034
    %2955 = vmatprep.subr.mxu0 %v2031
    %2956 = vmatpush1.msra.mxu0 %v2030
    %2957 = vmatprep.subr.mxu0 %v2027
    %2958 = vmatpush1.msra.mxu0 %v2026
    %2959 = vmatprep.subr.mxu0 %v2023
    %2960 = vmatpush1.msra.mxu0 %v2022
    %2961 = vmatprep.subr.mxu0 %v2019
    %2962 = vmatpush1.msra.mxu0 %v2018
    %2963 = vmatprep.subr.mxu0 %v2015
    %2964 = vmatpush1.msra.mxu0 %v2014
    %2965 = vmatprep.subr.mxu0 %v2011
    %2966 = vmatpush1.msra.mxu0 %v2010
    %2967 = vmatprep.subr.mxu0 %v2007
    %2968 = vmatpush1.msra.mxu0 %v2006
    %2969 = vmatprep.subr.mxu0 %v2003
    %2970 = vmatpush1.msra.mxu0 %v2002
    %2971 = vmatprep.subr.mxu0 %v1999
    %2972 = vmatpush1.msra.mxu0 %v1998
    %2973 = vmatprep.subr.mxu0 %v2123
    %2974 = vmatpush2.msra.mxu0 %v2122
    %2975 = vmatprep.subr.mxu0 %v2119
    %2976 = vmatpush2.msra.mxu0 %v2118
    %2977 = vmatprep.subr.mxu0 %v2115
    %2978 = vmatpush2.msra.mxu0 %v2114
    %2979 = vmatprep.subr.mxu0 %v2111
    %2980 = vmatpush2.msra.mxu0 %v2110
    %2981 = vmatprep.subr.mxu0 %v2107
    %2982 = vmatpush2.msra.mxu0 %v2106
    %2983 = vmatprep.subr.mxu0 %v2103
    %2984 = vmatpush2.msra.mxu0 %v2102
    %2985 = vmatprep.subr.mxu0 %v2099
    %2986 = vmatpush2.msra.mxu0 %v2098
    %2987 = vmatprep.subr.mxu0 %v2095
    %2988 = vmatpush2.msra.mxu0 %v2094
    %2989 = vmatprep.subr.mxu0 %v2091
    %2990 = vmatpush2.msra.mxu0 %v2090
    %2991 = vmatprep.subr.mxu0 %v2087
    %2992 = vmatpush2.msra.mxu0 %v2086
    %2993 = vmatprep.subr.mxu0 %v2083
    %2994 = vmatpush2.msra.mxu0 %v2082
    %2995 = vmatprep.subr.mxu0 %v2079
    %2996 = vmatpush2.msra.mxu0 %v2078
    %2997 = vmatprep.subr.mxu0 %v2075
    %2998 = vmatpush2.msra.mxu0 %v2074
    %2999 = vmatprep.subr.mxu0 %v2071
    %3000 = vmatpush2.msra.mxu0 %v2070
    %3001 = vmatprep.subr.mxu0 %v2067
    %3002 = vmatpush2.msra.mxu0 %v2066
    %3003 = vmatprep.subr.mxu0 %v2063
    %3004 = vmatpush2.msra.mxu0 %v2062
    %3005 = vmatprep.mubr.f32.mxu0 %v2869
    %3006 = vmatmul.mubr.f32.gmra.mxu0 %v2868
    %v3007 = vpop.f32.mrf.mxu0
    %v3008 = vadd.f32 %v2137, %v3007
    %v3009 = vpop.f32.mrf.mxu0
    %v3010 = vadd.f32 %v2141, %v3009
    %3011 = vdwg.mxu0
    %v3012 = vmax.f32 %v2937, 0.0
    %v3013 = vmax.f32 %v2939, 0.0
    %v3014 = vmax.f32 %v3008, 0.0
    %v3015 = vmax.f32 %v3010, 0.0
    %3016 = vmatprep.subr.mxu0 %v2323
    %3017 = vmatpush1.msra.mxu0 %v2322
    %3018 = vmatprep.subr.mxu0 %v2321
    %3019 = vmatpush1.msra.mxu0 %v2320
    %3020 = vmatprep.subr.mxu0 %v2319
    %3021 = vmatpush1.msra.mxu0 %v2318
    %3022 = vmatprep.subr.mxu0 %v2317
    %3023 = vmatpush1.msra.mxu0 %v2316
    %3024 = vmatprep.subr.mxu0 %v2315
    %3025 = vmatpush1.msra.mxu0 %v2314
    %3026 = vmatprep.subr.mxu0 %v2313
    %3027 = vmatpush1.msra.mxu0 %v2312
    %3028 = vmatprep.subr.mxu0 %v2311
    %3029 = vmatpush1.msra.mxu0 %v2310
    %3030 = vmatprep.subr.mxu0 %v2309
    %3031 = vmatpush1.msra.mxu0 %v2308
    %3032 = vmatprep.subr.mxu0 %v2307
    %3033 = vmatpush1.msra.mxu0 %v2306
    %3034 = vmatprep.subr.mxu0 %v2305
    %3035 = vmatpush1.msra.mxu0 %v2304
    %3036 = vmatprep.subr.mxu0 %v2303
    %3037 = vmatpush1.msra.mxu0 %v2302
    %3038 = vmatprep.subr.mxu0 %v2301
    %3039 = vmatpush1.msra.mxu0 %v2300
    %3040 = vmatprep.subr.mxu0 %v2299
    %3041 = vmatpush1.msra.mxu0 %v2298
    %3042 = vmatprep.subr.mxu0 %v2297
    %3043 = vmatpush1.msra.mxu0 %v2296
    %3044 = vmatprep.subr.mxu0 %v2295
    %3045 = vmatpush1.msra.mxu0 %v2294
    %3046 = vmatprep.subr.mxu0 %v2293
    %3047 = vmatpush1.msra.mxu0 %v2292
    %3048 = vmatprep.subr.mxu0 %v2355
    %3049 = vmatpush2.msra.mxu0 %v2354
    %3050 = vmatprep.subr.mxu0 %v2353
    %3051 = vmatpush2.msra.mxu0 %v2352
    %3052 = vmatprep.subr.mxu0 %v2351
    %3053 = vmatpush2.msra.mxu0 %v2350
    %3054 = vmatprep.subr.mxu0 %v2349
    %3055 = vmatpush2.msra.mxu0 %v2348
    %3056 = vmatprep.subr.mxu0 %v2347
    %3057 = vmatpush2.msra.mxu0 %v2346
    %3058 = vmatprep.subr.mxu0 %v2345
    %3059 = vmatpush2.msra.mxu0 %v2344
    %3060 = vmatprep.subr.mxu0 %v2343
    %3061 = vmatpush2.msra.mxu0 %v2342
    %3062 = vmatprep.subr.mxu0 %v2341
    %3063 = vmatpush2.msra.mxu0 %v2340
    %3064 = vmatprep.subr.mxu0 %v2339
    %3065 = vmatpush2.msra.mxu0 %v2338
    %3066 = vmatprep.subr.mxu0 %v2337
    %3067 = vmatpush2.msra.mxu0 %v2336
    %3068 = vmatprep.subr.mxu0 %v2335
    %3069 = vmatpush2.msra.mxu0 %v2334
    %3070 = vmatprep.subr.mxu0 %v2333
    %3071 = vmatpush2.msra.mxu0 %v2332
    %3072 = vmatprep.subr.mxu0 %v2331
    %3073 = vmatpush2.msra.mxu0 %v2330
    %3074 = vmatprep.subr.mxu0 %v2329
    %3075 = vmatpush2.msra.mxu0 %v2328
    %3076 = vmatprep.subr.mxu0 %v2327
    %3077 = vmatpush2.msra.mxu0 %v2326
    %3078 = vmatprep.subr.mxu0 %v2325
    %3079 = vmatpush2.msra.mxu0 %v2324
    %3080 = vmatprep.mubr.f32.mxu0 %v3013
    %3081 = vmatmul.mubr.f32.gmra.mxu0 %v3012
    %v3082 = vpop.f32.mrf.mxu0
    %v3083 = vadd.f32 %v2425, %v3082
    %v3084 = vpop.f32.mrf.mxu0
    %v3085 = vadd.f32 %v2429, %v3084
    %3086 = vdwg.mxu0
    %3087 = vmatprep.subr.mxu0 %v2387
    %3088 = vmatpush1.msra.mxu0 %v2386
    %3089 = vmatprep.subr.mxu0 %v2385
    %3090 = vmatpush1.msra.mxu0 %v2384
    %3091 = vmatprep.subr.mxu0 %v2383
    %3092 = vmatpush1.msra.mxu0 %v2382
    %3093 = vmatprep.subr.mxu0 %v2381
    %3094 = vmatpush1.msra.mxu0 %v2380
    %3095 = vmatprep.subr.mxu0 %v2379
    %3096 = vmatpush1.msra.mxu0 %v2378
    %3097 = vmatprep.subr.mxu0 %v2377
    %3098 = vmatpush1.msra.mxu0 %v2376
    %3099 = vmatprep.subr.mxu0 %v2375
    %3100 = vmatpush1.msra.mxu0 %v2374
    %3101 = vmatprep.subr.mxu0 %v2373
    %3102 = vmatpush1.msra.mxu0 %v2372
    %3103 = vmatprep.subr.mxu0 %v2371
    %3104 = vmatpush1.msra.mxu0 %v2370
    %3105 = vmatprep.subr.mxu0 %v2369
    %3106 = vmatpush1.msra.mxu0 %v2368
    %3107 = vmatprep.subr.mxu0 %v2367
    %3108 = vmatpush1.msra.mxu0 %v2366
    %3109 = vmatprep.subr.mxu0 %v2365
    %3110 = vmatpush1.msra.mxu0 %v2364
    %3111 = vmatprep.subr.mxu0 %v2363
    %3112 = vmatpush1.msra.mxu0 %v2362
    %3113 = vmatprep.subr.mxu0 %v2361
    %3114 = vmatpush1.msra.mxu0 %v2360
    %3115 = vmatprep.subr.mxu0 %v2359
    %3116 = vmatpush1.msra.mxu0 %v2358
    %3117 = vmatprep.subr.mxu0 %v2357
    %3118 = vmatpush1.msra.mxu0 %v2356
    %3119 = vmatprep.subr.mxu0 %v2419
    %3120 = vmatpush2.msra.mxu0 %v2418
    %3121 = vmatprep.subr.mxu0 %v2417
    %3122 = vmatpush2.msra.mxu0 %v2416
    %3123 = vmatprep.subr.mxu0 %v2415
    %3124 = vmatpush2.msra.mxu0 %v2414
    %3125 = vmatprep.subr.mxu0 %v2413
    %3126 = vmatpush2.msra.mxu0 %v2412
    %3127 = vmatprep.subr.mxu0 %v2411
    %3128 = vmatpush2.msra.mxu0 %v2410
    %3129 = vmatprep.subr.mxu0 %v2409
    %3130 = vmatpush2.msra.mxu0 %v2408
    %3131 = vmatprep.subr.mxu0 %v2407
    %3132 = vmatpush2.msra.mxu0 %v2406
    %3133 = vmatprep.subr.mxu0 %v2405
    %3134 = vmatpush2.msra.mxu0 %v2404
    %3135 = vmatprep.subr.mxu0 %v2403
    %3136 = vmatpush2.msra.mxu0 %v2402
    %3137 = vmatprep.subr.mxu0 %v2401
    %3138 = vmatpush2.msra.mxu0 %v2400
    %3139 = vmatprep.subr.mxu0 %v2399
    %3140 = vmatpush2.msra.mxu0 %v2398
    %3141 = vmatprep.subr.mxu0 %v2397
    %3142 = vmatpush2.msra.mxu0 %v2396
    %3143 = vmatprep.subr.mxu0 %v2395
    %3144 = vmatpush2.msra.mxu0 %v2394
    %3145 = vmatprep.subr.mxu0 %v2393
    %3146 = vmatpush2.msra.mxu0 %v2392
    %3147 = vmatprep.subr.mxu0 %v2391
    %3148 = vmatpush2.msra.mxu0 %v2390
    %3149 = vmatprep.subr.mxu0 %v2389
    %3150 = vmatpush2.msra.mxu0 %v2388
    %3151 = vmatprep.mubr.f32.mxu0 %v3015
    %3152 = vmatmul.mubr.f32.gmra.mxu0 %v3014
    %v3153 = vpop.f32.mrf.mxu0
    %v3154 = vadd.f32 %v3083, %v3153
    %v3155 = vpop.f32.mrf.mxu0
    %v3156 = vadd.f32 %v3085, %v3155
    %3157 = vdwg.mxu0
    %v3158 = vmax.f32 %v3154, 0.0
    %v3159 = vmax.f32 %v3156, 0.0
    %v3160 = vadd.f32 %v2868, %v3158
    %v3161 = vadd.f32 %v2869, %v3159
    %3162 = vmatprep.subr.mxu0 %v2057
    %3163 = vmatpush1.msra.mxu0 %v2056
    %3164 = vmatprep.subr.mxu0 %v2053
    %3165 = vmatpush1.msra.mxu0 %v2052
    %3166 = vmatprep.subr.mxu0 %v2049
    %3167 = vmatpush1.msra.mxu0 %v2048
    %3168 = vmatprep.subr.mxu0 %v2045
    %3169 = vmatpush1.msra.mxu0 %v2044
    %3170 = vmatprep.subr.mxu0 %v2041
    %3171 = vmatpush1.msra.mxu0 %v2040
    %3172 = vmatprep.subr.mxu0 %v2037
    %3173 = vmatpush1.msra.mxu0 %v2036
    %3174 = vmatprep.subr.mxu0 %v2033
    %3175 = vmatpush1.msra.mxu0 %v2032
    %3176 = vmatprep.subr.mxu0 %v2029
    %3177 = vmatpush1.msra.mxu0 %v2028
    %3178 = vmatprep.subr.mxu0 %v2025
    %3179 = vmatpush1.msra.mxu0 %v2024
    %3180 = vmatprep.subr.mxu0 %v2021
    %3181 = vmatpush1.msra.mxu0 %v2020
    %3182 = vmatprep.subr.mxu0 %v2017
    %3183 = vmatpush1.msra.mxu0 %v2016
    %3184 = vmatprep.subr.mxu0 %v2013
    %3185 = vmatpush1.msra.mxu0 %v2012
    %3186 = vmatprep.subr.mxu0 %v2009
    %3187 = vmatpush1.msra.mxu0 %v2008
    %3188 = vmatprep.subr.mxu0 %v2005
    %3189 = vmatpush1.msra.mxu0 %v2004
    %3190 = vmatprep.subr.mxu0 %v2001
    %3191 = vmatpush1.msra.mxu0 %v2000
    %3192 = vmatprep.subr.mxu0 %v1997
    %3193 = vmatpush1.msra.mxu0 %v1996
    %3194 = vmatprep.subr.mxu0 %v2121
    %3195 = vmatpush2.msra.mxu0 %v2120
    %3196 = vmatprep.subr.mxu0 %v2117
    %3197 = vmatpush2.msra.mxu0 %v2116
    %3198 = vmatprep.subr.mxu0 %v2113
    %3199 = vmatpush2.msra.mxu0 %v2112
    %3200 = vmatprep.subr.mxu0 %v2109
    %3201 = vmatpush2.msra.mxu0 %v2108
    %3202 = vmatprep.subr.mxu0 %v2105
    %3203 = vmatpush2.msra.mxu0 %v2104
    %3204 = vmatprep.subr.mxu0 %v2101
    %3205 = vmatpush2.msra.mxu0 %v2100
    %3206 = vmatprep.subr.mxu0 %v2097
    %3207 = vmatpush2.msra.mxu0 %v2096
    %3208 = vmatprep.subr.mxu0 %v2093
    %3209 = vmatpush2.msra.mxu0 %v2092
    %3210 = vmatprep.subr.mxu0 %v2089
    %3211 = vmatpush2.msra.mxu0 %v2088
    %3212 = vmatprep.subr.mxu0 %v2085
    %3213 = vmatpush2.msra.mxu0 %v2084
    %3214 = vmatprep.subr.mxu0 %v2081
    %3215 = vmatpush2.msra.mxu0 %v2080
    %3216 = vmatprep.subr.mxu0 %v2077
    %3217 = vmatpush2.msra.mxu0 %v2076
    %3218 = vmatprep.subr.mxu0 %v2073
    %3219 = vmatpush2.msra.mxu0 %v2072
    %3220 = vmatprep.subr.mxu0 %v2069
    %3221 = vmatpush2.msra.mxu0 %v2068
    %3222 = vmatprep.subr.mxu0 %v2065
    %3223 = vmatpush2.msra.mxu0 %v2064
    %3224 = vmatprep.subr.mxu0 %v2061
    %3225 = vmatpush2.msra.mxu0 %v2060
    %3226 = vmatprep.mubr.f32.mxu0 %v3161
    %3227 = vmatmul.mubr.f32.gmra.mxu0 %v3160
    %v3228 = vpop.f32.mrf.mxu0
    %v3229 = vadd.f32 %v2129, %v3228
    %v3230 = vpop.f32.mrf.mxu0
    %v3231 = vadd.f32 %v2133, %v3230
    %3232 = vdwg.mxu0
    %3233 = vmatprep.subr.mxu0 %v2059
    %3234 = vmatpush1.msra.mxu0 %v2058
    %3235 = vmatprep.subr.mxu0 %v2055
    %3236 = vmatpush1.msra.mxu0 %v2054
    %3237 = vmatprep.subr.mxu0 %v2051
    %3238 = vmatpush1.msra.mxu0 %v2050
    %3239 = vmatprep.subr.mxu0 %v2047
    %3240 = vmatpush1.msra.mxu0 %v2046
    %3241 = vmatprep.subr.mxu0 %v2043
    %3242 = vmatpush1.msra.mxu0 %v2042
    %3243 = vmatprep.subr.mxu0 %v2039
    %3244 = vmatpush1.msra.mxu0 %v2038
    %3245 = vmatprep.subr.mxu0 %v2035
    %3246 = vmatpush1.msra.mxu0 %v2034
    %3247 = vmatprep.subr.mxu0 %v2031
    %3248 = vmatpush1.msra.mxu0 %v2030
    %3249 = vmatprep.subr.mxu0 %v2027
    %3250 = vmatpush1.msra.mxu0 %v2026
    %3251 = vmatprep.subr.mxu0 %v2023
    %3252 = vmatpush1.msra.mxu0 %v2022
    %3253 = vmatprep.subr.mxu0 %v2019
    %3254 = vmatpush1.msra.mxu0 %v2018
    %3255 = vmatprep.subr.mxu0 %v2015
    %3256 = vmatpush1.msra.mxu0 %v2014
    %3257 = vmatprep.subr.mxu0 %v2011
    %3258 = vmatpush1.msra.mxu0 %v2010
    %3259 = vmatprep.subr.mxu0 %v2007
    %3260 = vmatpush1.msra.mxu0 %v2006
    %3261 = vmatprep.subr.mxu0 %v2003
    %3262 = vmatpush1.msra.mxu0 %v2002
    %3263 = vmatprep.subr.mxu0 %v1999
    %3264 = vmatpush1.msra.mxu0 %v1998
    %3265 = vmatprep.subr.mxu0 %v2123
    %3266 = vmatpush2.msra.mxu0 %v2122
    %3267 = vmatprep.subr.mxu0 %v2119
    %3268 = vmatpush2.msra.mxu0 %v2118
    %3269 = vmatprep.subr.mxu0 %v2115
    %3270 = vmatpush2.msra.mxu0 %v2114
    %3271 = vmatprep.subr.mxu0 %v2111
    %3272 = vmatpush2.msra.mxu0 %v2110
    %3273 = vmatprep.subr.mxu0 %v2107
    %3274 = vmatpush2.msra.mxu0 %v2106
    %3275 = vmatprep.subr.mxu0 %v2103
    %3276 = vmatpush2.msra.mxu0 %v2102
    %3277 = vmatprep.subr.mxu0 %v2099
    %3278 = vmatpush2.msra.mxu0 %v2098
    %3279 = vmatprep.subr.mxu0 %v2095
    %3280 = vmatpush2.msra.mxu0 %v2094
    %3281 = vmatprep.subr.mxu0 %v2091
    %3282 = vmatpush2.msra.mxu0 %v2090
    %3283 = vmatprep.subr.mxu0 %v2087
    %3284 = vmatpush2.msra.mxu0 %v2086
    %3285 = vmatprep.subr.mxu0 %v2083
    %3286 = vmatpush2.msra.mxu0 %v2082
    %3287 = vmatprep.subr.mxu0 %v2079
    %3288 = vmatpush2.msra.mxu0 %v2078
    %3289 = vmatprep.subr.mxu0 %v2075
    %3290 = vmatpush2.msra.mxu0 %v2074
    %3291 = vmatprep.subr.mxu0 %v2071
    %3292 = vmatpush2.msra.mxu0 %v2070
    %3293 = vmatprep.subr.mxu0 %v2067
    %3294 = vmatpush2.msra.mxu0 %v2066
    %3295 = vmatprep.subr.mxu0 %v2063
    %3296 = vmatpush2.msra.mxu0 %v2062
    %3297 = vmatprep.mubr.f32.mxu0 %v3161
    %3298 = vmatmul.mubr.f32.gmra.mxu0 %v3160
    %v3299 = vpop.f32.mrf.mxu0
    %v3300 = vadd.f32 %v2137, %v3299
    %v3301 = vpop.f32.mrf.mxu0
    %v3302 = vadd.f32 %v2141, %v3301
    %3303 = vdwg.mxu0
    %v3304 = vmax.f32 %v3229, 0.0
    %v3305 = vmax.f32 %v3231, 0.0
    %v3306 = vmax.f32 %v3300, 0.0
    %v3307 = vmax.f32 %v3302, 0.0
    %3308 = vmatprep.subr.mxu0 %v2323
    %3309 = vmatpush1.msra.mxu0 %v2322
    %3310 = vmatprep.subr.mxu0 %v2321
    %3311 = vmatpush1.msra.mxu0 %v2320
    %3312 = vmatprep.subr.mxu0 %v2319
    %3313 = vmatpush1.msra.mxu0 %v2318
    %3314 = vmatprep.subr.mxu0 %v2317
    %3315 = vmatpush1.msra.mxu0 %v2316
    %3316 = vmatprep.subr.mxu0 %v2315
    %3317 = vmatpush1.msra.mxu0 %v2314
    %3318 = vmatprep.subr.mxu0 %v2313
    %3319 = vmatpush1.msra.mxu0 %v2312
    %3320 = vmatprep.subr.mxu0 %v2311
    %3321 = vmatpush1.msra.mxu0 %v2310
    %3322 = vmatprep.subr.mxu0 %v2309
    %3323 = vmatpush1.msra.mxu0 %v2308
    %3324 = vmatprep.subr.mxu0 %v2307
    %3325 = vmatpush1.msra.mxu0 %v2306
    %3326 = vmatprep.subr.mxu0 %v2305
    %3327 = vmatpush1.msra.mxu0 %v2304
    %3328 = vmatprep.subr.mxu0 %v2303
    %3329 = vmatpush1.msra.mxu0 %v2302
    %3330 = vmatprep.subr.mxu0 %v2301
    %3331 = vmatpush1.msra.mxu0 %v2300
    %3332 = vmatprep.subr.mxu0 %v2299
    %3333 = vmatpush1.msra.mxu0 %v2298
    %3334 = vmatprep.subr.mxu0 %v2297
    %3335 = vmatpush1.msra.mxu0 %v2296
    %3336 = vmatprep.subr.mxu0 %v2295
    %3337 = vmatpush1.msra.mxu0 %v2294
    %3338 = vmatprep.subr.mxu0 %v2293
    %3339 = vmatpush1.msra.mxu0 %v2292
    %3340 = vmatprep.subr.mxu0 %v2355
    %3341 = vmatpush2.msra.mxu0 %v2354
    %3342 = vmatprep.subr.mxu0 %v2353
    %3343 = vmatpush2.msra.mxu0 %v2352
    %3344 = vmatprep.subr.mxu0 %v2351
    %3345 = vmatpush2.msra.mxu0 %v2350
    %3346 = vmatprep.subr.mxu0 %v2349
    %3347 = vmatpush2.msra.mxu0 %v2348
    %3348 = vmatprep.subr.mxu0 %v2347
    %3349 = vmatpush2.msra.mxu0 %v2346
    %3350 = vmatprep.subr.mxu0 %v2345
    %3351 = vmatpush2.msra.mxu0 %v2344
    %3352 = vmatprep.subr.mxu0 %v2343
    %3353 = vmatpush2.msra.mxu0 %v2342
    %3354 = vmatprep.subr.mxu0 %v2341
    %3355 = vmatpush2.msra.mxu0 %v2340
    %3356 = vmatprep.subr.mxu0 %v2339
    %3357 = vmatpush2.msra.mxu0 %v2338
    %3358 = vmatprep.subr.mxu0 %v2337
    %3359 = vmatpush2.msra.mxu0 %v2336
    %3360 = vmatprep.subr.mxu0 %v2335
    %3361 = vmatpush2.msra.mxu0 %v2334
    %3362 = vmatprep.subr.mxu0 %v2333
    %3363 = vmatpush2.msra.mxu0 %v2332
    %3364 = vmatprep.subr.mxu0 %v2331
    %3365 = vmatpush2.msra.mxu0 %v2330
    %3366 = vmatprep.subr.mxu0 %v2329
    %3367 = vmatpush2.msra.mxu0 %v2328
    %3368 = vmatprep.subr.mxu0 %v2327
    %3369 = vmatpush2.msra.mxu0 %v2326
    %3370 = vmatprep.subr.mxu0 %v2325
    %3371 = vmatpush2.msra.mxu0 %v2324
    %3372 = vmatprep.mubr.f32.mxu0 %v3305
    %3373 = vmatmul.mubr.f32.gmra.mxu0 %v3304
    %v3374 = vpop.f32.mrf.mxu0
    %v3375 = vadd.f32 %v2425, %v3374
    %v3376 = vpop.f32.mrf.mxu0
    %v3377 = vadd.f32 %v2429, %v3376
    %3378 = vdwg.mxu0
    %3379 = vmatprep.subr.mxu0 %v2387
    %3380 = vmatpush1.msra.mxu0 %v2386
    %3381 = vmatprep.subr.mxu0 %v2385
    %3382 = vmatpush1.msra.mxu0 %v2384
    %3383 = vmatprep.subr.mxu0 %v2383
    %3384 = vmatpush1.msra.mxu0 %v2382
    %3385 = vmatprep.subr.mxu0 %v2381
    %3386 = vmatpush1.msra.mxu0 %v2380
    %3387 = vmatprep.subr.mxu0 %v2379
    %3388 = vmatpush1.msra.mxu0 %v2378
    %3389 = vmatprep.subr.mxu0 %v2377
    %3390 = vmatpush1.msra.mxu0 %v2376
    %3391 = vmatprep.subr.mxu0 %v2375
    %3392 = vmatpush1.msra.mxu0 %v2374
    %3393 = vmatprep.subr.mxu0 %v2373
    %3394 = vmatpush1.msra.mxu0 %v2372
    %3395 = vmatprep.subr.mxu0 %v2371
    %3396 = vmatpush1.msra.mxu0 %v2370
    %3397 = vmatprep.subr.mxu0 %v2369
    %3398 = vmatpush1.msra.mxu0 %v2368
    %3399 = vmatprep.subr.mxu0 %v2367
    %3400 = vmatpush1.msra.mxu0 %v2366
    %3401 = vmatprep.subr.mxu0 %v2365
    %3402 = vmatpush1.msra.mxu0 %v2364
    %3403 = vmatprep.subr.mxu0 %v2363
    %3404 = vmatpush1.msra.mxu0 %v2362
    %3405 = vmatprep.subr.mxu0 %v2361
    %3406 = vmatpush1.msra.mxu0 %v2360
    %3407 = vmatprep.subr.mxu0 %v2359
    %3408 = vmatpush1.msra.mxu0 %v2358
    %3409 = vmatprep.subr.mxu0 %v2357
    %3410 = vmatpush1.msra.mxu0 %v2356
    %3411 = vmatprep.subr.mxu0 %v2419
    %3412 = vmatpush2.msra.mxu0 %v2418
    %3413 = vmatprep.subr.mxu0 %v2417
    %3414 = vmatpush2.msra.mxu0 %v2416
    %3415 = vmatprep.subr.mxu0 %v2415
    %3416 = vmatpush2.msra.mxu0 %v2414
    %3417 = vmatprep.subr.mxu0 %v2413
    %3418 = vmatpush2.msra.mxu0 %v2412
    %3419 = vmatprep.subr.mxu0 %v2411
    %3420 = vmatpush2.msra.mxu0 %v2410
    %3421 = vmatprep.subr.mxu0 %v2409
    %3422 = vmatpush2.msra.mxu0 %v2408
    %3423 = vmatprep.subr.mxu0 %v2407
    %3424 = vmatpush2.msra.mxu0 %v2406
    %3425 = vmatprep.subr.mxu0 %v2405
    %3426 = vmatpush2.msra.mxu0 %v2404
    %3427 = vmatprep.subr.mxu0 %v2403
    %3428 = vmatpush2.msra.mxu0 %v2402
    %3429 = vmatprep.subr.mxu0 %v2401
    %3430 = vmatpush2.msra.mxu0 %v2400
    %3431 = vmatprep.subr.mxu0 %v2399
    %3432 = vmatpush2.msra.mxu0 %v2398
    %3433 = vmatprep.subr.mxu0 %v2397
    %3434 = vmatpush2.msra.mxu0 %v2396
    %3435 = vmatprep.subr.mxu0 %v2395
    %3436 = vmatpush2.msra.mxu0 %v2394
    %3437 = vmatprep.subr.mxu0 %v2393
    %3438 = vmatpush2.msra.mxu0 %v2392
    %3439 = vmatprep.subr.mxu0 %v2391
    %3440 = vmatpush2.msra.mxu0 %v2390
    %3441 = vmatprep.subr.mxu0 %v2389
    %3442 = vmatpush2.msra.mxu0 %v2388
    %3443 = vmatprep.mubr.f32.mxu0 %v3307
    %3444 = vmatmul.mubr.f32.gmra.mxu0 %v3306
    %v3445 = vpop.f32.mrf.mxu0
    %v3446 = vadd.f32 %v3375, %v3445
    %v3447 = vpop.f32.mrf.mxu0
    %v3448 = vadd.f32 %v3377, %v3447
    %3449 = vdwg.mxu0
    %v3450 = vmax.f32 %v3446, 0.0
    %v3451 = vmax.f32 %v3448, 0.0
    %v3452 = vadd.f32 %v3160, %v3450
    %v3453 = vadd.f32 %v3161, %v3451
    %3454 = vmatprep.subr.mxu0 %v2057
    %3455 = vmatpush1.msra.mxu0 %v2056
    %3456 = vmatprep.subr.mxu0 %v2053
    %3457 = vmatpush1.msra.mxu0 %v2052
    %3458 = vmatprep.subr.mxu0 %v2049
    %3459 = vmatpush1.msra.mxu0 %v2048
    %3460 = vmatprep.subr.mxu0 %v2045
    %3461 = vmatpush1.msra.mxu0 %v2044
    %3462 = vmatprep.subr.mxu0 %v2041
    %3463 = vmatpush1.msra.mxu0 %v2040
    %3464 = vmatprep.subr.mxu0 %v2037
    %3465 = vmatpush1.msra.mxu0 %v2036
    %3466 = vmatprep.subr.mxu0 %v2033
    %3467 = vmatpush1.msra.mxu0 %v2032
    %3468 = vmatprep.subr.mxu0 %v2029
    %3469 = vmatpush1.msra.mxu0 %v2028
    %3470 = vmatprep.subr.mxu0 %v2025
    %3471 = vmatpush1.msra.mxu0 %v2024
    %3472 = vmatprep.subr.mxu0 %v2021
    %3473 = vmatpush1.msra.mxu0 %v2020
    %3474 = vmatprep.subr.mxu0 %v2017
    %3475 = vmatpush1.msra.mxu0 %v2016
    %3476 = vmatprep.subr.mxu0 %v2013
    %3477 = vmatpush1.msra.mxu0 %v2012
    %3478 = vmatprep.subr.mxu0 %v2009
    %3479 = vmatpush1.msra.mxu0 %v2008
    %3480 = vmatprep.subr.mxu0 %v2005
    %3481 = vmatpush1.msra.mxu0 %v2004
    %3482 = vmatprep.subr.mxu0 %v2001
    %3483 = vmatpush1.msra.mxu0 %v2000
    %3484 = vmatprep.subr.mxu0 %v1997
    %3485 = vmatpush1.msra.mxu0 %v1996
    %3486 = vmatprep.subr.mxu0 %v2121
    %3487 = vmatpush2.msra.mxu0 %v2120
    %3488 = vmatprep.subr.mxu0 %v2117
    %3489 = vmatpush2.msra.mxu0 %v2116
    %3490 = vmatprep.subr.mxu0 %v2113
    %3491 = vmatpush2.msra.mxu0 %v2112
    %3492 = vmatprep.subr.mxu0 %v2109
    %3493 = vmatpush2.msra.mxu0 %v2108
    %3494 = vmatprep.subr.mxu0 %v2105
    %3495 = vmatpush2.msra.mxu0 %v2104
    %3496 = vmatprep.subr.mxu0 %v2101
    %3497 = vmatpush2.msra.mxu0 %v2100
    %3498 = vmatprep.subr.mxu0 %v2097
    %3499 = vmatpush2.msra.mxu0 %v2096
    %3500 = vmatprep.subr.mxu0 %v2093
    %3501 = vmatpush2.msra.mxu0 %v2092
    %3502 = vmatprep.subr.mxu0 %v2089
    %3503 = vmatpush2.msra.mxu0 %v2088
    %3504 = vmatprep.subr.mxu0 %v2085
    %3505 = vmatpush2.msra.mxu0 %v2084
    %3506 = vmatprep.subr.mxu0 %v2081
    %3507 = vmatpush2.msra.mxu0 %v2080
    %3508 = vmatprep.subr.mxu0 %v2077
    %3509 = vmatpush2.msra.mxu0 %v2076
    %3510 = vmatprep.subr.mxu0 %v2073
    %3511 = vmatpush2.msra.mxu0 %v2072
    %3512 = vmatprep.subr.mxu0 %v2069
    %3513 = vmatpush2.msra.mxu0 %v2068
    %3514 = vmatprep.subr.mxu0 %v2065
    %3515 = vmatpush2.msra.mxu0 %v2064
    %3516 = vmatprep.subr.mxu0 %v2061
    %3517 = vmatpush2.msra.mxu0 %v2060
    %3518 = vmatprep.mubr.f32.mxu0 %v3453
    %3519 = vmatmul.mubr.f32.gmra.mxu0 %v3452
    %v3520 = vpop.f32.mrf.mxu0
    %v3521 = vadd.f32 %v2129, %v3520
    %v3522 = vpop.f32.mrf.mxu0
    %v3523 = vadd.f32 %v2133, %v3522
    %3524 = vdwg.mxu0
    %3525 = vmatprep.subr.mxu0 %v2059
    %3526 = vmatpush1.msra.mxu0 %v2058
    %3527 = vmatprep.subr.mxu0 %v2055
    %3528 = vmatpush1.msra.mxu0 %v2054
    %3529 = vmatprep.subr.mxu0 %v2051
    %3530 = vmatpush1.msra.mxu0 %v2050
    %3531 = vmatprep.subr.mxu0 %v2047
    %3532 = vmatpush1.msra.mxu0 %v2046
    %3533 = vmatprep.subr.mxu0 %v2043
    %3534 = vmatpush1.msra.mxu0 %v2042
    %3535 = vmatprep.subr.mxu0 %v2039
    %3536 = vmatpush1.msra.mxu0 %v2038
    %3537 = vmatprep.subr.mxu0 %v2035
    %3538 = vmatpush1.msra.mxu0 %v2034
    %3539 = vmatprep.subr.mxu0 %v2031
    %3540 = vmatpush1.msra.mxu0 %v2030
    %3541 = vmatprep.subr.mxu0 %v2027
    %3542 = vmatpush1.msra.mxu0 %v2026
    %3543 = vmatprep.subr.mxu0 %v2023
    %3544 = vmatpush1.msra.mxu0 %v2022
    %3545 = vmatprep.subr.mxu0 %v2019
    %3546 = vmatpush1.msra.mxu0 %v2018
    %3547 = vmatprep.subr.mxu0 %v2015
    %3548 = vmatpush1.msra.mxu0 %v2014
    %3549 = vmatprep.subr.mxu0 %v2011
    %3550 = vmatpush1.msra.mxu0 %v2010
    %3551 = vmatprep.subr.mxu0 %v2007
    %3552 = vmatpush1.msra.mxu0 %v2006
    %3553 = vmatprep.subr.mxu0 %v2003
    %3554 = vmatpush1.msra.mxu0 %v2002
    %3555 = vmatprep.subr.mxu0 %v1999
    %3556 = vmatpush1.msra.mxu0 %v1998
    %3557 = vmatprep.subr.mxu0 %v2123
    %3558 = vmatpush2.msra.mxu0 %v2122
    %3559 = vmatprep.subr.mxu0 %v2119
    %3560 = vmatpush2.msra.mxu0 %v2118
    %3561 = vmatprep.subr.mxu0 %v2115
    %3562 = vmatpush2.msra.mxu0 %v2114
    %3563 = vmatprep.subr.mxu0 %v2111
    %3564 = vmatpush2.msra.mxu0 %v2110
    %3565 = vmatprep.subr.mxu0 %v2107
    %3566 = vmatpush2.msra.mxu0 %v2106
    %3567 = vmatprep.subr.mxu0 %v2103
    %3568 = vmatpush2.msra.mxu0 %v2102
    %3569 = vmatprep.subr.mxu0 %v2099
    %3570 = vmatpush2.msra.mxu0 %v2098
    %3571 = vmatprep.subr.mxu0 %v2095
    %3572 = vmatpush2.msra.mxu0 %v2094
    %3573 = vmatprep.subr.mxu0 %v2091
    %3574 = vmatpush2.msra.mxu0 %v2090
    %3575 = vmatprep.subr.mxu0 %v2087
    %3576 = vmatpush2.msra.mxu0 %v2086
    %3577 = vmatprep.subr.mxu0 %v2083
    %3578 = vmatpush2.msra.mxu0 %v2082
    %3579 = vmatprep.subr.mxu0 %v2079
    %3580 = vmatpush2.msra.mxu0 %v2078
    %3581 = vmatprep.subr.mxu0 %v2075
    %3582 = vmatpush2.msra.mxu0 %v2074
    %3583 = vmatprep.subr.mxu0 %v2071
    %3584 = vmatpush2.msra.mxu0 %v2070
    %3585 = vmatprep.subr.mxu0 %v2067
    %3586 = vmatpush2.msra.mxu0 %v2066
    %3587 = vmatprep.subr.mxu0 %v2063
    %3588 = vmatpush2.msra.mxu0 %v2062
    %3589 = vmatprep.mubr.f32.mxu0 %v3453
    %3590 = vmatmul.mubr.f32.gmra.mxu0 %v3452
    %v3591 = vpop.f32.mrf.mxu0
    %v3592 = vadd.f32 %v2137, %v3591
    %v3593 = vpop.f32.mrf.mxu0
    %v3594 = vadd.f32 %v2141, %v3593
    %3595 = vdwg.mxu0
    %v3596 = vmax.f32 %v3521, 0.0
    %v3597 = vmax.f32 %v3523, 0.0
    %v3598 = vmax.f32 %v3592, 0.0
    %v3599 = vmax.f32 %v3594, 0.0
    %3600 = vmatprep.subr.mxu0 %v2323
    %3601 = vmatpush1.msra.mxu0 %v2322
    %3602 = vmatprep.subr.mxu0 %v2321
    %3603 = vmatpush1.msra.mxu0 %v2320
    %3604 = vmatprep.subr.mxu0 %v2319
    %3605 = vmatpush1.msra.mxu0 %v2318
    %3606 = vmatprep.subr.mxu0 %v2317
    %3607 = vmatpush1.msra.mxu0 %v2316
    %3608 = vmatprep.subr.mxu0 %v2315
    %3609 = vmatpush1.msra.mxu0 %v2314
    %3610 = vmatprep.subr.mxu0 %v2313
    %3611 = vmatpush1.msra.mxu0 %v2312
    %3612 = vmatprep.subr.mxu0 %v2311
    %3613 = vmatpush1.msra.mxu0 %v2310
    %3614 = vmatprep.subr.mxu0 %v2309
    %3615 = vmatpush1.msra.mxu0 %v2308
    %3616 = vmatprep.subr.mxu0 %v2307
    %3617 = vmatpush1.msra.mxu0 %v2306
    %3618 = vmatprep.subr.mxu0 %v2305
    %3619 = vmatpush1.msra.mxu0 %v2304
    %3620 = vmatprep.subr.mxu0 %v2303
    %3621 = vmatpush1.msra.mxu0 %v2302
    %3622 = vmatprep.subr.mxu0 %v2301
    %3623 = vmatpush1.msra.mxu0 %v2300
    %3624 = vmatprep.subr.mxu0 %v2299
    %3625 = vmatpush1.msra.mxu0 %v2298
    %3626 = vmatprep.subr.mxu0 %v2297
    %3627 = vmatpush1.msra.mxu0 %v2296
    %3628 = vmatprep.subr.mxu0 %v2295
    %3629 = vmatpush1.msra.mxu0 %v2294
    %3630 = vmatprep.subr.mxu0 %v2293
    %3631 = vmatpush1.msra.mxu0 %v2292
    %3632 = vmatprep.subr.mxu0 %v2355
    %3633 = vmatpush2.msra.mxu0 %v2354
    %3634 = vmatprep.subr.mxu0 %v2353
    %3635 = vmatpush2.msra.mxu0 %v2352
    %3636 = vmatprep.subr.mxu0 %v2351
    %3637 = vmatpush2.msra.mxu0 %v2350
    %3638 = vmatprep.subr.mxu0 %v2349
    %3639 = vmatpush2.msra.mxu0 %v2348
    %3640 = vmatprep.subr.mxu0 %v2347
    %3641 = vmatpush2.msra.mxu0 %v2346
    %3642 = vmatprep.subr.mxu0 %v2345
    %3643 = vmatpush2.msra.mxu0 %v2344
    %3644 = vmatprep.subr.mxu0 %v2343
    %3645 = vmatpush2.msra.mxu0 %v2342
    %3646 = vmatprep.subr.mxu0 %v2341
    %3647 = vmatpush2.msra.mxu0 %v2340
    %3648 = vmatprep.subr.mxu0 %v2339
    %3649 = vmatpush2.msra.mxu0 %v2338
    %3650 = vmatprep.subr.mxu0 %v2337
    %3651 = vmatpush2.msra.mxu0 %v2336
    %3652 = vmatprep.subr.mxu0 %v2335
    %3653 = vmatpush2.msra.mxu0 %v2334
    %3654 = vmatprep.subr.mxu0 %v2333
    %3655 = vmatpush2.msra.mxu0 %v2332
    %3656 = vmatprep.subr.mxu0 %v2331
    %3657 = vmatpush2.msra.mxu0 %v2330
    %3658 = vmatprep.subr.mxu0 %v2329
    %3659 = vmatpush2.msra.mxu0 %v2328
    %3660 = vmatprep.subr.mxu0 %v2327
    %3661 = vmatpush2.msra.mxu0 %v2326
    %3662 = vmatprep.subr.mxu0 %v2325
    %3663 = vmatpush2.msra.mxu0 %v2324
    %3664 = vmatprep.mubr.f32.mxu0 %v3597
    %3665 = vmatmul.mubr.f32.gmra.mxu0 %v3596
    %v3666 = vpop.f32.mrf.mxu0
    %v3667 = vadd.f32 %v2425, %v3666
    %v3668 = vpop.f32.mrf.mxu0
    %v3669 = vadd.f32 %v2429, %v3668
    %3670 = vdwg.mxu0
    %3671 = vmatprep.subr.mxu0 %v2387
    %3672 = vmatpush1.msra.mxu0 %v2386
    %3673 = vmatprep.subr.mxu0 %v2385
    %3674 = vmatpush1.msra.mxu0 %v2384
    %3675 = vmatprep.subr.mxu0 %v2383
    %3676 = vmatpush1.msra.mxu0 %v2382
    %3677 = vmatprep.subr.mxu0 %v2381
    %3678 = vmatpush1.msra.mxu0 %v2380
    %3679 = vmatprep.subr.mxu0 %v2379
    %3680 = vmatpush1.msra.mxu0 %v2378
    %3681 = vmatprep.subr.mxu0 %v2377
    %3682 = vmatpush1.msra.mxu0 %v2376
    %3683 = vmatprep.subr.mxu0 %v2375
    %3684 = vmatpush1.msra.mxu0 %v2374
    %3685 = vmatprep.subr.mxu0 %v2373
    %3686 = vmatpush1.msra.mxu0 %v2372
    %3687 = vmatprep.subr.mxu0 %v2371
    %3688 = vmatpush1.msra.mxu0 %v2370
    %3689 = vmatprep.subr.mxu0 %v2369
    %3690 = vmatpush1.msra.mxu0 %v2368
    %3691 = vmatprep.subr.mxu0 %v2367
    %3692 = vmatpush1.msra.mxu0 %v2366
    %3693 = vmatprep.subr.mxu0 %v2365
    %3694 = vmatpush1.msra.mxu0 %v2364
    %3695 = vmatprep.subr.mxu0 %v2363
    %3696 = vmatpush1.msra.mxu0 %v2362
    %3697 = vmatprep.subr.mxu0 %v2361
    %3698 = vmatpush1.msra.mxu0 %v2360
    %3699 = vmatprep.subr.mxu0 %v2359
    %3700 = vmatpush1.msra.mxu0 %v2358
    %3701 = vmatprep.subr.mxu0 %v2357
    %3702 = vmatpush1.msra.mxu0 %v2356
    %3703 = vmatprep.subr.mxu0 %v2419
    %3704 = vmatpush2.msra.mxu0 %v2418
    %3705 = vmatprep.subr.mxu0 %v2417
    %3706 = vmatpush2.msra.mxu0 %v2416
    %3707 = vmatprep.subr.mxu0 %v2415
    %3708 = vmatpush2.msra.mxu0 %v2414
    %3709 = vmatprep.subr.mxu0 %v2413
    %3710 = vmatpush2.msra.mxu0 %v2412
    %3711 = vmatprep.subr.mxu0 %v2411
    %3712 = vmatpush2.msra.mxu0 %v2410
    %3713 = vmatprep.subr.mxu0 %v2409
    %3714 = vmatpush2.msra.mxu0 %v2408
    %3715 = vmatprep.subr.mxu0 %v2407
    %3716 = vmatpush2.msra.mxu0 %v2406
    %3717 = vmatprep.subr.mxu0 %v2405
    %3718 = vmatpush2.msra.mxu0 %v2404
    %3719 = vmatprep.subr.mxu0 %v2403
    %3720 = vmatpush2.msra.mxu0 %v2402
    %3721 = vmatprep.subr.mxu0 %v2401
    %3722 = vmatpush2.msra.mxu0 %v2400
    %3723 = vmatprep.subr.mxu0 %v2399
    %3724 = vmatpush2.msra.mxu0 %v2398
    %3725 = vmatprep.subr.mxu0 %v2397
    %3726 = vmatpush2.msra.mxu0 %v2396
    %3727 = vmatprep.subr.mxu0 %v2395
    %3728 = vmatpush2.msra.mxu0 %v2394
    %3729 = vmatprep.subr.mxu0 %v2393
    %3730 = vmatpush2.msra.mxu0 %v2392
    %3731 = vmatprep.subr.mxu0 %v2391
    %3732 = vmatpush2.msra.mxu0 %v2390
    %3733 = vmatprep.subr.mxu0 %v2389
    %3734 = vmatpush2.msra.mxu0 %v2388
    %3735 = vmatprep.mubr.f32.mxu0 %v3599
    %3736 = vmatmul.mubr.f32.gmra.mxu0 %v3598
    %v3737 = vpop.f32.mrf.mxu0
    %v3738 = vadd.f32 %v3667, %v3737
    %v3739 = vpop.f32.mrf.mxu0
    %v3740 = vadd.f32 %v3669, %v3739
    %3741 = vdwg.mxu0
    %v3742 = vmax.f32 %v3738, 0.0
    %v3743 = vmax.f32 %v3740, 0.0
    %v3744 = vadd.f32 %v3452, %v3742
    %v3745 = vadd.f32 %v3453, %v3743
    %3746 = vmatprep.subr.mxu0 %v2057
    %3747 = vmatpush1.msra.mxu0 %v2056
    %3748 = vmatprep.subr.mxu0 %v2053
    %3749 = vmatpush1.msra.mxu0 %v2052
    %3750 = vmatprep.subr.mxu0 %v2049
    %3751 = vmatpush1.msra.mxu0 %v2048
    %3752 = vmatprep.subr.mxu0 %v2045
    %3753 = vmatpush1.msra.mxu0 %v2044
    %3754 = vmatprep.subr.mxu0 %v2041
    %3755 = vmatpush1.msra.mxu0 %v2040
    %3756 = vmatprep.subr.mxu0 %v2037
    %3757 = vmatpush1.msra.mxu0 %v2036
    %3758 = vmatprep.subr.mxu0 %v2033
    %3759 = vmatpush1.msra.mxu0 %v2032
    %3760 = vmatprep.subr.mxu0 %v2029
    %3761 = vmatpush1.msra.mxu0 %v2028
    %3762 = vmatprep.subr.mxu0 %v2025
    %3763 = vmatpush1.msra.mxu0 %v2024
    %3764 = vmatprep.subr.mxu0 %v2021
    %3765 = vmatpush1.msra.mxu0 %v2020
    %3766 = vmatprep.subr.mxu0 %v2017
    %3767 = vmatpush1.msra.mxu0 %v2016
    %3768 = vmatprep.subr.mxu0 %v2013
    %3769 = vmatpush1.msra.mxu0 %v2012
    %3770 = vmatprep.subr.mxu0 %v2009
    %3771 = vmatpush1.msra.mxu0 %v2008
    %3772 = vmatprep.subr.mxu0 %v2005
    %3773 = vmatpush1.msra.mxu0 %v2004
    %3774 = vmatprep.subr.mxu0 %v2001
    %3775 = vmatpush1.msra.mxu0 %v2000
    %3776 = vmatprep.subr.mxu0 %v1997
    %3777 = vmatpush1.msra.mxu0 %v1996
    %3778 = vmatprep.subr.mxu0 %v2121
    %3779 = vmatpush2.msra.mxu0 %v2120
    %3780 = vmatprep.subr.mxu0 %v2117
    %3781 = vmatpush2.msra.mxu0 %v2116
    %3782 = vmatprep.subr.mxu0 %v2113
    %3783 = vmatpush2.msra.mxu0 %v2112
    %3784 = vmatprep.subr.mxu0 %v2109
    %3785 = vmatpush2.msra.mxu0 %v2108
    %3786 = vmatprep.subr.mxu0 %v2105
    %3787 = vmatpush2.msra.mxu0 %v2104
    %3788 = vmatprep.subr.mxu0 %v2101
    %3789 = vmatpush2.msra.mxu0 %v2100
    %3790 = vmatprep.subr.mxu0 %v2097
    %3791 = vmatpush2.msra.mxu0 %v2096
    %3792 = vmatprep.subr.mxu0 %v2093
    %3793 = vmatpush2.msra.mxu0 %v2092
    %3794 = vmatprep.subr.mxu0 %v2089
    %3795 = vmatpush2.msra.mxu0 %v2088
    %3796 = vmatprep.subr.mxu0 %v2085
    %3797 = vmatpush2.msra.mxu0 %v2084
    %3798 = vmatprep.subr.mxu0 %v2081
    %3799 = vmatpush2.msra.mxu0 %v2080
    %3800 = vmatprep.subr.mxu0 %v2077
    %3801 = vmatpush2.msra.mxu0 %v2076
    %3802 = vmatprep.subr.mxu0 %v2073
    %3803 = vmatpush2.msra.mxu0 %v2072
    %3804 = vmatprep.subr.mxu0 %v2069
    %3805 = vmatpush2.msra.mxu0 %v2068
    %3806 = vmatprep.subr.mxu0 %v2065
    %3807 = vmatpush2.msra.mxu0 %v2064
    %3808 = vmatprep.subr.mxu0 %v2061
    %3809 = vmatpush2.msra.mxu0 %v2060
    %3810 = vmatprep.mubr.f32.mxu0 %v3745
    %3811 = vmatmul.mubr.f32.gmra.mxu0 %v3744
    %v3812 = vpop.f32.mrf.mxu0
    %v3813 = vadd.f32 %v2129, %v3812
    %v3814 = vpop.f32.mrf.mxu0
    %v3815 = vadd.f32 %v2133, %v3814
    %3816 = vdwg.mxu0
    %3817 = vmatprep.subr.mxu0 %v2059
    %3818 = vmatpush1.msra.mxu0 %v2058
    %3819 = vmatprep.subr.mxu0 %v2055
    %3820 = vmatpush1.msra.mxu0 %v2054
    %3821 = vmatprep.subr.mxu0 %v2051
    %3822 = vmatpush1.msra.mxu0 %v2050
    %3823 = vmatprep.subr.mxu0 %v2047
    %3824 = vmatpush1.msra.mxu0 %v2046
    %3825 = vmatprep.subr.mxu0 %v2043
    %3826 = vmatpush1.msra.mxu0 %v2042
    %3827 = vmatprep.subr.mxu0 %v2039
    %3828 = vmatpush1.msra.mxu0 %v2038
    %3829 = vmatprep.subr.mxu0 %v2035
    %3830 = vmatpush1.msra.mxu0 %v2034
    %3831 = vmatprep.subr.mxu0 %v2031
    %3832 = vmatpush1.msra.mxu0 %v2030
    %3833 = vmatprep.subr.mxu0 %v2027
    %3834 = vmatpush1.msra.mxu0 %v2026
    %3835 = vmatprep.subr.mxu0 %v2023
    %3836 = vmatpush1.msra.mxu0 %v2022
    %3837 = vmatprep.subr.mxu0 %v2019
    %3838 = vmatpush1.msra.mxu0 %v2018
    %3839 = vmatprep.subr.mxu0 %v2015
    %3840 = vmatpush1.msra.mxu0 %v2014
    %3841 = vmatprep.subr.mxu0 %v2011
    %3842 = vmatpush1.msra.mxu0 %v2010
    %3843 = vmatprep.subr.mxu0 %v2007
    %3844 = vmatpush1.msra.mxu0 %v2006
    %3845 = vmatprep.subr.mxu0 %v2003
    %3846 = vmatpush1.msra.mxu0 %v2002
    %3847 = vmatprep.subr.mxu0 %v1999
    %3848 = vmatpush1.msra.mxu0 %v1998
    %3849 = vmatprep.subr.mxu0 %v2123
    %3850 = vmatpush2.msra.mxu0 %v2122
    %3851 = vmatprep.subr.mxu0 %v2119
    %3852 = vmatpush2.msra.mxu0 %v2118
    %3853 = vmatprep.subr.mxu0 %v2115
    %3854 = vmatpush2.msra.mxu0 %v2114
    %3855 = vmatprep.subr.mxu0 %v2111
    %3856 = vmatpush2.msra.mxu0 %v2110
    %3857 = vmatprep.subr.mxu0 %v2107
    %3858 = vmatpush2.msra.mxu0 %v2106
    %3859 = vmatprep.subr.mxu0 %v2103
    %3860 = vmatpush2.msra.mxu0 %v2102
    %3861 = vmatprep.subr.mxu0 %v2099
    %3862 = vmatpush2.msra.mxu0 %v2098
    %3863 = vmatprep.subr.mxu0 %v2095
    %3864 = vmatpush2.msra.mxu0 %v2094
    %3865 = vmatprep.subr.mxu0 %v2091
    %3866 = vmatpush2.msra.mxu0 %v2090
    %3867 = vmatprep.subr.mxu0 %v2087
    %3868 = vmatpush2.msra.mxu0 %v2086
    %3869 = vmatprep.subr.mxu0 %v2083
    %3870 = vmatpush2.msra.mxu0 %v2082
    %3871 = vmatprep.subr.mxu0 %v2079
    %3872 = vmatpush2.msra.mxu0 %v2078
    %3873 = vmatprep.subr.mxu0 %v2075
    %3874 = vmatpush2.msra.mxu0 %v2074
    %3875 = vmatprep.subr.mxu0 %v2071
    %3876 = vmatpush2.msra.mxu0 %v2070
    %3877 = vmatprep.subr.mxu0 %v2067
    %3878 = vmatpush2.msra.mxu0 %v2066
    %3879 = vmatprep.subr.mxu0 %v2063
    %3880 = vmatpush2.msra.mxu0 %v2062
    %3881 = vmatprep.mubr.f32.mxu0 %v3745
    %3882 = vmatmul.mubr.f32.gmra.mxu0 %v3744
    %v3883 = vpop.f32.mrf.mxu0
    %v3884 = vadd.f32 %v2137, %v3883
    %v3885 = vpop.f32.mrf.mxu0
    %v3886 = vadd.f32 %v2141, %v3885
    %3887 = vdwg.mxu0
    %v3888 = vmax.f32 %v3813, 0.0
    %v3889 = vmax.f32 %v3815, 0.0
    %v3890 = vmax.f32 %v3884, 0.0
    %v3891 = vmax.f32 %v3886, 0.0
    %3892 = vmatprep.subr.mxu0 %v2323
    %3893 = vmatpush1.msra.mxu0 %v2322
    %3894 = vmatprep.subr.mxu0 %v2321
    %3895 = vmatpush1.msra.mxu0 %v2320
    %3896 = vmatprep.subr.mxu0 %v2319
    %3897 = vmatpush1.msra.mxu0 %v2318
    %3898 = vmatprep.subr.mxu0 %v2317
    %3899 = vmatpush1.msra.mxu0 %v2316
    %3900 = vmatprep.subr.mxu0 %v2315
    %3901 = vmatpush1.msra.mxu0 %v2314
    %3902 = vmatprep.subr.mxu0 %v2313
    %3903 = vmatpush1.msra.mxu0 %v2312
    %3904 = vmatprep.subr.mxu0 %v2311
    %3905 = vmatpush1.msra.mxu0 %v2310
    %3906 = vmatprep.subr.mxu0 %v2309
    %3907 = vmatpush1.msra.mxu0 %v2308
    %3908 = vmatprep.subr.mxu0 %v2307
    %3909 = vmatpush1.msra.mxu0 %v2306
    %3910 = vmatprep.subr.mxu0 %v2305
    %3911 = vmatpush1.msra.mxu0 %v2304
    %3912 = vmatprep.subr.mxu0 %v2303
    %3913 = vmatpush1.msra.mxu0 %v2302
    %3914 = vmatprep.subr.mxu0 %v2301
    %3915 = vmatpush1.msra.mxu0 %v2300
    %3916 = vmatprep.subr.mxu0 %v2299
    %3917 = vmatpush1.msra.mxu0 %v2298
    %3918 = vmatprep.subr.mxu0 %v2297
    %3919 = vmatpush1.msra.mxu0 %v2296
    %3920 = vmatprep.subr.mxu0 %v2295
    %3921 = vmatpush1.msra.mxu0 %v2294
    %3922 = vmatprep.subr.mxu0 %v2293
    %3923 = vmatpush1.msra.mxu0 %v2292
    %3924 = vmatprep.subr.mxu0 %v2355
    %3925 = vmatpush2.msra.mxu0 %v2354
    %3926 = vmatprep.subr.mxu0 %v2353
    %3927 = vmatpush2.msra.mxu0 %v2352
    %3928 = vmatprep.subr.mxu0 %v2351
    %3929 = vmatpush2.msra.mxu0 %v2350
    %3930 = vmatprep.subr.mxu0 %v2349
    %3931 = vmatpush2.msra.mxu0 %v2348
    %3932 = vmatprep.subr.mxu0 %v2347
    %3933 = vmatpush2.msra.mxu0 %v2346
    %3934 = vmatprep.subr.mxu0 %v2345
    %3935 = vmatpush2.msra.mxu0 %v2344
    %3936 = vmatprep.subr.mxu0 %v2343
    %3937 = vmatpush2.msra.mxu0 %v2342
    %3938 = vmatprep.subr.mxu0 %v2341
    %3939 = vmatpush2.msra.mxu0 %v2340
    %3940 = vmatprep.subr.mxu0 %v2339
    %3941 = vmatpush2.msra.mxu0 %v2338
    %3942 = vmatprep.subr.mxu0 %v2337
    %3943 = vmatpush2.msra.mxu0 %v2336
    %3944 = vmatprep.subr.mxu0 %v2335
    %3945 = vmatpush2.msra.mxu0 %v2334
    %3946 = vmatprep.subr.mxu0 %v2333
    %3947 = vmatpush2.msra.mxu0 %v2332
    %3948 = vmatprep.subr.mxu0 %v2331
    %3949 = vmatpush2.msra.mxu0 %v2330
    %3950 = vmatprep.subr.mxu0 %v2329
    %3951 = vmatpush2.msra.mxu0 %v2328
    %3952 = vmatprep.subr.mxu0 %v2327
    %3953 = vmatpush2.msra.mxu0 %v2326
    %3954 = vmatprep.subr.mxu0 %v2325
    %3955 = vmatpush2.msra.mxu0 %v2324
    %3956 = vmatprep.mubr.f32.mxu0 %v3889
    %3957 = vmatmul.mubr.f32.gmra.mxu0 %v3888
    %v3958 = vpop.f32.mrf.mxu0
    %v3959 = vadd.f32 %v2425, %v3958
    %v3960 = vpop.f32.mrf.mxu0
    %v3961 = vadd.f32 %v2429, %v3960
    %3962 = vdwg.mxu0
    %3963 = vmatprep.subr.mxu0 %v2387
    %3964 = vmatpush1.msra.mxu0 %v2386
    %3965 = vmatprep.subr.mxu0 %v2385
    %3966 = vmatpush1.msra.mxu0 %v2384
    %3967 = vmatprep.subr.mxu0 %v2383
    %3968 = vmatpush1.msra.mxu0 %v2382
    %3969 = vmatprep.subr.mxu0 %v2381
    %3970 = vmatpush1.msra.mxu0 %v2380
    %3971 = vmatprep.subr.mxu0 %v2379
    %3972 = vmatpush1.msra.mxu0 %v2378
    %3973 = vmatprep.subr.mxu0 %v2377
    %3974 = vmatpush1.msra.mxu0 %v2376
    %3975 = vmatprep.subr.mxu0 %v2375
    %3976 = vmatpush1.msra.mxu0 %v2374
    %3977 = vmatprep.subr.mxu0 %v2373
    %3978 = vmatpush1.msra.mxu0 %v2372
    %3979 = vmatprep.subr.mxu0 %v2371
    %3980 = vmatpush1.msra.mxu0 %v2370
    %3981 = vmatprep.subr.mxu0 %v2369
    %3982 = vmatpush1.msra.mxu0 %v2368
    %3983 = vmatprep.subr.mxu0 %v2367
    %3984 = vmatpush1.msra.mxu0 %v2366
    %3985 = vmatprep.subr.mxu0 %v2365
    %3986 = vmatpush1.msra.mxu0 %v2364
    %3987 = vmatprep.subr.mxu0 %v2363
    %3988 = vmatpush1.msra.mxu0 %v2362
    %3989 = vmatprep.subr.mxu0 %v2361
    %3990 = vmatpush1.msra.mxu0 %v2360
    %3991 = vmatprep.subr.mxu0 %v2359
    %3992 = vmatpush1.msra.mxu0 %v2358
    %3993 = vmatprep.subr.mxu0 %v2357
    %3994 = vmatpush1.msra.mxu0 %v2356
    %3995 = vmatprep.subr.mxu0 %v2419
    %3996 = vmatpush2.msra.mxu0 %v2418
    %3997 = vmatprep.subr.mxu0 %v2417
    %3998 = vmatpush2.msra.mxu0 %v2416
    %3999 = vmatprep.subr.mxu0 %v2415
    %4000 = vmatpush2.msra.mxu0 %v2414
    %4001 = vmatprep.subr.mxu0 %v2413
    %4002 = vmatpush2.msra.mxu0 %v2412
    %4003 = vmatprep.subr.mxu0 %v2411
    %4004 = vmatpush2.msra.mxu0 %v2410
    %4005 = vmatprep.subr.mxu0 %v2409
    %4006 = vmatpush2.msra.mxu0 %v2408
    %4007 = vmatprep.subr.mxu0 %v2407
    %4008 = vmatpush2.msra.mxu0 %v2406
    %4009 = vmatprep.subr.mxu0 %v2405
    %4010 = vmatpush2.msra.mxu0 %v2404
    %4011 = vmatprep.subr.mxu0 %v2403
    %4012 = vmatpush2.msra.mxu0 %v2402
    %4013 = vmatprep.subr.mxu0 %v2401
    %4014 = vmatpush2.msra.mxu0 %v2400
    %4015 = vmatprep.subr.mxu0 %v2399
    %4016 = vmatpush2.msra.mxu0 %v2398
    %4017 = vmatprep.subr.mxu0 %v2397
    %4018 = vmatpush2.msra.mxu0 %v2396
    %4019 = vmatprep.subr.mxu0 %v2395
    %4020 = vmatpush2.msra.mxu0 %v2394
    %4021 = vmatprep.subr.mxu0 %v2393
    %4022 = vmatpush2.msra.mxu0 %v2392
    %4023 = vmatprep.subr.mxu0 %v2391
    %4024 = vmatpush2.msra.mxu0 %v2390
    %4025 = vmatprep.subr.mxu0 %v2389
    %4026 = vmatpush2.msra.mxu0 %v2388
    %4027 = vmatprep.mubr.f32.mxu0 %v3891
    %4028 = vmatmul.mubr.f32.gmra.mxu0 %v3890
    %v4029 = vpop.f32.mrf.mxu0
    %v4030 = vadd.f32 %v3959, %v4029
    %v4031 = vpop.f32.mrf.mxu0
    %v4032 = vadd.f32 %v3961, %v4031
    %4033 = vdwg.mxu0
    %v4034 = vmax.f32 %v4030, 0.0
    %v4035 = vmax.f32 %v4032, 0.0
    %v4036 = vadd.f32 %v3744, %v4034
    %v4037 = vadd.f32 %v3745, %v4035
    %4038 = vmatprep.subr.mxu0 %v2057
    %4039 = vmatpush1.msra.mxu0 %v2056
    %4040 = vmatprep.subr.mxu0 %v2053
    %4041 = vmatpush1.msra.mxu0 %v2052
    %4042 = vmatprep.subr.mxu0 %v2049
    %4043 = vmatpush1.msra.mxu0 %v2048
    %4044 = vmatprep.subr.mxu0 %v2045
    %4045 = vmatpush1.msra.mxu0 %v2044
    %4046 = vmatprep.subr.mxu0 %v2041
    %4047 = vmatpush1.msra.mxu0 %v2040
    %4048 = vmatprep.subr.mxu0 %v2037
    %4049 = vmatpush1.msra.mxu0 %v2036
    %4050 = vmatprep.subr.mxu0 %v2033
    %4051 = vmatpush1.msra.mxu0 %v2032
    %4052 = vmatprep.subr.mxu0 %v2029
    %4053 = vmatpush1.msra.mxu0 %v2028
    %4054 = vmatprep.subr.mxu0 %v2025
    %4055 = vmatpush1.msra.mxu0 %v2024
    %4056 = vmatprep.subr.mxu0 %v2021
    %4057 = vmatpush1.msra.mxu0 %v2020
    %4058 = vmatprep.subr.mxu0 %v2017
    %4059 = vmatpush1.msra.mxu0 %v2016
    %4060 = vmatprep.subr.mxu0 %v2013
    %4061 = vmatpush1.msra.mxu0 %v2012
    %4062 = vmatprep.subr.mxu0 %v2009
    %4063 = vmatpush1.msra.mxu0 %v2008
    %4064 = vmatprep.subr.mxu0 %v2005
    %4065 = vmatpush1.msra.mxu0 %v2004
    %4066 = vmatprep.subr.mxu0 %v2001
    %4067 = vmatpush1.msra.mxu0 %v2000
    %4068 = vmatprep.subr.mxu0 %v1997
    %4069 = vmatpush1.msra.mxu0 %v1996
    %4070 = vmatprep.subr.mxu0 %v2121
    %4071 = vmatpush2.msra.mxu0 %v2120
    %4072 = vmatprep.subr.mxu0 %v2117
    %4073 = vmatpush2.msra.mxu0 %v2116
    %4074 = vmatprep.subr.mxu0 %v2113
    %4075 = vmatpush2.msra.mxu0 %v2112
    %4076 = vmatprep.subr.mxu0 %v2109
    %4077 = vmatpush2.msra.mxu0 %v2108
    %4078 = vmatprep.subr.mxu0 %v2105
    %4079 = vmatpush2.msra.mxu0 %v2104
    %4080 = vmatprep.subr.mxu0 %v2101
    %4081 = vmatpush2.msra.mxu0 %v2100
    %4082 = vmatprep.subr.mxu0 %v2097
    %4083 = vmatpush2.msra.mxu0 %v2096
    %4084 = vmatprep.subr.mxu0 %v2093
    %4085 = vmatpush2.msra.mxu0 %v2092
    %4086 = vmatprep.subr.mxu0 %v2089
    %4087 = vmatpush2.msra.mxu0 %v2088
    %4088 = vmatprep.subr.mxu0 %v2085
    %4089 = vmatpush2.msra.mxu0 %v2084
    %4090 = vmatprep.subr.mxu0 %v2081
    %4091 = vmatpush2.msra.mxu0 %v2080
    %4092 = vmatprep.subr.mxu0 %v2077
    %4093 = vmatpush2.msra.mxu0 %v2076
    %4094 = vmatprep.subr.mxu0 %v2073
    %4095 = vmatpush2.msra.mxu0 %v2072
    %4096 = vmatprep.subr.mxu0 %v2069
    %4097 = vmatpush2.msra.mxu0 %v2068
    %4098 = vmatprep.subr.mxu0 %v2065
    %4099 = vmatpush2.msra.mxu0 %v2064
    %4100 = vmatprep.subr.mxu0 %v2061
    %4101 = vmatpush2.msra.mxu0 %v2060
    %4102 = vmatprep.mubr.f32.mxu0 %v4037
    %4103 = vmatmul.mubr.f32.gmra.mxu0 %v4036
    %v4104 = vpop.f32.mrf.mxu0
    %v4105 = vadd.f32 %v2129, %v4104
    %v4106 = vpop.f32.mrf.mxu0
    %v4107 = vadd.f32 %v2133, %v4106
    %4108 = vdwg.mxu0
    %4109 = vmatprep.subr.mxu0 %v2059
    %4110 = vmatpush1.msra.mxu0 %v2058
    %4111 = vmatprep.subr.mxu0 %v2055
    %4112 = vmatpush1.msra.mxu0 %v2054
    %4113 = vmatprep.subr.mxu0 %v2051
    %4114 = vmatpush1.msra.mxu0 %v2050
    %4115 = vmatprep.subr.mxu0 %v2047
    %4116 = vmatpush1.msra.mxu0 %v2046
    %4117 = vmatprep.subr.mxu0 %v2043
    %4118 = vmatpush1.msra.mxu0 %v2042
    %4119 = vmatprep.subr.mxu0 %v2039
    %4120 = vmatpush1.msra.mxu0 %v2038
    %4121 = vmatprep.subr.mxu0 %v2035
    %4122 = vmatpush1.msra.mxu0 %v2034
    %4123 = vmatprep.subr.mxu0 %v2031
    %4124 = vmatpush1.msra.mxu0 %v2030
    %4125 = vmatprep.subr.mxu0 %v2027
    %4126 = vmatpush1.msra.mxu0 %v2026
    %4127 = vmatprep.subr.mxu0 %v2023
    %4128 = vmatpush1.msra.mxu0 %v2022
    %4129 = vmatprep.subr.mxu0 %v2019
    %4130 = vmatpush1.msra.mxu0 %v2018
    %4131 = vmatprep.subr.mxu0 %v2015
    %4132 = vmatpush1.msra.mxu0 %v2014
    %4133 = vmatprep.subr.mxu0 %v2011
    %4134 = vmatpush1.msra.mxu0 %v2010
    %4135 = vmatprep.subr.mxu0 %v2007
    %4136 = vmatpush1.msra.mxu0 %v2006
    %4137 = vmatprep.subr.mxu0 %v2003
    %4138 = vmatpush1.msra.mxu0 %v2002
    %4139 = vmatprep.subr.mxu0 %v1999
    %4140 = vmatpush1.msra.mxu0 %v1998
    %4141 = vmatprep.subr.mxu0 %v2123
    %4142 = vmatpush2.msra.mxu0 %v2122
    %4143 = vmatprep.subr.mxu0 %v2119
    %4144 = vmatpush2.msra.mxu0 %v2118
    %4145 = vmatprep.subr.mxu0 %v2115
    %4146 = vmatpush2.msra.mxu0 %v2114
    %4147 = vmatprep.subr.mxu0 %v2111
    %4148 = vmatpush2.msra.mxu0 %v2110
    %4149 = vmatprep.subr.mxu0 %v2107
    %4150 = vmatpush2.msra.mxu0 %v2106
    %4151 = vmatprep.subr.mxu0 %v2103
    %4152 = vmatpush2.msra.mxu0 %v2102
    %4153 = vmatprep.subr.mxu0 %v2099
    %4154 = vmatpush2.msra.mxu0 %v2098
    %4155 = vmatprep.subr.mxu0 %v2095
    %4156 = vmatpush2.msra.mxu0 %v2094
    %4157 = vmatprep.subr.mxu0 %v2091
    %4158 = vmatpush2.msra.mxu0 %v2090
    %4159 = vmatprep.subr.mxu0 %v2087
    %4160 = vmatpush2.msra.mxu0 %v2086
    %4161 = vmatprep.subr.mxu0 %v2083
    %4162 = vmatpush2.msra.mxu0 %v2082
    %4163 = vmatprep.subr.mxu0 %v2079
    %4164 = vmatpush2.msra.mxu0 %v2078
    %4165 = vmatprep.subr.mxu0 %v2075
    %4166 = vmatpush2.msra.mxu0 %v2074
    %4167 = vmatprep.subr.mxu0 %v2071
    %4168 = vmatpush2.msra.mxu0 %v2070
    %4169 = vmatprep.subr.mxu0 %v2067
    %4170 = vmatpush2.msra.mxu0 %v2066
    %4171 = vmatprep.subr.mxu0 %v2063
    %4172 = vmatpush2.msra.mxu0 %v2062
    %4173 = vmatprep.mubr.f32.mxu0 %v4037
    %4174 = vmatmul.mubr.f32.gmra.mxu0 %v4036
    %v4175 = vpop.f32.mrf.mxu0
    %v4176 = vadd.f32 %v2137, %v4175
    %v4177 = vpop.f32.mrf.mxu0
    %v4178 = vadd.f32 %v2141, %v4177
    %4179 = vdwg.mxu0
    %v4180 = vmax.f32 %v4105, 0.0
    %v4181 = vmax.f32 %v4107, 0.0
    %v4182 = vmax.f32 %v4176, 0.0
    %v4183 = vmax.f32 %v4178, 0.0
    %4184 = vmatprep.subr.mxu0 %v2323
    %4185 = vmatpush1.msra.mxu0 %v2322
    %4186 = vmatprep.subr.mxu0 %v2321
    %4187 = vmatpush1.msra.mxu0 %v2320
    %4188 = vmatprep.subr.mxu0 %v2319
    %4189 = vmatpush1.msra.mxu0 %v2318
    %4190 = vmatprep.subr.mxu0 %v2317
    %4191 = vmatpush1.msra.mxu0 %v2316
    %4192 = vmatprep.subr.mxu0 %v2315
    %4193 = vmatpush1.msra.mxu0 %v2314
    %4194 = vmatprep.subr.mxu0 %v2313
    %4195 = vmatpush1.msra.mxu0 %v2312
    %4196 = vmatprep.subr.mxu0 %v2311
    %4197 = vmatpush1.msra.mxu0 %v2310
    %4198 = vmatprep.subr.mxu0 %v2309
    %4199 = vmatpush1.msra.mxu0 %v2308
    %4200 = vmatprep.subr.mxu0 %v2307
    %4201 = vmatpush1.msra.mxu0 %v2306
    %4202 = vmatprep.subr.mxu0 %v2305
    %4203 = vmatpush1.msra.mxu0 %v2304
    %4204 = vmatprep.subr.mxu0 %v2303
    %4205 = vmatpush1.msra.mxu0 %v2302
    %4206 = vmatprep.subr.mxu0 %v2301
    %4207 = vmatpush1.msra.mxu0 %v2300
    %4208 = vmatprep.subr.mxu0 %v2299
    %4209 = vmatpush1.msra.mxu0 %v2298
    %4210 = vmatprep.subr.mxu0 %v2297
    %4211 = vmatpush1.msra.mxu0 %v2296
    %4212 = vmatprep.subr.mxu0 %v2295
    %4213 = vmatpush1.msra.mxu0 %v2294
    %4214 = vmatprep.subr.mxu0 %v2293
    %4215 = vmatpush1.msra.mxu0 %v2292
    %4216 = vmatprep.subr.mxu0 %v2355
    %4217 = vmatpush2.msra.mxu0 %v2354
    %4218 = vmatprep.subr.mxu0 %v2353
    %4219 = vmatpush2.msra.mxu0 %v2352
    %4220 = vmatprep.subr.mxu0 %v2351
    %4221 = vmatpush2.msra.mxu0 %v2350
    %4222 = vmatprep.subr.mxu0 %v2349
    %4223 = vmatpush2.msra.mxu0 %v2348
    %4224 = vmatprep.subr.mxu0 %v2347
    %4225 = vmatpush2.msra.mxu0 %v2346
    %4226 = vmatprep.subr.mxu0 %v2345
    %4227 = vmatpush2.msra.mxu0 %v2344
    %4228 = vmatprep.subr.mxu0 %v2343
    %4229 = vmatpush2.msra.mxu0 %v2342
    %4230 = vmatprep.subr.mxu0 %v2341
    %4231 = vmatpush2.msra.mxu0 %v2340
    %4232 = vmatprep.subr.mxu0 %v2339
    %4233 = vmatpush2.msra.mxu0 %v2338
    %4234 = vmatprep.subr.mxu0 %v2337
    %4235 = vmatpush2.msra.mxu0 %v2336
    %4236 = vmatprep.subr.mxu0 %v2335
    %4237 = vmatpush2.msra.mxu0 %v2334
    %4238 = vmatprep.subr.mxu0 %v2333
    %4239 = vmatpush2.msra.mxu0 %v2332
    %4240 = vmatprep.subr.mxu0 %v2331
    %4241 = vmatpush2.msra.mxu0 %v2330
    %4242 = vmatprep.subr.mxu0 %v2329
    %4243 = vmatpush2.msra.mxu0 %v2328
    %4244 = vmatprep.subr.mxu0 %v2327
    %4245 = vmatpush2.msra.mxu0 %v2326
    %4246 = vmatprep.subr.mxu0 %v2325
    %4247 = vmatpush2.msra.mxu0 %v2324
    %4248 = vmatprep.mubr.f32.mxu0 %v4181
    %4249 = vmatmul.mubr.f32.gmra.mxu0 %v4180
    %v4250 = vpop.f32.mrf.mxu0
    %v4251 = vadd.f32 %v2425, %v4250
    %v4252 = vpop.f32.mrf.mxu0
    %v4253 = vadd.f32 %v2429, %v4252
    %4254 = vdwg.mxu0
    %4255 = vmatprep.subr.mxu0 %v2387
    %4256 = vmatpush1.msra.mxu0 %v2386
    %4257 = vmatprep.subr.mxu0 %v2385
    %4258 = vmatpush1.msra.mxu0 %v2384
    %4259 = vmatprep.subr.mxu0 %v2383
    %4260 = vmatpush1.msra.mxu0 %v2382
    %4261 = vmatprep.subr.mxu0 %v2381
    %4262 = vmatpush1.msra.mxu0 %v2380
    %4263 = vmatprep.subr.mxu0 %v2379
    %4264 = vmatpush1.msra.mxu0 %v2378
    %4265 = vmatprep.subr.mxu0 %v2377
    %4266 = vmatpush1.msra.mxu0 %v2376
    %4267 = vmatprep.subr.mxu0 %v2375
    %4268 = vmatpush1.msra.mxu0 %v2374
    %4269 = vmatprep.subr.mxu0 %v2373
    %4270 = vmatpush1.msra.mxu0 %v2372
    %4271 = vmatprep.subr.mxu0 %v2371
    %4272 = vmatpush1.msra.mxu0 %v2370
    %4273 = vmatprep.subr.mxu0 %v2369
    %4274 = vmatpush1.msra.mxu0 %v2368
    %4275 = vmatprep.subr.mxu0 %v2367
    %4276 = vmatpush1.msra.mxu0 %v2366
    %4277 = vmatprep.subr.mxu0 %v2365
    %4278 = vmatpush1.msra.mxu0 %v2364
    %4279 = vmatprep.subr.mxu0 %v2363
    %4280 = vmatpush1.msra.mxu0 %v2362
    %4281 = vmatprep.subr.mxu0 %v2361
    %4282 = vmatpush1.msra.mxu0 %v2360
    %4283 = vmatprep.subr.mxu0 %v2359
    %4284 = vmatpush1.msra.mxu0 %v2358
    %4285 = vmatprep.subr.mxu0 %v2357
    %4286 = vmatpush1.msra.mxu0 %v2356
    %4287 = vmatprep.subr.mxu0 %v2419
    %4288 = vmatpush2.msra.mxu0 %v2418
    %4289 = vmatprep.subr.mxu0 %v2417
    %4290 = vmatpush2.msra.mxu0 %v2416
    %4291 = vmatprep.subr.mxu0 %v2415
    %4292 = vmatpush2.msra.mxu0 %v2414
    %4293 = vmatprep.subr.mxu0 %v2413
    %4294 = vmatpush2.msra.mxu0 %v2412
    %4295 = vmatprep.subr.mxu0 %v2411
    %4296 = vmatpush2.msra.mxu0 %v2410
    %4297 = vmatprep.subr.mxu0 %v2409
    %4298 = vmatpush2.msra.mxu0 %v2408
    %4299 = vmatprep.subr.mxu0 %v2407
    %4300 = vmatpush2.msra.mxu0 %v2406
    %4301 = vmatprep.subr.mxu0 %v2405
    %4302 = vmatpush2.msra.mxu0 %v2404
    %4303 = vmatprep.subr.mxu0 %v2403
    %4304 = vmatpush2.msra.mxu0 %v2402
    %4305 = vmatprep.subr.mxu0 %v2401
    %4306 = vmatpush2.msra.mxu0 %v2400
    %4307 = vmatprep.subr.mxu0 %v2399
    %4308 = vmatpush2.msra.mxu0 %v2398
    %4309 = vmatprep.subr.mxu0 %v2397
    %4310 = vmatpush2.msra.mxu0 %v2396
    %4311 = vmatprep.subr.mxu0 %v2395
    %4312 = vmatpush2.msra.mxu0 %v2394
    %4313 = vmatprep.subr.mxu0 %v2393
    %4314 = vmatpush2.msra.mxu0 %v2392
    %4315 = vmatprep.subr.mxu0 %v2391
    %4316 = vmatpush2.msra.mxu0 %v2390
    %4317 = vmatprep.subr.mxu0 %v2389
    %4318 = vmatpush2.msra.mxu0 %v2388
    %4319 = vmatprep.mubr.f32.mxu0 %v4183
    %4320 = vmatmul.mubr.f32.gmra.mxu0 %v4182
    %v4321 = vpop.f32.mrf.mxu0
    %v4322 = vadd.f32 %v4251, %v4321
    %v4323 = vpop.f32.mrf.mxu0
    %v4324 = vadd.f32 %v4253, %v4323
    %4325 = vdwg.mxu0
    %v4326 = vmax.f32 %v4322, 0.0
    %v4327 = vmax.f32 %v4324, 0.0
    %v4328 = vadd.f32 %v4036, %v4326
    %v4329 = vadd.f32 %v4037, %v4327
    %4330 = vmatprep.subr.mxu0 %v2057
    %4331 = vmatpush1.msra.mxu0 %v2056
    %4332 = vmatprep.subr.mxu0 %v2053
    %4333 = vmatpush1.msra.mxu0 %v2052
    %4334 = vmatprep.subr.mxu0 %v2049
    %4335 = vmatpush1.msra.mxu0 %v2048
    %4336 = vmatprep.subr.mxu0 %v2045
    %4337 = vmatpush1.msra.mxu0 %v2044
    %4338 = vmatprep.subr.mxu0 %v2041
    %4339 = vmatpush1.msra.mxu0 %v2040
    %4340 = vmatprep.subr.mxu0 %v2037
    %4341 = vmatpush1.msra.mxu0 %v2036
    %4342 = vmatprep.subr.mxu0 %v2033
    %4343 = vmatpush1.msra.mxu0 %v2032
    %4344 = vmatprep.subr.mxu0 %v2029
    %4345 = vmatpush1.msra.mxu0 %v2028
    %4346 = vmatprep.subr.mxu0 %v2025
    %4347 = vmatpush1.msra.mxu0 %v2024
    %4348 = vmatprep.subr.mxu0 %v2021
    %4349 = vmatpush1.msra.mxu0 %v2020
    %4350 = vmatprep.subr.mxu0 %v2017
    %4351 = vmatpush1.msra.mxu0 %v2016
    %4352 = vmatprep.subr.mxu0 %v2013
    %4353 = vmatpush1.msra.mxu0 %v2012
    %4354 = vmatprep.subr.mxu0 %v2009
    %4355 = vmatpush1.msra.mxu0 %v2008
    %4356 = vmatprep.subr.mxu0 %v2005
    %4357 = vmatpush1.msra.mxu0 %v2004
    %4358 = vmatprep.subr.mxu0 %v2001
    %4359 = vmatpush1.msra.mxu0 %v2000
    %4360 = vmatprep.subr.mxu0 %v1997
    %4361 = vmatpush1.msra.mxu0 %v1996
    %4362 = vmatprep.subr.mxu0 %v2121
    %4363 = vmatpush2.msra.mxu0 %v2120
    %4364 = vmatprep.subr.mxu0 %v2117
    %4365 = vmatpush2.msra.mxu0 %v2116
    %4366 = vmatprep.subr.mxu0 %v2113
    %4367 = vmatpush2.msra.mxu0 %v2112
    %4368 = vmatprep.subr.mxu0 %v2109
    %4369 = vmatpush2.msra.mxu0 %v2108
    %4370 = vmatprep.subr.mxu0 %v2105
    %4371 = vmatpush2.msra.mxu0 %v2104
    %4372 = vmatprep.subr.mxu0 %v2101
    %4373 = vmatpush2.msra.mxu0 %v2100
    %4374 = vmatprep.subr.mxu0 %v2097
    %4375 = vmatpush2.msra.mxu0 %v2096
    %4376 = vmatprep.subr.mxu0 %v2093
    %4377 = vmatpush2.msra.mxu0 %v2092
    %4378 = vmatprep.subr.mxu0 %v2089
    %4379 = vmatpush2.msra.mxu0 %v2088
    %4380 = vmatprep.subr.mxu0 %v2085
    %4381 = vmatpush2.msra.mxu0 %v2084
    %4382 = vmatprep.subr.mxu0 %v2081
    %4383 = vmatpush2.msra.mxu0 %v2080
    %4384 = vmatprep.subr.mxu0 %v2077
    %4385 = vmatpush2.msra.mxu0 %v2076
    %4386 = vmatprep.subr.mxu0 %v2073
    %4387 = vmatpush2.msra.mxu0 %v2072
    %4388 = vmatprep.subr.mxu0 %v2069
    %4389 = vmatpush2.msra.mxu0 %v2068
    %4390 = vmatprep.subr.mxu0 %v2065
    %4391 = vmatpush2.msra.mxu0 %v2064
    %4392 = vmatprep.subr.mxu0 %v2061
    %4393 = vmatpush2.msra.mxu0 %v2060
    %4394 = vmatprep.mubr.f32.mxu0 %v4329
    %4395 = vmatmul.mubr.f32.gmra.mxu0 %v4328
    %v4396 = vpop.f32.mrf.mxu0
    %v4397 = vadd.f32 %v2129, %v4396
    %v4398 = vpop.f32.mrf.mxu0
    %v4399 = vadd.f32 %v2133, %v4398
    %4400 = vdwg.mxu0
    %4401 = vmatprep.subr.mxu0 %v2059
    %4402 = vmatpush1.msra.mxu0 %v2058
    %4403 = vmatprep.subr.mxu0 %v2055
    %4404 = vmatpush1.msra.mxu0 %v2054
    %4405 = vmatprep.subr.mxu0 %v2051
    %4406 = vmatpush1.msra.mxu0 %v2050
    %4407 = vmatprep.subr.mxu0 %v2047
    %4408 = vmatpush1.msra.mxu0 %v2046
    %4409 = vmatprep.subr.mxu0 %v2043
    %4410 = vmatpush1.msra.mxu0 %v2042
    %4411 = vmatprep.subr.mxu0 %v2039
    %4412 = vmatpush1.msra.mxu0 %v2038
    %4413 = vmatprep.subr.mxu0 %v2035
    %4414 = vmatpush1.msra.mxu0 %v2034
    %4415 = vmatprep.subr.mxu0 %v2031
    %4416 = vmatpush1.msra.mxu0 %v2030
    %4417 = vmatprep.subr.mxu0 %v2027
    %4418 = vmatpush1.msra.mxu0 %v2026
    %4419 = vmatprep.subr.mxu0 %v2023
    %4420 = vmatpush1.msra.mxu0 %v2022
    %4421 = vmatprep.subr.mxu0 %v2019
    %4422 = vmatpush1.msra.mxu0 %v2018
    %4423 = vmatprep.subr.mxu0 %v2015
    %4424 = vmatpush1.msra.mxu0 %v2014
    %4425 = vmatprep.subr.mxu0 %v2011
    %4426 = vmatpush1.msra.mxu0 %v2010
    %4427 = vmatprep.subr.mxu0 %v2007
    %4428 = vmatpush1.msra.mxu0 %v2006
    %4429 = vmatprep.subr.mxu0 %v2003
    %4430 = vmatpush1.msra.mxu0 %v2002
    %4431 = vmatprep.subr.mxu0 %v1999
    %4432 = vmatpush1.msra.mxu0 %v1998
    %4433 = vmatprep.subr.mxu0 %v2123
    %4434 = vmatpush2.msra.mxu0 %v2122
    %4435 = vmatprep.subr.mxu0 %v2119
    %4436 = vmatpush2.msra.mxu0 %v2118
    %4437 = vmatprep.subr.mxu0 %v2115
    %4438 = vmatpush2.msra.mxu0 %v2114
    %4439 = vmatprep.subr.mxu0 %v2111
    %4440 = vmatpush2.msra.mxu0 %v2110
    %4441 = vmatprep.subr.mxu0 %v2107
    %4442 = vmatpush2.msra.mxu0 %v2106
    %4443 = vmatprep.subr.mxu0 %v2103
    %4444 = vmatpush2.msra.mxu0 %v2102
    %4445 = vmatprep.subr.mxu0 %v2099
    %4446 = vmatpush2.msra.mxu0 %v2098
    %4447 = vmatprep.subr.mxu0 %v2095
    %4448 = vmatpush2.msra.mxu0 %v2094
    %4449 = vmatprep.subr.mxu0 %v2091
    %4450 = vmatpush2.msra.mxu0 %v2090
    %4451 = vmatprep.subr.mxu0 %v2087
    %4452 = vmatpush2.msra.mxu0 %v2086
    %4453 = vmatprep.subr.mxu0 %v2083
    %4454 = vmatpush2.msra.mxu0 %v2082
    %4455 = vmatprep.subr.mxu0 %v2079
    %4456 = vmatpush2.msra.mxu0 %v2078
    %4457 = vmatprep.subr.mxu0 %v2075
    %4458 = vmatpush2.msra.mxu0 %v2074
    %4459 = vmatprep.subr.mxu0 %v2071
    %4460 = vmatpush2.msra.mxu0 %v2070
    %4461 = vmatprep.subr.mxu0 %v2067
    %4462 = vmatpush2.msra.mxu0 %v2066
    %4463 = vmatprep.subr.mxu0 %v2063
    %4464 = vmatpush2.msra.mxu0 %v2062
    %4465 = vmatprep.mubr.f32.mxu0 %v4329
    %4466 = vmatmul.mubr.f32.gmra.mxu0 %v4328
    %v4467 = vpop.f32.mrf.mxu0
    %v4468 = vadd.f32 %v2137, %v4467
    %v4469 = vpop.f32.mrf.mxu0
    %v4470 = vadd.f32 %v2141, %v4469
    %4471 = vdwg.mxu0
    %v4472 = vmax.f32 %v4397, 0.0
    %v4473 = vmax.f32 %v4399, 0.0
    %v4474 = vmax.f32 %v4468, 0.0
    %v4475 = vmax.f32 %v4470, 0.0
    %4476 = vmatprep.subr.mxu0 %v2323
    %4477 = vmatpush1.msra.mxu0 %v2322
    %4478 = vmatprep.subr.mxu0 %v2321
    %4479 = vmatpush1.msra.mxu0 %v2320
    %4480 = vmatprep.subr.mxu0 %v2319
    %4481 = vmatpush1.msra.mxu0 %v2318
    %4482 = vmatprep.subr.mxu0 %v2317
    %4483 = vmatpush1.msra.mxu0 %v2316
    %4484 = vmatprep.subr.mxu0 %v2315
    %4485 = vmatpush1.msra.mxu0 %v2314
    %4486 = vmatprep.subr.mxu0 %v2313
    %4487 = vmatpush1.msra.mxu0 %v2312
    %4488 = vmatprep.subr.mxu0 %v2311
    %4489 = vmatpush1.msra.mxu0 %v2310
    %4490 = vmatprep.subr.mxu0 %v2309
    %4491 = vmatpush1.msra.mxu0 %v2308
    %4492 = vmatprep.subr.mxu0 %v2307
    %4493 = vmatpush1.msra.mxu0 %v2306
    %4494 = vmatprep.subr.mxu0 %v2305
    %4495 = vmatpush1.msra.mxu0 %v2304
    %4496 = vmatprep.subr.mxu0 %v2303
    %4497 = vmatpush1.msra.mxu0 %v2302
    %4498 = vmatprep.subr.mxu0 %v2301
    %4499 = vmatpush1.msra.mxu0 %v2300
    %4500 = vmatprep.subr.mxu0 %v2299
    %4501 = vmatpush1.msra.mxu0 %v2298
    %4502 = vmatprep.subr.mxu0 %v2297
    %4503 = vmatpush1.msra.mxu0 %v2296
    %4504 = vmatprep.subr.mxu0 %v2295
    %4505 = vmatpush1.msra.mxu0 %v2294
    %4506 = vmatprep.subr.mxu0 %v2293
    %4507 = vmatpush1.msra.mxu0 %v2292
    %4508 = vmatprep.subr.mxu0 %v2355
    %4509 = vmatpush2.msra.mxu0 %v2354
    %4510 = vmatprep.subr.mxu0 %v2353
    %4511 = vmatpush2.msra.mxu0 %v2352
    %4512 = vmatprep.subr.mxu0 %v2351
    %4513 = vmatpush2.msra.mxu0 %v2350
    %4514 = vmatprep.subr.mxu0 %v2349
    %4515 = vmatpush2.msra.mxu0 %v2348
    %4516 = vmatprep.subr.mxu0 %v2347
    %4517 = vmatpush2.msra.mxu0 %v2346
    %4518 = vmatprep.subr.mxu0 %v2345
    %4519 = vmatpush2.msra.mxu0 %v2344
    %4520 = vmatprep.subr.mxu0 %v2343
    %4521 = vmatpush2.msra.mxu0 %v2342
    %4522 = vmatprep.subr.mxu0 %v2341
    %4523 = vmatpush2.msra.mxu0 %v2340
    %4524 = vmatprep.subr.mxu0 %v2339
    %4525 = vmatpush2.msra.mxu0 %v2338
    %4526 = vmatprep.subr.mxu0 %v2337
    %4527 = vmatpush2.msra.mxu0 %v2336
    %4528 = vmatprep.subr.mxu0 %v2335
    %4529 = vmatpush2.msra.mxu0 %v2334
    %4530 = vmatprep.subr.mxu0 %v2333
    %4531 = vmatpush2.msra.mxu0 %v2332
    %4532 = vmatprep.subr.mxu0 %v2331
    %4533 = vmatpush2.msra.mxu0 %v2330
    %4534 = vmatprep.subr.mxu0 %v2329
    %4535 = vmatpush2.msra.mxu0 %v2328
    %4536 = vmatprep.subr.mxu0 %v2327
    %4537 = vmatpush2.msra.mxu0 %v2326
    %4538 = vmatprep.subr.mxu0 %v2325
    %4539 = vmatpush2.msra.mxu0 %v2324
    %4540 = vmatprep.mubr.f32.mxu0 %v4473
    %4541 = vmatmul.mubr.f32.gmra.mxu0 %v4472
    %v4542 = vpop.f32.mrf.mxu0
    %v4543 = vadd.f32 %v2425, %v4542
    %v4544 = vpop.f32.mrf.mxu0
    %v4545 = vadd.f32 %v2429, %v4544
    %4546 = vdwg.mxu0
    %4547 = vmatprep.subr.mxu0 %v2387
    %4548 = vmatpush1.msra.mxu0 %v2386
    %4549 = vmatprep.subr.mxu0 %v2385
    %4550 = vmatpush1.msra.mxu0 %v2384
    %4551 = vmatprep.subr.mxu0 %v2383
    %4552 = vmatpush1.msra.mxu0 %v2382
    %4553 = vmatprep.subr.mxu0 %v2381
    %4554 = vmatpush1.msra.mxu0 %v2380
    %4555 = vmatprep.subr.mxu0 %v2379
    %4556 = vmatpush1.msra.mxu0 %v2378
    %4557 = vmatprep.subr.mxu0 %v2377
    %4558 = vmatpush1.msra.mxu0 %v2376
    %4559 = vmatprep.subr.mxu0 %v2375
    %4560 = vmatpush1.msra.mxu0 %v2374
    %4561 = vmatprep.subr.mxu0 %v2373
    %4562 = vmatpush1.msra.mxu0 %v2372
    %4563 = vmatprep.subr.mxu0 %v2371
    %4564 = vmatpush1.msra.mxu0 %v2370
    %4565 = vmatprep.subr.mxu0 %v2369
    %4566 = vmatpush1.msra.mxu0 %v2368
    %4567 = vmatprep.subr.mxu0 %v2367
    %4568 = vmatpush1.msra.mxu0 %v2366
    %4569 = vmatprep.subr.mxu0 %v2365
    %4570 = vmatpush1.msra.mxu0 %v2364
    %4571 = vmatprep.subr.mxu0 %v2363
    %4572 = vmatpush1.msra.mxu0 %v2362
    %4573 = vmatprep.subr.mxu0 %v2361
    %4574 = vmatpush1.msra.mxu0 %v2360
    %4575 = vmatprep.subr.mxu0 %v2359
    %4576 = vmatpush1.msra.mxu0 %v2358
    %4577 = vmatprep.subr.mxu0 %v2357
    %4578 = vmatpush1.msra.mxu0 %v2356
    %4579 = vmatprep.subr.mxu0 %v2419
    %4580 = vmatpush2.msra.mxu0 %v2418
    %4581 = vmatprep.subr.mxu0 %v2417
    %4582 = vmatpush2.msra.mxu0 %v2416
    %4583 = vmatprep.subr.mxu0 %v2415
    %4584 = vmatpush2.msra.mxu0 %v2414
    %4585 = vmatprep.subr.mxu0 %v2413
    %4586 = vmatpush2.msra.mxu0 %v2412
    %4587 = vmatprep.subr.mxu0 %v2411
    %4588 = vmatpush2.msra.mxu0 %v2410
    %4589 = vmatprep.subr.mxu0 %v2409
    %4590 = vmatpush2.msra.mxu0 %v2408
    %4591 = vmatprep.subr.mxu0 %v2407
    %4592 = vmatpush2.msra.mxu0 %v2406
    %4593 = vmatprep.subr.mxu0 %v2405
    %4594 = vmatpush2.msra.mxu0 %v2404
    %4595 = vmatprep.subr.mxu0 %v2403
    %4596 = vmatpush2.msra.mxu0 %v2402
    %4597 = vmatprep.subr.mxu0 %v2401
    %4598 = vmatpush2.msra.mxu0 %v2400
    %4599 = vmatprep.subr.mxu0 %v2399
    %4600 = vmatpush2.msra.mxu0 %v2398
    %4601 = vmatprep.subr.mxu0 %v2397
    %4602 = vmatpush2.msra.mxu0 %v2396
    %4603 = vmatprep.subr.mxu0 %v2395
    %4604 = vmatpush2.msra.mxu0 %v2394
    %4605 = vmatprep.subr.mxu0 %v2393
    %4606 = vmatpush2.msra.mxu0 %v2392
    %4607 = vmatprep.subr.mxu0 %v2391
    %4608 = vmatpush2.msra.mxu0 %v2390
    %4609 = vmatprep.subr.mxu0 %v2389
    %4610 = vmatpush2.msra.mxu0 %v2388
    %4611 = vmatprep.mubr.f32.mxu0 %v4475
    %4612 = vmatmul.mubr.f32.gmra.mxu0 %v4474
    %v4613 = vpop.f32.mrf.mxu0
    %v4614 = vadd.f32 %v4543, %v4613
    %v4615 = vpop.f32.mrf.mxu0
    %v4616 = vadd.f32 %v4545, %v4615
    %4617 = vdwg.mxu0
    %v4618 = vmax.f32 %v4614, 0.0
    %v4619 = vmax.f32 %v4616, 0.0
    %v4620 = vadd.f32 %v4328, %v4618
    %v4621 = vadd.f32 %v4329, %v4619
    %v4622 = vld [vmem:[%s10] sm:$0xff]
    %v4623 = vld [vmem:[%s10 + $0x8] sm:$0xff]
    %v4624 = vld [vmem:[%s10 + $0x10] sm:$0xff]
    %v4625 = vld [vmem:[%s10 + $0x18] sm:$0xff]
    %v4626 = vld [vmem:[%s10 + $0x20] sm:$0xff]
    %v4627 = vld [vmem:[%s10 + $0x28] sm:$0xff]
    %v4628 = vld [vmem:[%s10 + $0x30] sm:$0xff]
    %v4629 = vld [vmem:[%s10 + $0x38] sm:$0xff]
    %v4630 = vld [vmem:[%s10 + $0x40] sm:$0xff]
    %v4631 = vld [vmem:[%s10 + $0x48] sm:$0xff]
    %v4632 = vld [vmem:[%s10 + $0x50] sm:$0xff]
    %v4633 = vld [vmem:[%s10 + $0x58] sm:$0xff]
    %v4634 = vld [vmem:[%s10 + $0x60] sm:$0xff]
    %v4635 = vld [vmem:[%s10 + $0x68] sm:$0xff]
    %v4636 = vld [vmem:[%s10 + $0x70] sm:$0xff]
    %v4637 = vld [vmem:[%s10 + $0x78] sm:$0xff]
    %v4638 = vld [vmem:[%s10 + $0x80] sm:$0xff]
    %v4639 = vld [vmem:[%s10 + $0x88] sm:$0xff]
    %v4640 = vld [vmem:[%s10 + $0x90] sm:$0xff]
    %v4641 = vld [vmem:[%s10 + $0x98] sm:$0xff]
    %v4642 = vld [vmem:[%s10 + $0xa0] sm:$0xff]
    %v4643 = vld [vmem:[%s10 + $0xa8] sm:$0xff]
    %v4644 = vld [vmem:[%s10 + $0xb0] sm:$0xff]
    %v4645 = vld [vmem:[%s10 + $0xb8] sm:$0xff]
    %v4646 = vld [vmem:[%s10 + $0xc0] sm:$0xff]
    %v4647 = vld [vmem:[%s10 + $0xc8] sm:$0xff]
    %v4648 = vld [vmem:[%s10 + $0xd0] sm:$0xff]
    %v4649 = vld [vmem:[%s10 + $0xd8] sm:$0xff]
    %v4650 = vld [vmem:[%s10 + $0xe0] sm:$0xff]
    %v4651 = vld [vmem:[%s10 + $0xe8] sm:$0xff]
    %v4652 = vld [vmem:[%s10 + $0xf0] sm:$0xff]
    %v4653 = vld [vmem:[%s10 + $0xf8] sm:$0xff]
    %v4654 = vld [vmem:[#allocation2] sm:$0x1]
    %v4656 = vlaneseq
    %v4657 = vshrl.u32 %v4656, 7
    %v4658 = vsub.s32 0, %v4657
    %v4659 = vrot.slane %v4654, %v4658
    %4661 = vmatprep.subr.mxu0 0.0
    %4662 = vmatpush1.msra.mxu0 %v4637
    %4663 = vmatprep.subr.mxu0 0.0
    %4664 = vmatpush1.msra.mxu0 %v4636
    %4665 = vmatprep.subr.mxu0 0.0
    %4666 = vmatpush1.msra.mxu0 %v4635
    %4667 = vmatprep.subr.mxu0 0.0
    %4668 = vmatpush1.msra.mxu0 %v4634
    %4669 = vmatprep.subr.mxu0 0.0
    %4670 = vmatpush1.msra.mxu0 %v4633
    %4671 = vmatprep.subr.mxu0 0.0
    %4672 = vmatpush1.msra.mxu0 %v4632
    %4673 = vmatprep.subr.mxu0 0.0
    %4674 = vmatpush1.msra.mxu0 %v4631
    %4675 = vmatprep.subr.mxu0 0.0
    %4676 = vmatpush1.msra.mxu0 %v4630
    %4677 = vmatprep.subr.mxu0 0.0
    %4678 = vmatpush1.msra.mxu0 %v4629
    %4679 = vmatprep.subr.mxu0 0.0
    %4680 = vmatpush1.msra.mxu0 %v4628
    %4681 = vmatprep.subr.mxu0 0.0
    %4682 = vmatpush1.msra.mxu0 %v4627
    %4683 = vmatprep.subr.mxu0 0.0
    %4684 = vmatpush1.msra.mxu0 %v4626
    %4685 = vmatprep.subr.mxu0 0.0
    %4686 = vmatpush1.msra.mxu0 %v4625
    %4687 = vmatprep.subr.mxu0 0.0
    %4688 = vmatpush1.msra.mxu0 %v4624
    %4689 = vmatprep.subr.mxu0 0.0
    %4690 = vmatpush1.msra.mxu0 %v4623
    %4691 = vmatprep.subr.mxu0 0.0
    %4692 = vmatpush1.msra.mxu0 %v4622
    %4693 = vmatprep.subr.mxu0 0.0
    %4694 = vmatpush2.msra.mxu0 %v4653
    %4695 = vmatprep.subr.mxu0 0.0
    %4696 = vmatpush2.msra.mxu0 %v4652
    %4697 = vmatprep.subr.mxu0 0.0
    %4698 = vmatpush2.msra.mxu0 %v4651
    %4699 = vmatprep.subr.mxu0 0.0
    %4700 = vmatpush2.msra.mxu0 %v4650
    %4701 = vmatprep.subr.mxu0 0.0
    %4702 = vmatpush2.msra.mxu0 %v4649
    %4703 = vmatprep.subr.mxu0 0.0
    %4704 = vmatpush2.msra.mxu0 %v4648
    %4705 = vmatprep.subr.mxu0 0.0
    %4706 = vmatpush2.msra.mxu0 %v4647
    %4707 = vmatprep.subr.mxu0 0.0
    %4708 = vmatpush2.msra.mxu0 %v4646
    %4709 = vmatprep.subr.mxu0 0.0
    %4710 = vmatpush2.msra.mxu0 %v4645
    %4711 = vmatprep.subr.mxu0 0.0
    %4712 = vmatpush2.msra.mxu0 %v4644
    %4713 = vmatprep.subr.mxu0 0.0
    %4714 = vmatpush2.msra.mxu0 %v4643
    %4715 = vmatprep.subr.mxu0 0.0
    %4716 = vmatpush2.msra.mxu0 %v4642
    %4717 = vmatprep.subr.mxu0 0.0
    %4718 = vmatpush2.msra.mxu0 %v4641
    %4719 = vmatprep.subr.mxu0 0.0
    %4720 = vmatpush2.msra.mxu0 %v4640
    %4721 = vmatprep.subr.mxu0 0.0
    %4722 = vmatpush2.msra.mxu0 %v4639
    %4723 = vmatprep.subr.mxu0 0.0
    %4724 = vmatpush2.msra.mxu0 %v4638
    %4725 = vmatprep.mubr.f32.mxu0 %v4621
    %4726 = vmatmul.mubr.f32.gmra.mxu0 %v4620
    %v4727 = vpop.f32.mrf.mxu0
    %v4728 = vadd.f32 %v4659, %v4727
    %v4729 = vpop.f32.mrf.mxu0
    %4730 = vdwg.mxu0
    %vm4731 = vcmask 1024
    %4732 = vst.msk [vmem:[%s12] sm:$0x3] %vm4731, %v4728
    // Predicated region
    $region86: #{kanres_forward.1} parent=1 // pred_check
      _
    $region87: #{kanres_forward.1} parent=1 // pred_check_branch
      %4734 = sbr.rel (0) target = $region89
    $region88: #{kanres_forward.1} parent=1 // pred_region
      _
    $region89: #{kanres_forward.1} parent=1 // pred_fallthru
      _
    // Predicated region
    $region90: #{kanres_forward.1} parent=1 // pred_check
      _
    $region91: #{kanres_forward.1} parent=1 // pred_check_branch
      %4736 = sbr.rel (0) target = $region93
    $region92: #{kanres_forward.1} parent=1 // pred_region
      _
    $region93: #{kanres_forward.1} parent=1 // pred_fallthru
      _
    %4737 = vsyncpa [#allocation4], 1
    %4738 = vsyncpa [#allocation6], 1
    %4739 = vsyncpa [#allocation9], 1
    %4740 = vsyncpa [#allocation12], 1
    %4741 = vsyncpa [#allocation15], 1

</llo_original>
